<compile_context>
chip_gen: v7x
topology: tpu7x:2x2x1
jax: 0.10.0
libtpu: 0.0.40
codegen_flags: <defaults>
</compile_context>

<pallas_src>
import numpy as np

import jax
import jax.numpy as jnp
from jax.experimental import pallas as pl
from jax.experimental.pallas import tpu as pltpu


def _lstm_kernel(x2d_ref,            # [T*B, D]    bf16 (time-major, flattened)
                 wih0_ref,           # [D, 4Hp]    bf16
                 b0_ref,             # [1, 4Hp]    f32  (b_ih + b_hh, layer 0)
                 wf_ref,             # [2Hp, 8Hp]  bf16 fused [[whh0,wih1],[0,whh1]]
                 b1_ref,             # [1, 4Hp]    f32  (b_ih + b_hh, layer 1)
                 wlin_ref,           # [1, Hp]     f32
                 blin_ref,           # [1, 1]      f32
                 y_ref,              # [B, 128]    f32  (lane-dense; col 0 valid)
                 xproj_ref,          # VMEM [T*B, 4Hp] f32 scratch
                 lhs_ref):           # VMEM [B, 2Hp]   bf16 scratch (wave LHS)
    B = y_ref.shape[0]
    TB = x2d_ref.shape[0]
    T = TB // B
    Hp = wlin_ref.shape[1]
    G = 4 * Hp

    f32 = jnp.float32
    bf16 = jnp.bfloat16

    # --- Hoisted: layer-0 input projection for ALL timesteps in one matmul,
    # folded bias added once.  Materialized into VMEM scratch to bound vreg
    # pressure across the unrolled waves. -----------------------------------
    xproj_ref[...] = (jnp.dot(x2d_ref[...], wih0_ref[...],
                              preferred_element_type=f32)
                      + b0_ref[...])                          # [T*B, 4Hp] f32

    wf = wf_ref[...]
    # Hoisted layer-1 bias broadcast (JAX does not CSE broadcasts in loops).
    b1b = jnp.broadcast_to(b1_ref[...], (B, G))

    def sigmoid(x):
        # Exact: sigmoid(x) = 0.5*tanh(0.5*x) + 0.5  (single EUP push + fma).
        return 0.5 * jnp.tanh(0.5 * x) + 0.5

    def cell_update(g, c):
        # Gate slices are full 128-lane vregs thanks to Hp=128 padding.
        i = sigmoid(g[:, 0 * Hp:1 * Hp])
        f = sigmoid(g[:, 1 * Hp:2 * Hp])
        gg = jnp.tanh(g[:, 2 * Hp:3 * Hp])
        o = sigmoid(g[:, 3 * Hp:4 * Hp])
        c_new = f * c + i * gg
        h_new = o * jnp.tanh(c_new)
        return h_new, c_new

    # --- Wave 0: layer-0 step 0.  h0(-1)=0, so no recurrent matmul needed. ---
    lhs_ref[...] = jnp.zeros((B, 2 * Hp), bf16)               # h0(-1)=h1(-1)=0
    h0, c0 = cell_update(xproj_ref[0:B, :], jnp.zeros((B, Hp), f32))
    lhs_ref[:, 0:Hp] = h0.astype(bf16)                        # eager bf16 copy

    h1 = jnp.zeros((B, Hp), f32)
    c1 = jnp.zeros((B, Hp), f32)

    # --- Waves 1..T (fully unrolled; T small & static).  One fused MXU push
    # per wave: [h0(w-1) | h1(w-2)] @ [[whh0, wih1],[0, whh1]]. ---------------
    for w in range(1, T + 1):
        gall = jnp.dot(lhs_ref[...], wf, preferred_element_type=f32)  # [B, 8Hp]

        # Layer-1 step (w-1): right slab (uses h0(w-1) and h1(w-2)).
        h1, c1 = cell_update(gall[:, G:2 * G] + b1b, c1)
        lhs_ref[:, Hp:2 * Hp] = h1.astype(bf16)

        # Layer-0 step w (only while w < T): left slab + xproj[w].
        if w < T:
            h0, c0 = cell_update(xproj_ref[w * B:(w + 1) * B, :] + gall[:, 0:G],
                                 c0)
            lhs_ref[:, 0:Hp] = h0.astype(bf16)

    # --- Linear head on h1 = h1(T-1): VPU multiply + lane reduce.  Store the
    # result lane-dense as [B, 128] (unmasked vst); wrapper slices column 0. --
    wrow = jnp.broadcast_to(wlin_ref[...], (B, Hp))
    y = jnp.sum(h1 * wrow, axis=-1, keepdims=True) + blin_ref[...]    # [B, 1]
    y_ref[...] = jnp.broadcast_to(y, (B, y_ref.shape[1]))


@jax.jit
def lstm_net_forward(x_btd, kp):
    """x_btd: [B, T, D] float32 (batch_first, like PyTorch).  Returns [B, 1]."""
    B, T, D = x_btd.shape
    Hp = kp["wlin"].shape[1]

    # Glue: time-major, flattened to [T*B, D], bf16 matmul inputs.
    x_tbd = jnp.transpose(x_btd, (1, 0, 2))
    x2d = x_tbd.reshape(T * B, D).astype(jnp.bfloat16)

    operands = (x2d, kp["wih0"], kp["b0"], kp["wf"], kp["b1"],
                kp["wlin"], kp["blin"])

    # Advisory cost hint for XLA's scheduler around the tiny custom call.
    flops = (2 * T * B * D * 4 * Hp            # hoisted input projection
             + 2 * T * B * (2 * Hp) * (8 * Hp)  # T fused wave matmuls
             + 2 * B * Hp)                      # linear head
    transcendentals = 2 * 5 * T * B * Hp
    bytes_accessed = (sum(int(np.prod(op.shape)) * op.dtype.itemsize
                          for op in operands) + B * 128 * 4)

    y_full = pl.pallas_call(
        _lstm_kernel,
        out_shape=jax.ShapeDtypeStruct((B, 128), jnp.float32),
        scratch_shapes=[pltpu.VMEM((T * B, 4 * Hp), jnp.float32),
                        pltpu.VMEM((B, 2 * Hp), jnp.bfloat16)],
        cost_estimate=pl.CostEstimate(flops=flops,
                                      transcendentals=transcendentals,
                                      bytes_accessed=bytes_accessed),
    )(*operands)
    return y_full[:, :1]


def init_params(key, input_dim, hidden_dim):
    """PyTorch-layout params, uniform(-1/sqrt(H), 1/sqrt(H)) like nn.LSTM/Linear."""
    H, D = hidden_dim, input_dim
    bound = 1.0 / jnp.sqrt(jnp.float32(H))
    ks = jax.random.split(key, 10)

    def u(k, shape):
        return jax.random.uniform(k, shape, jnp.float32, -bound, bound)

    return dict(
        w_ih_l0=u(ks[0], (4 * H, D)),
        w_hh_l0=u(ks[1], (4 * H, H)),
        b_ih_l0=u(ks[2], (4 * H,)),
        b_hh_l0=u(ks[3], (4 * H,)),
        w_ih_l1=u(ks[4], (4 * H, H)),
        w_hh_l1=u(ks[5], (4 * H, H)),
        b_ih_l1=u(ks[6], (4 * H,)),
        b_hh_l1=u(ks[7], (4 * H,)),
        w_lin=u(ks[8], (1, H)),
        b_lin=u(ks[9], (1,)),
    )


def prepare_kernel_params(params, hidden_pad=128):
    """Pad H -> Hp per gate, transpose to [in, 4Hp], fold biases, build the
    fused wavefront RHS [[whh0, wih1],[0, whh1]], cast matmul operands to bf16.
    Asserts the padded-lane-is-zero invariant the kernel relies on."""
    H = params["w_hh_l0"].shape[1]
    D = params["w_ih_l0"].shape[1]
    Hp = hidden_pad
    assert Hp >= H and Hp % 128 == 0

    def pad_gates(w, in_pad):
        # w: [4H, In] (PyTorch, gate-blocked rows) -> [in_pad, 4Hp]
        _, in_dim = w.shape
        w4 = w.reshape(4, H, in_dim)
        w4 = jnp.pad(w4, ((0, 0), (0, Hp - H), (0, in_pad - in_dim)))
        return jnp.transpose(w4.reshape(4 * Hp, in_pad), (1, 0))

    def pad_bias(b_ih, b_hh):
        b = (b_ih + b_hh).reshape(4, H)
        b = jnp.pad(b, ((0, 0), (0, Hp - H)))
        return b.reshape(1, 4 * Hp)

    wih0 = pad_gates(params["w_ih_l0"], D)        # [D, 4Hp]
    whh0 = pad_gates(params["w_hh_l0"], Hp)       # [Hp, 4Hp]
    wih1 = pad_gates(params["w_ih_l1"], Hp)       # [Hp, 4Hp]
    whh1 = pad_gates(params["w_hh_l1"], Hp)       # [Hp, 4Hp]

    # Wavefront block RHS: [h0(w-1) | h1(w-2)] @ [[whh0, wih1],[0, whh1]]
    # -> [layer-0 gate slab | layer-1 gate slab] in a single MXU push.
    wf = jnp.concatenate(
        [jnp.concatenate([whh0, wih1], axis=1),
         jnp.concatenate([jnp.zeros_like(whh1), whh1], axis=1)],
        axis=0)                                    # [2Hp, 8Hp]

    kp = dict(
        wih0=wih0.astype(jnp.bfloat16),
        b0=pad_bias(params["b_ih_l0"], params["b_hh_l0"]).astype(jnp.float32),
        wf=wf.astype(jnp.bfloat16),
        b1=pad_bias(params["b_ih_l1"], params["b_hh_l1"]).astype(jnp.float32),
        wlin=jnp.pad(params["w_lin"], ((0, 0), (0, Hp - H))).astype(jnp.float32),
        blin=params["b_lin"].reshape(1, 1).astype(jnp.float32),
    )

    # --- Padded-lane invariant: padded gate columns / head lanes must be 0 so
    # that lanes H..Hp of h/c stay exactly 0 inside the kernel. --------------
    def _check_pad_cols(a):
        cols = np.asarray(a, dtype=np.float32).reshape(-1, 4, Hp)[:, :, H:]
        assert np.all(cols == 0.0), "padded gate columns must be zero"
    _check_pad_cols(kp["wih0"])
    _check_pad_cols(kp["wf"][:, :4 * Hp])
    _check_pad_cols(kp["wf"][:, 4 * Hp:])
    _check_pad_cols(kp["b0"])
    _check_pad_cols(kp["b1"])
    assert np.all(np.asarray(kp["wlin"])[:, H:] == 0.0)
    return kp


def lstm_net_reference(x_btd, params):
    """Pure-JAX f32 reference matching PyTorch eval-mode semantics."""
    B, T, _ = x_btd.shape
    H = params["w_hh_l0"].shape[1]

    def cell(x_t, h, c, w_ih, w_hh, b_ih, b_hh):
        g = x_t @ w_ih.T + h @ w_hh.T + b_ih + b_hh
        i = jax.nn.sigmoid(g[:, 0 * H:1 * H])
        f = jax.nn.sigmoid(g[:, 1 * H:2 * H])
        gg = jnp.tanh(g[:, 2 * H:3 * H])
        o = jax.nn.sigmoid(g[:, 3 * H:4 * H])
        c = f * c + i * gg
        return o * jnp.tanh(c), c

    h0 = c0 = h1 = c1 = jnp.zeros((B, H), jnp.float32)
    for t in range(T):
        x_t = x_btd[:, t, :]
        h0, c0 = cell(x_t, h0, c0, params["w_ih_l0"], params["w_hh_l0"],
                      params["b_ih_l0"], params["b_hh_l0"])
        h1, c1 = cell(h0, h1, c1, params["w_ih_l1"], params["w_hh_l1"],
                      params["b_ih_l1"], params["b_hh_l1"])
    return h1 @ params["w_lin"].T + params["b_lin"]


if __name__ == "__main__":
    B, T, D, H = 8, 8, 8, 32   # batch, seq_len, input_dim, hidden_dim

    key = jax.random.PRNGKey(0)
    k_x, k_p = jax.random.split(key)
    x = jax.random.normal(k_x, (B, T, D), jnp.float32)   # batch_first
    params = init_params(k_p, D, H)
    kparams = prepare_kernel_params(params)

    y = lstm_net_forward(x, kparams)
    jax.block_until_ready(y)
    assert y.shape == (B, 1) and y.dtype == jnp.float32

    # Sanity vs. f32 reference (loose tolerance: kernel uses bf16 MXU inputs,
    # which compound over T=8 steps x 2 layers; c stays f32).
    y_ref = lstm_net_reference(x, params)
    assert float(jnp.max(jnp.abs(y - y_ref))) < 1e-1

    print("KERNEL_OK")
</pallas_src>

<mosaic_0001>
module attributes {stable_mosaic.version = 11 : i64} {
  func.func @_lstm_kernel(%arg0: memref<64x8xbf16, #tpu.memory_space<vmem>>, %arg1: memref<8x512xbf16, #tpu.memory_space<vmem>>, %arg2: memref<1x512xf32, #tpu.memory_space<vmem>>, %arg3: memref<256x1024xbf16, #tpu.memory_space<vmem>>, %arg4: memref<1x512xf32, #tpu.memory_space<vmem>>, %arg5: memref<1x128xf32, #tpu.memory_space<vmem>>, %arg6: memref<1x1xf32, #tpu.memory_space<vmem>>, %arg7: memref<8x128xf32, #tpu.memory_space<vmem>>, %arg8: memref<64x512xf32, #tpu.memory_space<vmem>>, %arg9: memref<8x256xbf16, #tpu.memory_space<vmem>>) attributes {dimension_semantics = [], scalar_prefetch = 0 : i64, scratch_operands = 2 : i64, tpu.core_type = #tpu.core_type<tc>} {
    %c0 = arith.constant 0 : index
    %c0_0 = arith.constant 0 : index
    %0 = vector.load %arg0[%c0, %c0_0] : memref<64x8xbf16, #tpu.memory_space<vmem>>, vector<64x8xbf16>
    %c0_1 = arith.constant 0 : index
    %c0_2 = arith.constant 0 : index
    %1 = vector.load %arg1[%c0_1, %c0_2] : memref<8x512xbf16, #tpu.memory_space<vmem>>, vector<8x512xbf16>
    %cst = arith.constant dense<0.000000e+00> : vector<64x512xf32>
    %2 = tpu.matmul %0, %1, %cst {dimension_numbers = #tpu.dot_dimension_numbers<[1], [0], [0], [1], [0, 0, 1, 1], [], []>} : vector<64x8xbf16>, vector<8x512xbf16>, vector<64x512xf32> -> vector<64x512xf32>
    %c0_3 = arith.constant 0 : index
    %c0_4 = arith.constant 0 : index
    %3 = vector.load %arg2[%c0_3, %c0_4] : memref<1x512xf32, #tpu.memory_space<vmem>>, vector<1x512xf32>
    %4 = vector.broadcast %3 : vector<1x512xf32> to vector<64x512xf32>
    %5 = arith.addf %2, %4 : vector<64x512xf32>
    %c0_5 = arith.constant 0 : index
    %c0_6 = arith.constant 0 : index
    %6 = vector.load %arg8[%c0_5, %c0_6] : memref<64x512xf32, #tpu.memory_space<vmem>>, vector<64x512xf32>
    tpu.vector_store %arg8[%c0_5, %c0_6], %5 {strides = array<i32>} : memref<64x512xf32, #tpu.memory_space<vmem>>, vector<64x512xf32>,
    %c0_7 = arith.constant 0 : index
    %c0_8 = arith.constant 0 : index
    %7 = vector.load %arg3[%c0_7, %c0_8] : memref<256x1024xbf16, #tpu.memory_space<vmem>>, vector<256x1024xbf16>
    %c0_9 = arith.constant 0 : index
    %c0_10 = arith.constant 0 : index
    %8 = vector.load %arg4[%c0_9, %c0_10] : memref<1x512xf32, #tpu.memory_space<vmem>>, vector<1x512xf32>
    %9 = vector.shape_cast %8 : vector<1x512xf32> to vector<1x512xf32>
    %10 = vector.broadcast %9 : vector<1x512xf32> to vector<8x512xf32>
    %cst_11 = arith.constant 0.000000e+00 : bf16
    %11 = vector.broadcast %cst_11 : bf16 to vector<8x256xbf16>
    %c0_12 = arith.constant 0 : index
    %c0_13 = arith.constant 0 : index
    %12 = vector.load %arg9[%c0_12, %c0_13] : memref<8x256xbf16, #tpu.memory_space<vmem>>, vector<8x256xbf16>
    tpu.vector_store %arg9[%c0_12, %c0_13], %11 {strides = array<i32>} : memref<8x256xbf16, #tpu.memory_space<vmem>>, vector<8x256xbf16>,
    %c0_14 = arith.constant 0 : index
    %c0_15 = arith.constant 0 : index
    %13 = vector.load %arg8[%c0_14, %c0_15] : memref<64x512xf32, #tpu.memory_space<vmem>>, vector<8x512xf32>
    %cst_16 = arith.constant 0.000000e+00 : f32
    %14 = vector.broadcast %cst_16 : f32 to vector<8x128xf32>
    %15 = vector.extract_strided_slice %13 {offsets = [0, 0], sizes = [8, 128], strides = [1, 1]} : vector<8x512xf32> to vector<8x128xf32>
    %cst_17 = arith.constant 5.000000e-01 : f32
    %16 = vector.broadcast %cst_17 : f32 to vector<8x128xf32>
    %17 = arith.mulf %16, %15 : vector<8x128xf32>
    %18 = math.tanh %17 : vector<8x128xf32>
    %cst_18 = arith.constant 5.000000e-01 : f32
    %19 = vector.broadcast %cst_18 : f32 to vector<8x128xf32>
    %20 = arith.mulf %19, %18 : vector<8x128xf32>
    %cst_19 = arith.constant 5.000000e-01 : f32
    %21 = vector.broadcast %cst_19 : f32 to vector<8x128xf32>
    %22 = arith.addf %20, %21 : vector<8x128xf32>
    %23 = vector.extract_strided_slice %13 {offsets = [0, 128], sizes = [8, 128], strides = [1, 1]} : vector<8x512xf32> to vector<8x128xf32>
    %cst_20 = arith.constant 5.000000e-01 : f32
    %24 = vector.broadcast %cst_20 : f32 to vector<8x128xf32>
    %25 = arith.mulf %24, %23 : vector<8x128xf32>
    %26 = math.tanh %25 : vector<8x128xf32>
    %cst_21 = arith.constant 5.000000e-01 : f32
    %27 = vector.broadcast %cst_21 : f32 to vector<8x128xf32>
    %28 = arith.mulf %27, %26 : vector<8x128xf32>
    %cst_22 = arith.constant 5.000000e-01 : f32
    %29 = vector.broadcast %cst_22 : f32 to vector<8x128xf32>
    %30 = arith.addf %28, %29 : vector<8x128xf32>
    %31 = vector.extract_strided_slice %13 {offsets = [0, 256], sizes = [8, 128], strides = [1, 1]} : vector<8x512xf32> to vector<8x128xf32>
    %32 = math.tanh %31 : vector<8x128xf32>
    %33 = vector.extract_strided_slice %13 {offsets = [0, 384], sizes = [8, 128], strides = [1, 1]} : vector<8x512xf32> to vector<8x128xf32>
    %cst_23 = arith.constant 5.000000e-01 : f32
    %34 = vector.broadcast %cst_23 : f32 to vector<8x128xf32>
    %35 = arith.mulf %34, %33 : vector<8x128xf32>
    %36 = math.tanh %35 : vector<8x128xf32>
    %cst_24 = arith.constant 5.000000e-01 : f32
    %37 = vector.broadcast %cst_24 : f32 to vector<8x128xf32>
    %38 = arith.mulf %37, %36 : vector<8x128xf32>
    %cst_25 = arith.constant 5.000000e-01 : f32
    %39 = vector.broadcast %cst_25 : f32 to vector<8x128xf32>
    %40 = arith.addf %38, %39 : vector<8x128xf32>
    %41 = arith.mulf %30, %14 : vector<8x128xf32>
    %42 = arith.mulf %22, %32 : vector<8x128xf32>
    %43 = arith.addf %41, %42 : vector<8x128xf32>
    %44 = math.tanh %43 : vector<8x128xf32>
    %45 = arith.mulf %40, %44 : vector<8x128xf32>
    %46 = arith.truncf %45 : vector<8x128xf32> to vector<8x128xbf16>
    %c0_26 = arith.constant 0 : index
    %c0_27 = arith.constant 0 : index
    %47 = vector.load %arg9[%c0_26, %c0_27] : memref<8x256xbf16, #tpu.memory_space<vmem>>, vector<8x128xbf16>
    tpu.vector_store %arg9[%c0_26, %c0_27], %46 {strides = array<i32>} : memref<8x256xbf16, #tpu.memory_space<vmem>>, vector<8x128xbf16>,
    %cst_28 = arith.constant 0.000000e+00 : f32
    %48 = vector.broadcast %cst_28 : f32 to vector<8x128xf32>
    %c0_29 = arith.constant 0 : index
    %c0_30 = arith.constant 0 : index
    %49 = vector.load %arg9[%c0_29, %c0_30] : memref<8x256xbf16, #tpu.memory_space<vmem>>, vector<8x256xbf16>
    %cst_31 = arith.constant dense<0.000000e+00> : vector<8x1024xf32>
    %50 = tpu.matmul %49, %7, %cst_31 {dimension_numbers = #tpu.dot_dimension_numbers<[1], [0], [0], [1], [0, 0, 1, 1], [], []>} : vector<8x256xbf16>, vector<256x1024xbf16>, vector<8x1024xf32> -> vector<8x1024xf32>
    %51 = vector.extract_strided_slice %50 {offsets = [0, 512], sizes = [8, 512], strides = [1, 1]} : vector<8x1024xf32> to vector<8x512xf32>
    %52 = arith.addf %51, %10 : vector<8x512xf32>
    %53 = vector.extract_strided_slice %52 {offsets = [0, 0], sizes = [8, 128], strides = [1, 1]} : vector<8x512xf32> to vector<8x128xf32>
    %cst_32 = arith.constant 5.000000e-01 : f32
    %54 = vector.broadcast %cst_32 : f32 to vector<8x128xf32>
    %55 = arith.mulf %54, %53 : vector<8x128xf32>
    %56 = math.tanh %55 : vector<8x128xf32>
    %cst_33 = arith.constant 5.000000e-01 : f32
    %57 = vector.broadcast %cst_33 : f32 to vector<8x128xf32>
    %58 = arith.mulf %57, %56 : vector<8x128xf32>
    %cst_34 = arith.constant 5.000000e-01 : f32
    %59 = vector.broadcast %cst_34 : f32 to vector<8x128xf32>
    %60 = arith.addf %58, %59 : vector<8x128xf32>
    %61 = vector.extract_strided_slice %52 {offsets = [0, 128], sizes = [8, 128], strides = [1, 1]} : vector<8x512xf32> to vector<8x128xf32>
    %cst_35 = arith.constant 5.000000e-01 : f32
    %62 = vector.broadcast %cst_35 : f32 to vector<8x128xf32>
    %63 = arith.mulf %62, %61 : vector<8x128xf32>
    %64 = math.tanh %63 : vector<8x128xf32>
    %cst_36 = arith.constant 5.000000e-01 : f32
    %65 = vector.broadcast %cst_36 : f32 to vector<8x128xf32>
    %66 = arith.mulf %65, %64 : vector<8x128xf32>
    %cst_37 = arith.constant 5.000000e-01 : f32
    %67 = vector.broadcast %cst_37 : f32 to vector<8x128xf32>
    %68 = arith.addf %66, %67 : vector<8x128xf32>
    %69 = vector.extract_strided_slice %52 {offsets = [0, 256], sizes = [8, 128], strides = [1, 1]} : vector<8x512xf32> to vector<8x128xf32>
    %70 = math.tanh %69 : vector<8x128xf32>
    %71 = vector.extract_strided_slice %52 {offsets = [0, 384], sizes = [8, 128], strides = [1, 1]} : vector<8x512xf32> to vector<8x128xf32>
    %cst_38 = arith.constant 5.000000e-01 : f32
    %72 = vector.broadcast %cst_38 : f32 to vector<8x128xf32>
    %73 = arith.mulf %72, %71 : vector<8x128xf32>
    %74 = math.tanh %73 : vector<8x128xf32>
    %cst_39 = arith.constant 5.000000e-01 : f32
    %75 = vector.broadcast %cst_39 : f32 to vector<8x128xf32>
    %76 = arith.mulf %75, %74 : vector<8x128xf32>
    %cst_40 = arith.constant 5.000000e-01 : f32
    %77 = vector.broadcast %cst_40 : f32 to vector<8x128xf32>
    %78 = arith.addf %76, %77 : vector<8x128xf32>
    %79 = arith.mulf %68, %48 : vector<8x128xf32>
    %80 = arith.mulf %60, %70 : vector<8x128xf32>
    %81 = arith.addf %79, %80 : vector<8x128xf32>
    %82 = math.tanh %81 : vector<8x128xf32>
    %83 = arith.mulf %78, %82 : vector<8x128xf32>
    %84 = arith.truncf %83 : vector<8x128xf32> to vector<8x128xbf16>
    %c0_41 = arith.constant 0 : index
    %c128 = arith.constant 128 : index
    %85 = vector.load %arg9[%c0_41, %c128] : memref<8x256xbf16, #tpu.memory_space<vmem>>, vector<8x128xbf16>
    tpu.vector_store %arg9[%c0_41, %c128], %84 {strides = array<i32>} : memref<8x256xbf16, #tpu.memory_space<vmem>>, vector<8x128xbf16>,
    %c8 = arith.constant 8 : index
    %c0_42 = arith.constant 0 : index
    %86 = vector.load %arg8[%c8, %c0_42] : memref<64x512xf32, #tpu.memory_space<vmem>>, vector<8x512xf32>
    %87 = vector.extract_strided_slice %50 {offsets = [0, 0], sizes = [8, 512], strides = [1, 1]} : vector<8x1024xf32> to vector<8x512xf32>
    %88 = arith.addf %86, %87 : vector<8x512xf32>
    %89 = vector.extract_strided_slice %88 {offsets = [0, 0], sizes = [8, 128], strides = [1, 1]} : vector<8x512xf32> to vector<8x128xf32>
    %cst_43 = arith.constant 5.000000e-01 : f32
    %90 = vector.broadcast %cst_43 : f32 to vector<8x128xf32>
    %91 = arith.mulf %90, %89 : vector<8x128xf32>
    %92 = math.tanh %91 : vector<8x128xf32>
    %cst_44 = arith.constant 5.000000e-01 : f32
    %93 = vector.broadcast %cst_44 : f32 to vector<8x128xf32>
    %94 = arith.mulf %93, %92 : vector<8x128xf32>
    %cst_45 = arith.constant 5.000000e-01 : f32
    %95 = vector.broadcast %cst_45 : f32 to vector<8x128xf32>
    %96 = arith.addf %94, %95 : vector<8x128xf32>
    %97 = vector.extract_strided_slice %88 {offsets = [0, 128], sizes = [8, 128], strides = [1, 1]} : vector<8x512xf32> to vector<8x128xf32>
    %cst_46 = arith.constant 5.000000e-01 : f32
    %98 = vector.broadcast %cst_46 : f32 to vector<8x128xf32>
    %99 = arith.mulf %98, %97 : vector<8x128xf32>
    %100 = math.tanh %99 : vector<8x128xf32>
    %cst_47 = arith.constant 5.000000e-01 : f32
    %101 = vector.broadcast %cst_47 : f32 to vector<8x128xf32>
    %102 = arith.mulf %101, %100 : vector<8x128xf32>
    %cst_48 = arith.constant 5.000000e-01 : f32
    %103 = vector.broadcast %cst_48 : f32 to vector<8x128xf32>
    %104 = arith.addf %102, %103 : vector<8x128xf32>
    %105 = vector.extract_strided_slice %88 {offsets = [0, 256], sizes = [8, 128], strides = [1, 1]} : vector<8x512xf32> to vector<8x128xf32>
    %106 = math.tanh %105 : vector<8x128xf32>
    %107 = vector.extract_strided_slice %88 {offsets = [0, 384], sizes = [8, 128], strides = [1, 1]} : vector<8x512xf32> to vector<8x128xf32>
    %cst_49 = arith.constant 5.000000e-01 : f32
    %108 = vector.broadcast %cst_49 : f32 to vector<8x128xf32>
    %109 = arith.mulf %108, %107 : vector<8x128xf32>
    %110 = math.tanh %109 : vector<8x128xf32>
    %cst_50 = arith.constant 5.000000e-01 : f32
    %111 = vector.broadcast %cst_50 : f32 to vector<8x128xf32>
    %112 = arith.mulf %111, %110 : vector<8x128xf32>
    %cst_51 = arith.constant 5.000000e-01 : f32
    %113 = vector.broadcast %cst_51 : f32 to vector<8x128xf32>
    %114 = arith.addf %112, %113 : vector<8x128xf32>
    %115 = arith.mulf %104, %43 : vector<8x128xf32>
    %116 = arith.mulf %96, %106 : vector<8x128xf32>
    %117 = arith.addf %115, %116 : vector<8x128xf32>
    %118 = math.tanh %117 : vector<8x128xf32>
    %119 = arith.mulf %114, %118 : vector<8x128xf32>
    %120 = arith.truncf %119 : vector<8x128xf32> to vector<8x128xbf16>
    %c0_52 = arith.constant 0 : index
    %c0_53 = arith.constant 0 : index
    %121 = vector.load %arg9[%c0_52, %c0_53] : memref<8x256xbf16, #tpu.memory_space<vmem>>, vector<8x128xbf16>
    tpu.vector_store %arg9[%c0_52, %c0_53], %120 {strides = array<i32>} : memref<8x256xbf16, #tpu.memory_space<vmem>>, vector<8x128xbf16>,
    %c0_54 = arith.constant 0 : index
    %c0_55 = arith.constant 0 : index
    %122 = vector.load %arg9[%c0_54, %c0_55] : memref<8x256xbf16, #tpu.memory_space<vmem>>, vector<8x256xbf16>
    %cst_56 = arith.constant dense<0.000000e+00> : vector<8x1024xf32>
    %123 = tpu.matmul %122, %7, %cst_56 {dimension_numbers = #tpu.dot_dimension_numbers<[1], [0], [0], [1], [0, 0, 1, 1], [], []>} : vector<8x256xbf16>, vector<256x1024xbf16>, vector<8x1024xf32> -> vector<8x1024xf32>
    %124 = vector.extract_strided_slice %123 {offsets = [0, 512], sizes = [8, 512], strides = [1, 1]} : vector<8x1024xf32> to vector<8x512xf32>
    %125 = arith.addf %124, %10 : vector<8x512xf32>
    %126 = vector.extract_strided_slice %125 {offsets = [0, 0], sizes = [8, 128], strides = [1, 1]} : vector<8x512xf32> to vector<8x128xf32>
    %cst_57 = arith.constant 5.000000e-01 : f32
    %127 = vector.broadcast %cst_57 : f32 to vector<8x128xf32>
    %128 = arith.mulf %127, %126 : vector<8x128xf32>
    %129 = math.tanh %128 : vector<8x128xf32>
    %cst_58 = arith.constant 5.000000e-01 : f32
    %130 = vector.broadcast %cst_58 : f32 to vector<8x128xf32>
    %131 = arith.mulf %130, %129 : vector<8x128xf32>
    %cst_59 = arith.constant 5.000000e-01 : f32
    %132 = vector.broadcast %cst_59 : f32 to vector<8x128xf32>
    %133 = arith.addf %131, %132 : vector<8x128xf32>
    %134 = vector.extract_strided_slice %125 {offsets = [0, 128], sizes = [8, 128], strides = [1, 1]} : vector<8x512xf32> to vector<8x128xf32>
    %cst_60 = arith.constant 5.000000e-01 : f32
    %135 = vector.broadcast %cst_60 : f32 to vector<8x128xf32>
    %136 = arith.mulf %135, %134 : vector<8x128xf32>
    %137 = math.tanh %136 : vector<8x128xf32>
    %cst_61 = arith.constant 5.000000e-01 : f32
    %138 = vector.broadcast %cst_61 : f32 to vector<8x128xf32>
    %139 = arith.mulf %138, %137 : vector<8x128xf32>
    %cst_62 = arith.constant 5.000000e-01 : f32
    %140 = vector.broadcast %cst_62 : f32 to vector<8x128xf32>
    %141 = arith.addf %139, %140 : vector<8x128xf32>
    %142 = vector.extract_strided_slice %125 {offsets = [0, 256], sizes = [8, 128], strides = [1, 1]} : vector<8x512xf32> to vector<8x128xf32>
    %143 = math.tanh %142 : vector<8x128xf32>
    %144 = vector.extract_strided_slice %125 {offsets = [0, 384], sizes = [8, 128], strides = [1, 1]} : vector<8x512xf32> to vector<8x128xf32>
    %cst_63 = arith.constant 5.000000e-01 : f32
    %145 = vector.broadcast %cst_63 : f32 to vector<8x128xf32>
    %146 = arith.mulf %145, %144 : vector<8x128xf32>
    %147 = math.tanh %146 : vector<8x128xf32>
    %cst_64 = arith.constant 5.000000e-01 : f32
    %148 = vector.broadcast %cst_64 : f32 to vector<8x128xf32>
    %149 = arith.mulf %148, %147 : vector<8x128xf32>
    %cst_65 = arith.constant 5.000000e-01 : f32
    %150 = vector.broadcast %cst_65 : f32 to vector<8x128xf32>
    %151 = arith.addf %149, %150 : vector<8x128xf32>
    %152 = arith.mulf %141, %81 : vector<8x128xf32>
    %153 = arith.mulf %133, %143 : vector<8x128xf32>
    %154 = arith.addf %152, %153 : vector<8x128xf32>
    %155 = math.tanh %154 : vector<8x128xf32>
    %156 = arith.mulf %151, %155 : vector<8x128xf32>
    %157 = arith.truncf %156 : vector<8x128xf32> to vector<8x128xbf16>
    %c0_66 = arith.constant 0 : index
    %c128_67 = arith.constant 128 : index
    %158 = vector.load %arg9[%c0_66, %c128_67] : memref<8x256xbf16, #tpu.memory_space<vmem>>, vector<8x128xbf16>
    tpu.vector_store %arg9[%c0_66, %c128_67], %157 {strides = array<i32>} : memref<8x256xbf16, #tpu.memory_space<vmem>>, vector<8x128xbf16>,
    %c16 = arith.constant 16 : index
    %c0_68 = arith.constant 0 : index
    %159 = vector.load %arg8[%c16, %c0_68] : memref<64x512xf32, #tpu.memory_space<vmem>>, vector<8x512xf32>
    %160 = vector.extract_strided_slice %123 {offsets = [0, 0], sizes = [8, 512], strides = [1, 1]} : vector<8x1024xf32> to vector<8x512xf32>
    %161 = arith.addf %159, %160 : vector<8x512xf32>
    %162 = vector.extract_strided_slice %161 {offsets = [0, 0], sizes = [8, 128], strides = [1, 1]} : vector<8x512xf32> to vector<8x128xf32>
    %cst_69 = arith.constant 5.000000e-01 : f32
    %163 = vector.broadcast %cst_69 : f32 to vector<8x128xf32>
    %164 = arith.mulf %163, %162 : vector<8x128xf32>
    %165 = math.tanh %164 : vector<8x128xf32>
    %cst_70 = arith.constant 5.000000e-01 : f32
    %166 = vector.broadcast %cst_70 : f32 to vector<8x128xf32>
    %167 = arith.mulf %166, %165 : vector<8x128xf32>
    %cst_71 = arith.constant 5.000000e-01 : f32
    %168 = vector.broadcast %cst_71 : f32 to vector<8x128xf32>
    %169 = arith.addf %167, %168 : vector<8x128xf32>
    %170 = vector.extract_strided_slice %161 {offsets = [0, 128], sizes = [8, 128], strides = [1, 1]} : vector<8x512xf32> to vector<8x128xf32>
    %cst_72 = arith.constant 5.000000e-01 : f32
    %171 = vector.broadcast %cst_72 : f32 to vector<8x128xf32>
    %172 = arith.mulf %171, %170 : vector<8x128xf32>
    %173 = math.tanh %172 : vector<8x128xf32>
    %cst_73 = arith.constant 5.000000e-01 : f32
    %174 = vector.broadcast %cst_73 : f32 to vector<8x128xf32>
    %175 = arith.mulf %174, %173 : vector<8x128xf32>
    %cst_74 = arith.constant 5.000000e-01 : f32
    %176 = vector.broadcast %cst_74 : f32 to vector<8x128xf32>
    %177 = arith.addf %175, %176 : vector<8x128xf32>
    %178 = vector.extract_strided_slice %161 {offsets = [0, 256], sizes = [8, 128], strides = [1, 1]} : vector<8x512xf32> to vector<8x128xf32>
    %179 = math.tanh %178 : vector<8x128xf32>
    %180 = vector.extract_strided_slice %161 {offsets = [0, 384], sizes = [8, 128], strides = [1, 1]} : vector<8x512xf32> to vector<8x128xf32>
    %cst_75 = arith.constant 5.000000e-01 : f32
    %181 = vector.broadcast %cst_75 : f32 to vector<8x128xf32>
    %182 = arith.mulf %181, %180 : vector<8x128xf32>
    %183 = math.tanh %182 : vector<8x128xf32>
    %cst_76 = arith.constant 5.000000e-01 : f32
    %184 = vector.broadcast %cst_76 : f32 to vector<8x128xf32>
    %185 = arith.mulf %184, %183 : vector<8x128xf32>
    %cst_77 = arith.constant 5.000000e-01 : f32
    %186 = vector.broadcast %cst_77 : f32 to vector<8x128xf32>
    %187 = arith.addf %185, %186 : vector<8x128xf32>
    %188 = arith.mulf %177, %117 : vector<8x128xf32>
    %189 = arith.mulf %169, %179 : vector<8x128xf32>
    %190 = arith.addf %188, %189 : vector<8x128xf32>
    %191 = math.tanh %190 : vector<8x128xf32>
    %192 = arith.mulf %187, %191 : vector<8x128xf32>
    %193 = arith.truncf %192 : vector<8x128xf32> to vector<8x128xbf16>
    %c0_78 = arith.constant 0 : index
    %c0_79 = arith.constant 0 : index
    %194 = vector.load %arg9[%c0_78, %c0_79] : memref<8x256xbf16, #tpu.memory_space<vmem>>, vector<8x128xbf16>
    tpu.vector_store %arg9[%c0_78, %c0_79], %193 {strides = array<i32>} : memref<8x256xbf16, #tpu.memory_space<vmem>>, vector<8x128xbf16>,
    %c0_80 = arith.constant 0 : index
    %c0_81 = arith.constant 0 : index
    %195 = vector.load %arg9[%c0_80, %c0_81] : memref<8x256xbf16, #tpu.memory_space<vmem>>, vector<8x256xbf16>
    %cst_82 = arith.constant dense<0.000000e+00> : vector<8x1024xf32>
    %196 = tpu.matmul %195, %7, %cst_82 {dimension_numbers = #tpu.dot_dimension_numbers<[1], [0], [0], [1], [0, 0, 1, 1], [], []>} : vector<8x256xbf16>, vector<256x1024xbf16>, vector<8x1024xf32> -> vector<8x1024xf32>
    %197 = vector.extract_strided_slice %196 {offsets = [0, 512], sizes = [8, 512], strides = [1, 1]} : vector<8x1024xf32> to vector<8x512xf32>
    %198 = arith.addf %197, %10 : vector<8x512xf32>
    %199 = vector.extract_strided_slice %198 {offsets = [0, 0], sizes = [8, 128], strides = [1, 1]} : vector<8x512xf32> to vector<8x128xf32>
    %cst_83 = arith.constant 5.000000e-01 : f32
    %200 = vector.broadcast %cst_83 : f32 to vector<8x128xf32>
    %201 = arith.mulf %200, %199 : vector<8x128xf32>
    %202 = math.tanh %201 : vector<8x128xf32>
    %cst_84 = arith.constant 5.000000e-01 : f32
    %203 = vector.broadcast %cst_84 : f32 to vector<8x128xf32>
    %204 = arith.mulf %203, %202 : vector<8x128xf32>
    %cst_85 = arith.constant 5.000000e-01 : f32
    %205 = vector.broadcast %cst_85 : f32 to vector<8x128xf32>
    %206 = arith.addf %204, %205 : vector<8x128xf32>
    %207 = vector.extract_strided_slice %198 {offsets = [0, 128], sizes = [8, 128], strides = [1, 1]} : vector<8x512xf32> to vector<8x128xf32>
    %cst_86 = arith.constant 5.000000e-01 : f32
    %208 = vector.broadcast %cst_86 : f32 to vector<8x128xf32>
    %209 = arith.mulf %208, %207 : vector<8x128xf32>
    %210 = math.tanh %209 : vector<8x128xf32>
    %cst_87 = arith.constant 5.000000e-01 : f32
    %211 = vector.broadcast %cst_87 : f32 to vector<8x128xf32>
    %212 = arith.mulf %211, %210 : vector<8x128xf32>
    %cst_88 = arith.constant 5.000000e-01 : f32
    %213 = vector.broadcast %cst_88 : f32 to vector<8x128xf32>
    %214 = arith.addf %212, %213 : vector<8x128xf32>
    %215 = vector.extract_strided_slice %198 {offsets = [0, 256], sizes = [8, 128], strides = [1, 1]} : vector<8x512xf32> to vector<8x128xf32>
    %216 = math.tanh %215 : vector<8x128xf32>
    %217 = vector.extract_strided_slice %198 {offsets = [0, 384], sizes = [8, 128], strides = [1, 1]} : vector<8x512xf32> to vector<8x128xf32>
    %cst_89 = arith.constant 5.000000e-01 : f32
    %218 = vector.broadcast %cst_89 : f32 to vector<8x128xf32>
    %219 = arith.mulf %218, %217 : vector<8x128xf32>
    %220 = math.tanh %219 : vector<8x128xf32>
    %cst_90 = arith.constant 5.000000e-01 : f32
    %221 = vector.broadcast %cst_90 : f32 to vector<8x128xf32>
    %222 = arith.mulf %221, %220 : vector<8x128xf32>
    %cst_91 = arith.constant 5.000000e-01 : f32
    %223 = vector.broadcast %cst_91 : f32 to vector<8x128xf32>
    %224 = arith.addf %222, %223 : vector<8x128xf32>
    %225 = arith.mulf %214, %154 : vector<8x128xf32>
    %226 = arith.mulf %206, %216 : vector<8x128xf32>
    %227 = arith.addf %225, %226 : vector<8x128xf32>
    %228 = math.tanh %227 : vector<8x128xf32>
    %229 = arith.mulf %224, %228 : vector<8x128xf32>
    %230 = arith.truncf %229 : vector<8x128xf32> to vector<8x128xbf16>
    %c0_92 = arith.constant 0 : index
    %c128_93 = arith.constant 128 : index
    %231 = vector.load %arg9[%c0_92, %c128_93] : memref<8x256xbf16, #tpu.memory_space<vmem>>, vector<8x128xbf16>
    tpu.vector_store %arg9[%c0_92, %c128_93], %230 {strides = array<i32>} : memref<8x256xbf16, #tpu.memory_space<vmem>>, vector<8x128xbf16>,
    %c24 = arith.constant 24 : index
    %c0_94 = arith.constant 0 : index
    %232 = vector.load %arg8[%c24, %c0_94] : memref<64x512xf32, #tpu.memory_space<vmem>>, vector<8x512xf32>
    %233 = vector.extract_strided_slice %196 {offsets = [0, 0], sizes = [8, 512], strides = [1, 1]} : vector<8x1024xf32> to vector<8x512xf32>
    %234 = arith.addf %232, %233 : vector<8x512xf32>
    %235 = vector.extract_strided_slice %234 {offsets = [0, 0], sizes = [8, 128], strides = [1, 1]} : vector<8x512xf32> to vector<8x128xf32>
    %cst_95 = arith.constant 5.000000e-01 : f32
    %236 = vector.broadcast %cst_95 : f32 to vector<8x128xf32>
    %237 = arith.mulf %236, %235 : vector<8x128xf32>
    %238 = math.tanh %237 : vector<8x128xf32>
    %cst_96 = arith.constant 5.000000e-01 : f32
    %239 = vector.broadcast %cst_96 : f32 to vector<8x128xf32>
    %240 = arith.mulf %239, %238 : vector<8x128xf32>
    %cst_97 = arith.constant 5.000000e-01 : f32
    %241 = vector.broadcast %cst_97 : f32 to vector<8x128xf32>
    %242 = arith.addf %240, %241 : vector<8x128xf32>
    %243 = vector.extract_strided_slice %234 {offsets = [0, 128], sizes = [8, 128], strides = [1, 1]} : vector<8x512xf32> to vector<8x128xf32>
    %cst_98 = arith.constant 5.000000e-01 : f32
    %244 = vector.broadcast %cst_98 : f32 to vector<8x128xf32>
    %245 = arith.mulf %244, %243 : vector<8x128xf32>
    %246 = math.tanh %245 : vector<8x128xf32>
    %cst_99 = arith.constant 5.000000e-01 : f32
    %247 = vector.broadcast %cst_99 : f32 to vector<8x128xf32>
    %248 = arith.mulf %247, %246 : vector<8x128xf32>
    %cst_100 = arith.constant 5.000000e-01 : f32
    %249 = vector.broadcast %cst_100 : f32 to vector<8x128xf32>
    %250 = arith.addf %248, %249 : vector<8x128xf32>
    %251 = vector.extract_strided_slice %234 {offsets = [0, 256], sizes = [8, 128], strides = [1, 1]} : vector<8x512xf32> to vector<8x128xf32>
    %252 = math.tanh %251 : vector<8x128xf32>
    %253 = vector.extract_strided_slice %234 {offsets = [0, 384], sizes = [8, 128], strides = [1, 1]} : vector<8x512xf32> to vector<8x128xf32>
    %cst_101 = arith.constant 5.000000e-01 : f32
    %254 = vector.broadcast %cst_101 : f32 to vector<8x128xf32>
    %255 = arith.mulf %254, %253 : vector<8x128xf32>
    %256 = math.tanh %255 : vector<8x128xf32>
    %cst_102 = arith.constant 5.000000e-01 : f32
    %257 = vector.broadcast %cst_102 : f32 to vector<8x128xf32>
    %258 = arith.mulf %257, %256 : vector<8x128xf32>
    %cst_103 = arith.constant 5.000000e-01 : f32
    %259 = vector.broadcast %cst_103 : f32 to vector<8x128xf32>
    %260 = arith.addf %258, %259 : vector<8x128xf32>
    %261 = arith.mulf %250, %190 : vector<8x128xf32>
    %262 = arith.mulf %242, %252 : vector<8x128xf32>
    %263 = arith.addf %261, %262 : vector<8x128xf32>
    %264 = math.tanh %263 : vector<8x128xf32>
    %265 = arith.mulf %260, %264 : vector<8x128xf32>
    %266 = arith.truncf %265 : vector<8x128xf32> to vector<8x128xbf16>
    %c0_104 = arith.constant 0 : index
    %c0_105 = arith.constant 0 : index
    %267 = vector.load %arg9[%c0_104, %c0_105] : memref<8x256xbf16, #tpu.memory_space<vmem>>, vector<8x128xbf16>
    tpu.vector_store %arg9[%c0_104, %c0_105], %266 {strides = array<i32>} : memref<8x256xbf16, #tpu.memory_space<vmem>>, vector<8x128xbf16>,
    %c0_106 = arith.constant 0 : index
    %c0_107 = arith.constant 0 : index
    %268 = vector.load %arg9[%c0_106, %c0_107] : memref<8x256xbf16, #tpu.memory_space<vmem>>, vector<8x256xbf16>
    %cst_108 = arith.constant dense<0.000000e+00> : vector<8x1024xf32>
    %269 = tpu.matmul %268, %7, %cst_108 {dimension_numbers = #tpu.dot_dimension_numbers<[1], [0], [0], [1], [0, 0, 1, 1], [], []>} : vector<8x256xbf16>, vector<256x1024xbf16>, vector<8x1024xf32> -> vector<8x1024xf32>
    %270 = vector.extract_strided_slice %269 {offsets = [0, 512], sizes = [8, 512], strides = [1, 1]} : vector<8x1024xf32> to vector<8x512xf32>
    %271 = arith.addf %270, %10 : vector<8x512xf32>
    %272 = vector.extract_strided_slice %271 {offsets = [0, 0], sizes = [8, 128], strides = [1, 1]} : vector<8x512xf32> to vector<8x128xf32>
    %cst_109 = arith.constant 5.000000e-01 : f32
    %273 = vector.broadcast %cst_109 : f32 to vector<8x128xf32>
    %274 = arith.mulf %273, %272 : vector<8x128xf32>
    %275 = math.tanh %274 : vector<8x128xf32>
    %cst_110 = arith.constant 5.000000e-01 : f32
    %276 = vector.broadcast %cst_110 : f32 to vector<8x128xf32>
    %277 = arith.mulf %276, %275 : vector<8x128xf32>
    %cst_111 = arith.constant 5.000000e-01 : f32
    %278 = vector.broadcast %cst_111 : f32 to vector<8x128xf32>
    %279 = arith.addf %277, %278 : vector<8x128xf32>
    %280 = vector.extract_strided_slice %271 {offsets = [0, 128], sizes = [8, 128], strides = [1, 1]} : vector<8x512xf32> to vector<8x128xf32>
    %cst_112 = arith.constant 5.000000e-01 : f32
    %281 = vector.broadcast %cst_112 : f32 to vector<8x128xf32>
    %282 = arith.mulf %281, %280 : vector<8x128xf32>
    %283 = math.tanh %282 : vector<8x128xf32>
    %cst_113 = arith.constant 5.000000e-01 : f32
    %284 = vector.broadcast %cst_113 : f32 to vector<8x128xf32>
    %285 = arith.mulf %284, %283 : vector<8x128xf32>
    %cst_114 = arith.constant 5.000000e-01 : f32
    %286 = vector.broadcast %cst_114 : f32 to vector<8x128xf32>
    %287 = arith.addf %285, %286 : vector<8x128xf32>
    %288 = vector.extract_strided_slice %271 {offsets = [0, 256], sizes = [8, 128], strides = [1, 1]} : vector<8x512xf32> to vector<8x128xf32>
    %289 = math.tanh %288 : vector<8x128xf32>
    %290 = vector.extract_strided_slice %271 {offsets = [0, 384], sizes = [8, 128], strides = [1, 1]} : vector<8x512xf32> to vector<8x128xf32>
    %cst_115 = arith.constant 5.000000e-01 : f32
    %291 = vector.broadcast %cst_115 : f32 to vector<8x128xf32>
    %292 = arith.mulf %291, %290 : vector<8x128xf32>
    %293 = math.tanh %292 : vector<8x128xf32>
    %cst_116 = arith.constant 5.000000e-01 : f32
    %294 = vector.broadcast %cst_116 : f32 to vector<8x128xf32>
    %295 = arith.mulf %294, %293 : vector<8x128xf32>
    %cst_117 = arith.constant 5.000000e-01 : f32
    %296 = vector.broadcast %cst_117 : f32 to vector<8x128xf32>
    %297 = arith.addf %295, %296 : vector<8x128xf32>
    %298 = arith.mulf %287, %227 : vector<8x128xf32>
    %299 = arith.mulf %279, %289 : vector<8x128xf32>
    %300 = arith.addf %298, %299 : vector<8x128xf32>
    %301 = math.tanh %300 : vector<8x128xf32>
    %302 = arith.mulf %297, %301 : vector<8x128xf32>
    %303 = arith.truncf %302 : vector<8x128xf32> to vector<8x128xbf16>
    %c0_118 = arith.constant 0 : index
    %c128_119 = arith.constant 128 : index
    %304 = vector.load %arg9[%c0_118, %c128_119] : memref<8x256xbf16, #tpu.memory_space<vmem>>, vector<8x128xbf16>
    tpu.vector_store %arg9[%c0_118, %c128_119], %303 {strides = array<i32>} : memref<8x256xbf16, #tpu.memory_space<vmem>>, vector<8x128xbf16>,
    %c32 = arith.constant 32 : index
    %c0_120 = arith.constant 0 : index
    %305 = vector.load %arg8[%c32, %c0_120] : memref<64x512xf32, #tpu.memory_space<vmem>>, vector<8x512xf32>
    %306 = vector.extract_strided_slice %269 {offsets = [0, 0], sizes = [8, 512], strides = [1, 1]} : vector<8x1024xf32> to vector<8x512xf32>
    %307 = arith.addf %305, %306 : vector<8x512xf32>
    %308 = vector.extract_strided_slice %307 {offsets = [0, 0], sizes = [8, 128], strides = [1, 1]} : vector<8x512xf32> to vector<8x128xf32>
    %cst_121 = arith.constant 5.000000e-01 : f32
    %309 = vector.broadcast %cst_121 : f32 to vector<8x128xf32>
    %310 = arith.mulf %309, %308 : vector<8x128xf32>
    %311 = math.tanh %310 : vector<8x128xf32>
    %cst_122 = arith.constant 5.000000e-01 : f32
    %312 = vector.broadcast %cst_122 : f32 to vector<8x128xf32>
    %313 = arith.mulf %312, %311 : vector<8x128xf32>
    %cst_123 = arith.constant 5.000000e-01 : f32
    %314 = vector.broadcast %cst_123 : f32 to vector<8x128xf32>
    %315 = arith.addf %313, %314 : vector<8x128xf32>
    %316 = vector.extract_strided_slice %307 {offsets = [0, 128], sizes = [8, 128], strides = [1, 1]} : vector<8x512xf32> to vector<8x128xf32>
    %cst_124 = arith.constant 5.000000e-01 : f32
    %317 = vector.broadcast %cst_124 : f32 to vector<8x128xf32>
    %318 = arith.mulf %317, %316 : vector<8x128xf32>
    %319 = math.tanh %318 : vector<8x128xf32>
    %cst_125 = arith.constant 5.000000e-01 : f32
    %320 = vector.broadcast %cst_125 : f32 to vector<8x128xf32>
    %321 = arith.mulf %320, %319 : vector<8x128xf32>
    %cst_126 = arith.constant 5.000000e-01 : f32
    %322 = vector.broadcast %cst_126 : f32 to vector<8x128xf32>
    %323 = arith.addf %321, %322 : vector<8x128xf32>
    %324 = vector.extract_strided_slice %307 {offsets = [0, 256], sizes = [8, 128], strides = [1, 1]} : vector<8x512xf32> to vector<8x128xf32>
    %325 = math.tanh %324 : vector<8x128xf32>
    %326 = vector.extract_strided_slice %307 {offsets = [0, 384], sizes = [8, 128], strides = [1, 1]} : vector<8x512xf32> to vector<8x128xf32>
    %cst_127 = arith.constant 5.000000e-01 : f32
    %327 = vector.broadcast %cst_127 : f32 to vector<8x128xf32>
    %328 = arith.mulf %327, %326 : vector<8x128xf32>
    %329 = math.tanh %328 : vector<8x128xf32>
    %cst_128 = arith.constant 5.000000e-01 : f32
    %330 = vector.broadcast %cst_128 : f32 to vector<8x128xf32>
    %331 = arith.mulf %330, %329 : vector<8x128xf32>
    %cst_129 = arith.constant 5.000000e-01 : f32
    %332 = vector.broadcast %cst_129 : f32 to vector<8x128xf32>
    %333 = arith.addf %331, %332 : vector<8x128xf32>
    %334 = arith.mulf %323, %263 : vector<8x128xf32>
    %335 = arith.mulf %315, %325 : vector<8x128xf32>
    %336 = arith.addf %334, %335 : vector<8x128xf32>
    %337 = math.tanh %336 : vector<8x128xf32>
    %338 = arith.mulf %333, %337 : vector<8x128xf32>
    %339 = arith.truncf %338 : vector<8x128xf32> to vector<8x128xbf16>
    %c0_130 = arith.constant 0 : index
    %c0_131 = arith.constant 0 : index
    %340 = vector.load %arg9[%c0_130, %c0_131] : memref<8x256xbf16, #tpu.memory_space<vmem>>, vector<8x128xbf16>
    tpu.vector_store %arg9[%c0_130, %c0_131], %339 {strides = array<i32>} : memref<8x256xbf16, #tpu.memory_space<vmem>>, vector<8x128xbf16>,
    %c0_132 = arith.constant 0 : index
    %c0_133 = arith.constant 0 : index
    %341 = vector.load %arg9[%c0_132, %c0_133] : memref<8x256xbf16, #tpu.memory_space<vmem>>, vector<8x256xbf16>
    %cst_134 = arith.constant dense<0.000000e+00> : vector<8x1024xf32>
    %342 = tpu.matmul %341, %7, %cst_134 {dimension_numbers = #tpu.dot_dimension_numbers<[1], [0], [0], [1], [0, 0, 1, 1], [], []>} : vector<8x256xbf16>, vector<256x1024xbf16>, vector<8x1024xf32> -> vector<8x1024xf32>
    %343 = vector.extract_strided_slice %342 {offsets = [0, 512], sizes = [8, 512], strides = [1, 1]} : vector<8x1024xf32> to vector<8x512xf32>
    %344 = arith.addf %343, %10 : vector<8x512xf32>
    %345 = vector.extract_strided_slice %344 {offsets = [0, 0], sizes = [8, 128], strides = [1, 1]} : vector<8x512xf32> to vector<8x128xf32>
    %cst_135 = arith.constant 5.000000e-01 : f32
    %346 = vector.broadcast %cst_135 : f32 to vector<8x128xf32>
    %347 = arith.mulf %346, %345 : vector<8x128xf32>
    %348 = math.tanh %347 : vector<8x128xf32>
    %cst_136 = arith.constant 5.000000e-01 : f32
    %349 = vector.broadcast %cst_136 : f32 to vector<8x128xf32>
    %350 = arith.mulf %349, %348 : vector<8x128xf32>
    %cst_137 = arith.constant 5.000000e-01 : f32
    %351 = vector.broadcast %cst_137 : f32 to vector<8x128xf32>
    %352 = arith.addf %350, %351 : vector<8x128xf32>
    %353 = vector.extract_strided_slice %344 {offsets = [0, 128], sizes = [8, 128], strides = [1, 1]} : vector<8x512xf32> to vector<8x128xf32>
    %cst_138 = arith.constant 5.000000e-01 : f32
    %354 = vector.broadcast %cst_138 : f32 to vector<8x128xf32>
    %355 = arith.mulf %354, %353 : vector<8x128xf32>
    %356 = math.tanh %355 : vector<8x128xf32>
    %cst_139 = arith.constant 5.000000e-01 : f32
    %357 = vector.broadcast %cst_139 : f32 to vector<8x128xf32>
    %358 = arith.mulf %357, %356 : vector<8x128xf32>
    %cst_140 = arith.constant 5.000000e-01 : f32
    %359 = vector.broadcast %cst_140 : f32 to vector<8x128xf32>
    %360 = arith.addf %358, %359 : vector<8x128xf32>
    %361 = vector.extract_strided_slice %344 {offsets = [0, 256], sizes = [8, 128], strides = [1, 1]} : vector<8x512xf32> to vector<8x128xf32>
    %362 = math.tanh %361 : vector<8x128xf32>
    %363 = vector.extract_strided_slice %344 {offsets = [0, 384], sizes = [8, 128], strides = [1, 1]} : vector<8x512xf32> to vector<8x128xf32>
    %cst_141 = arith.constant 5.000000e-01 : f32
    %364 = vector.broadcast %cst_141 : f32 to vector<8x128xf32>
    %365 = arith.mulf %364, %363 : vector<8x128xf32>
    %366 = math.tanh %365 : vector<8x128xf32>
    %cst_142 = arith.constant 5.000000e-01 : f32
    %367 = vector.broadcast %cst_142 : f32 to vector<8x128xf32>
    %368 = arith.mulf %367, %366 : vector<8x128xf32>
    %cst_143 = arith.constant 5.000000e-01 : f32
    %369 = vector.broadcast %cst_143 : f32 to vector<8x128xf32>
    %370 = arith.addf %368, %369 : vector<8x128xf32>
    %371 = arith.mulf %360, %300 : vector<8x128xf32>
    %372 = arith.mulf %352, %362 : vector<8x128xf32>
    %373 = arith.addf %371, %372 : vector<8x128xf32>
    %374 = math.tanh %373 : vector<8x128xf32>
    %375 = arith.mulf %370, %374 : vector<8x128xf32>
    %376 = arith.truncf %375 : vector<8x128xf32> to vector<8x128xbf16>
    %c0_144 = arith.constant 0 : index
    %c128_145 = arith.constant 128 : index
    %377 = vector.load %arg9[%c0_144, %c128_145] : memref<8x256xbf16, #tpu.memory_space<vmem>>, vector<8x128xbf16>
    tpu.vector_store %arg9[%c0_144, %c128_145], %376 {strides = array<i32>} : memref<8x256xbf16, #tpu.memory_space<vmem>>, vector<8x128xbf16>,
    %c40 = arith.constant 40 : index
    %c0_146 = arith.constant 0 : index
    %378 = vector.load %arg8[%c40, %c0_146] : memref<64x512xf32, #tpu.memory_space<vmem>>, vector<8x512xf32>
    %379 = vector.extract_strided_slice %342 {offsets = [0, 0], sizes = [8, 512], strides = [1, 1]} : vector<8x1024xf32> to vector<8x512xf32>
    %380 = arith.addf %378, %379 : vector<8x512xf32>
    %381 = vector.extract_strided_slice %380 {offsets = [0, 0], sizes = [8, 128], strides = [1, 1]} : vector<8x512xf32> to vector<8x128xf32>
    %cst_147 = arith.constant 5.000000e-01 : f32
    %382 = vector.broadcast %cst_147 : f32 to vector<8x128xf32>
    %383 = arith.mulf %382, %381 : vector<8x128xf32>
    %384 = math.tanh %383 : vector<8x128xf32>
    %cst_148 = arith.constant 5.000000e-01 : f32
    %385 = vector.broadcast %cst_148 : f32 to vector<8x128xf32>
    %386 = arith.mulf %385, %384 : vector<8x128xf32>
    %cst_149 = arith.constant 5.000000e-01 : f32
    %387 = vector.broadcast %cst_149 : f32 to vector<8x128xf32>
    %388 = arith.addf %386, %387 : vector<8x128xf32>
    %389 = vector.extract_strided_slice %380 {offsets = [0, 128], sizes = [8, 128], strides = [1, 1]} : vector<8x512xf32> to vector<8x128xf32>
    %cst_150 = arith.constant 5.000000e-01 : f32
    %390 = vector.broadcast %cst_150 : f32 to vector<8x128xf32>
    %391 = arith.mulf %390, %389 : vector<8x128xf32>
    %392 = math.tanh %391 : vector<8x128xf32>
    %cst_151 = arith.constant 5.000000e-01 : f32
    %393 = vector.broadcast %cst_151 : f32 to vector<8x128xf32>
    %394 = arith.mulf %393, %392 : vector<8x128xf32>
    %cst_152 = arith.constant 5.000000e-01 : f32
    %395 = vector.broadcast %cst_152 : f32 to vector<8x128xf32>
    %396 = arith.addf %394, %395 : vector<8x128xf32>
    %397 = vector.extract_strided_slice %380 {offsets = [0, 256], sizes = [8, 128], strides = [1, 1]} : vector<8x512xf32> to vector<8x128xf32>
    %398 = math.tanh %397 : vector<8x128xf32>
    %399 = vector.extract_strided_slice %380 {offsets = [0, 384], sizes = [8, 128], strides = [1, 1]} : vector<8x512xf32> to vector<8x128xf32>
    %cst_153 = arith.constant 5.000000e-01 : f32
    %400 = vector.broadcast %cst_153 : f32 to vector<8x128xf32>
    %401 = arith.mulf %400, %399 : vector<8x128xf32>
    %402 = math.tanh %401 : vector<8x128xf32>
    %cst_154 = arith.constant 5.000000e-01 : f32
    %403 = vector.broadcast %cst_154 : f32 to vector<8x128xf32>
    %404 = arith.mulf %403, %402 : vector<8x128xf32>
    %cst_155 = arith.constant 5.000000e-01 : f32
    %405 = vector.broadcast %cst_155 : f32 to vector<8x128xf32>
    %406 = arith.addf %404, %405 : vector<8x128xf32>
    %407 = arith.mulf %396, %336 : vector<8x128xf32>
    %408 = arith.mulf %388, %398 : vector<8x128xf32>
    %409 = arith.addf %407, %408 : vector<8x128xf32>
    %410 = math.tanh %409 : vector<8x128xf32>
    %411 = arith.mulf %406, %410 : vector<8x128xf32>
    %412 = arith.truncf %411 : vector<8x128xf32> to vector<8x128xbf16>
    %c0_156 = arith.constant 0 : index
    %c0_157 = arith.constant 0 : index
    %413 = vector.load %arg9[%c0_156, %c0_157] : memref<8x256xbf16, #tpu.memory_space<vmem>>, vector<8x128xbf16>
    tpu.vector_store %arg9[%c0_156, %c0_157], %412 {strides = array<i32>} : memref<8x256xbf16, #tpu.memory_space<vmem>>, vector<8x128xbf16>,
    %c0_158 = arith.constant 0 : index
    %c0_159 = arith.constant 0 : index
    %414 = vector.load %arg9[%c0_158, %c0_159] : memref<8x256xbf16, #tpu.memory_space<vmem>>, vector<8x256xbf16>
    %cst_160 = arith.constant dense<0.000000e+00> : vector<8x1024xf32>
    %415 = tpu.matmul %414, %7, %cst_160 {dimension_numbers = #tpu.dot_dimension_numbers<[1], [0], [0], [1], [0, 0, 1, 1], [], []>} : vector<8x256xbf16>, vector<256x1024xbf16>, vector<8x1024xf32> -> vector<8x1024xf32>
    %416 = vector.extract_strided_slice %415 {offsets = [0, 512], sizes = [8, 512], strides = [1, 1]} : vector<8x1024xf32> to vector<8x512xf32>
    %417 = arith.addf %416, %10 : vector<8x512xf32>
    %418 = vector.extract_strided_slice %417 {offsets = [0, 0], sizes = [8, 128], strides = [1, 1]} : vector<8x512xf32> to vector<8x128xf32>
    %cst_161 = arith.constant 5.000000e-01 : f32
    %419 = vector.broadcast %cst_161 : f32 to vector<8x128xf32>
    %420 = arith.mulf %419, %418 : vector<8x128xf32>
    %421 = math.tanh %420 : vector<8x128xf32>
    %cst_162 = arith.constant 5.000000e-01 : f32
    %422 = vector.broadcast %cst_162 : f32 to vector<8x128xf32>
    %423 = arith.mulf %422, %421 : vector<8x128xf32>
    %cst_163 = arith.constant 5.000000e-01 : f32
    %424 = vector.broadcast %cst_163 : f32 to vector<8x128xf32>
    %425 = arith.addf %423, %424 : vector<8x128xf32>
    %426 = vector.extract_strided_slice %417 {offsets = [0, 128], sizes = [8, 128], strides = [1, 1]} : vector<8x512xf32> to vector<8x128xf32>
    %cst_164 = arith.constant 5.000000e-01 : f32
    %427 = vector.broadcast %cst_164 : f32 to vector<8x128xf32>
    %428 = arith.mulf %427, %426 : vector<8x128xf32>
    %429 = math.tanh %428 : vector<8x128xf32>
    %cst_165 = arith.constant 5.000000e-01 : f32
    %430 = vector.broadcast %cst_165 : f32 to vector<8x128xf32>
    %431 = arith.mulf %430, %429 : vector<8x128xf32>
    %cst_166 = arith.constant 5.000000e-01 : f32
    %432 = vector.broadcast %cst_166 : f32 to vector<8x128xf32>
    %433 = arith.addf %431, %432 : vector<8x128xf32>
    %434 = vector.extract_strided_slice %417 {offsets = [0, 256], sizes = [8, 128], strides = [1, 1]} : vector<8x512xf32> to vector<8x128xf32>
    %435 = math.tanh %434 : vector<8x128xf32>
    %436 = vector.extract_strided_slice %417 {offsets = [0, 384], sizes = [8, 128], strides = [1, 1]} : vector<8x512xf32> to vector<8x128xf32>
    %cst_167 = arith.constant 5.000000e-01 : f32
    %437 = vector.broadcast %cst_167 : f32 to vector<8x128xf32>
    %438 = arith.mulf %437, %436 : vector<8x128xf32>
    %439 = math.tanh %438 : vector<8x128xf32>
    %cst_168 = arith.constant 5.000000e-01 : f32
    %440 = vector.broadcast %cst_168 : f32 to vector<8x128xf32>
    %441 = arith.mulf %440, %439 : vector<8x128xf32>
    %cst_169 = arith.constant 5.000000e-01 : f32
    %442 = vector.broadcast %cst_169 : f32 to vector<8x128xf32>
    %443 = arith.addf %441, %442 : vector<8x128xf32>
    %444 = arith.mulf %433, %373 : vector<8x128xf32>
    %445 = arith.mulf %425, %435 : vector<8x128xf32>
    %446 = arith.addf %444, %445 : vector<8x128xf32>
    %447 = math.tanh %446 : vector<8x128xf32>
    %448 = arith.mulf %443, %447 : vector<8x128xf32>
    %449 = arith.truncf %448 : vector<8x128xf32> to vector<8x128xbf16>
    %c0_170 = arith.constant 0 : index
    %c128_171 = arith.constant 128 : index
    %450 = vector.load %arg9[%c0_170, %c128_171] : memref<8x256xbf16, #tpu.memory_space<vmem>>, vector<8x128xbf16>
    tpu.vector_store %arg9[%c0_170, %c128_171], %449 {strides = array<i32>} : memref<8x256xbf16, #tpu.memory_space<vmem>>, vector<8x128xbf16>,
    %c48 = arith.constant 48 : index
    %c0_172 = arith.constant 0 : index
    %451 = vector.load %arg8[%c48, %c0_172] : memref<64x512xf32, #tpu.memory_space<vmem>>, vector<8x512xf32>
    %452 = vector.extract_strided_slice %415 {offsets = [0, 0], sizes = [8, 512], strides = [1, 1]} : vector<8x1024xf32> to vector<8x512xf32>
    %453 = arith.addf %451, %452 : vector<8x512xf32>
    %454 = vector.extract_strided_slice %453 {offsets = [0, 0], sizes = [8, 128], strides = [1, 1]} : vector<8x512xf32> to vector<8x128xf32>
    %cst_173 = arith.constant 5.000000e-01 : f32
    %455 = vector.broadcast %cst_173 : f32 to vector<8x128xf32>
    %456 = arith.mulf %455, %454 : vector<8x128xf32>
    %457 = math.tanh %456 : vector<8x128xf32>
    %cst_174 = arith.constant 5.000000e-01 : f32
    %458 = vector.broadcast %cst_174 : f32 to vector<8x128xf32>
    %459 = arith.mulf %458, %457 : vector<8x128xf32>
    %cst_175 = arith.constant 5.000000e-01 : f32
    %460 = vector.broadcast %cst_175 : f32 to vector<8x128xf32>
    %461 = arith.addf %459, %460 : vector<8x128xf32>
    %462 = vector.extract_strided_slice %453 {offsets = [0, 128], sizes = [8, 128], strides = [1, 1]} : vector<8x512xf32> to vector<8x128xf32>
    %cst_176 = arith.constant 5.000000e-01 : f32
    %463 = vector.broadcast %cst_176 : f32 to vector<8x128xf32>
    %464 = arith.mulf %463, %462 : vector<8x128xf32>
    %465 = math.tanh %464 : vector<8x128xf32>
    %cst_177 = arith.constant 5.000000e-01 : f32
    %466 = vector.broadcast %cst_177 : f32 to vector<8x128xf32>
    %467 = arith.mulf %466, %465 : vector<8x128xf32>
    %cst_178 = arith.constant 5.000000e-01 : f32
    %468 = vector.broadcast %cst_178 : f32 to vector<8x128xf32>
    %469 = arith.addf %467, %468 : vector<8x128xf32>
    %470 = vector.extract_strided_slice %453 {offsets = [0, 256], sizes = [8, 128], strides = [1, 1]} : vector<8x512xf32> to vector<8x128xf32>
    %471 = math.tanh %470 : vector<8x128xf32>
    %472 = vector.extract_strided_slice %453 {offsets = [0, 384], sizes = [8, 128], strides = [1, 1]} : vector<8x512xf32> to vector<8x128xf32>
    %cst_179 = arith.constant 5.000000e-01 : f32
    %473 = vector.broadcast %cst_179 : f32 to vector<8x128xf32>
    %474 = arith.mulf %473, %472 : vector<8x128xf32>
    %475 = math.tanh %474 : vector<8x128xf32>
    %cst_180 = arith.constant 5.000000e-01 : f32
    %476 = vector.broadcast %cst_180 : f32 to vector<8x128xf32>
    %477 = arith.mulf %476, %475 : vector<8x128xf32>
    %cst_181 = arith.constant 5.000000e-01 : f32
    %478 = vector.broadcast %cst_181 : f32 to vector<8x128xf32>
    %479 = arith.addf %477, %478 : vector<8x128xf32>
    %480 = arith.mulf %469, %409 : vector<8x128xf32>
    %481 = arith.mulf %461, %471 : vector<8x128xf32>
    %482 = arith.addf %480, %481 : vector<8x128xf32>
    %483 = math.tanh %482 : vector<8x128xf32>
    %484 = arith.mulf %479, %483 : vector<8x128xf32>
    %485 = arith.truncf %484 : vector<8x128xf32> to vector<8x128xbf16>
    %c0_182 = arith.constant 0 : index
    %c0_183 = arith.constant 0 : index
    %486 = vector.load %arg9[%c0_182, %c0_183] : memref<8x256xbf16, #tpu.memory_space<vmem>>, vector<8x128xbf16>
    tpu.vector_store %arg9[%c0_182, %c0_183], %485 {strides = array<i32>} : memref<8x256xbf16, #tpu.memory_space<vmem>>, vector<8x128xbf16>,
    %c0_184 = arith.constant 0 : index
    %c0_185 = arith.constant 0 : index
    %487 = vector.load %arg9[%c0_184, %c0_185] : memref<8x256xbf16, #tpu.memory_space<vmem>>, vector<8x256xbf16>
    %cst_186 = arith.constant dense<0.000000e+00> : vector<8x1024xf32>
    %488 = tpu.matmul %487, %7, %cst_186 {dimension_numbers = #tpu.dot_dimension_numbers<[1], [0], [0], [1], [0, 0, 1, 1], [], []>} : vector<8x256xbf16>, vector<256x1024xbf16>, vector<8x1024xf32> -> vector<8x1024xf32>
    %489 = vector.extract_strided_slice %488 {offsets = [0, 512], sizes = [8, 512], strides = [1, 1]} : vector<8x1024xf32> to vector<8x512xf32>
    %490 = arith.addf %489, %10 : vector<8x512xf32>
    %491 = vector.extract_strided_slice %490 {offsets = [0, 0], sizes = [8, 128], strides = [1, 1]} : vector<8x512xf32> to vector<8x128xf32>
    %cst_187 = arith.constant 5.000000e-01 : f32
    %492 = vector.broadcast %cst_187 : f32 to vector<8x128xf32>
    %493 = arith.mulf %492, %491 : vector<8x128xf32>
    %494 = math.tanh %493 : vector<8x128xf32>
    %cst_188 = arith.constant 5.000000e-01 : f32
    %495 = vector.broadcast %cst_188 : f32 to vector<8x128xf32>
    %496 = arith.mulf %495, %494 : vector<8x128xf32>
    %cst_189 = arith.constant 5.000000e-01 : f32
    %497 = vector.broadcast %cst_189 : f32 to vector<8x128xf32>
    %498 = arith.addf %496, %497 : vector<8x128xf32>
    %499 = vector.extract_strided_slice %490 {offsets = [0, 128], sizes = [8, 128], strides = [1, 1]} : vector<8x512xf32> to vector<8x128xf32>
    %cst_190 = arith.constant 5.000000e-01 : f32
    %500 = vector.broadcast %cst_190 : f32 to vector<8x128xf32>
    %501 = arith.mulf %500, %499 : vector<8x128xf32>
    %502 = math.tanh %501 : vector<8x128xf32>
    %cst_191 = arith.constant 5.000000e-01 : f32
    %503 = vector.broadcast %cst_191 : f32 to vector<8x128xf32>
    %504 = arith.mulf %503, %502 : vector<8x128xf32>
    %cst_192 = arith.constant 5.000000e-01 : f32
    %505 = vector.broadcast %cst_192 : f32 to vector<8x128xf32>
    %506 = arith.addf %504, %505 : vector<8x128xf32>
    %507 = vector.extract_strided_slice %490 {offsets = [0, 256], sizes = [8, 128], strides = [1, 1]} : vector<8x512xf32> to vector<8x128xf32>
    %508 = math.tanh %507 : vector<8x128xf32>
    %509 = vector.extract_strided_slice %490 {offsets = [0, 384], sizes = [8, 128], strides = [1, 1]} : vector<8x512xf32> to vector<8x128xf32>
    %cst_193 = arith.constant 5.000000e-01 : f32
    %510 = vector.broadcast %cst_193 : f32 to vector<8x128xf32>
    %511 = arith.mulf %510, %509 : vector<8x128xf32>
    %512 = math.tanh %511 : vector<8x128xf32>
    %cst_194 = arith.constant 5.000000e-01 : f32
    %513 = vector.broadcast %cst_194 : f32 to vector<8x128xf32>
    %514 = arith.mulf %513, %512 : vector<8x128xf32>
    %cst_195 = arith.constant 5.000000e-01 : f32
    %515 = vector.broadcast %cst_195 : f32 to vector<8x128xf32>
    %516 = arith.addf %514, %515 : vector<8x128xf32>
    %517 = arith.mulf %506, %446 : vector<8x128xf32>
    %518 = arith.mulf %498, %508 : vector<8x128xf32>
    %519 = arith.addf %517, %518 : vector<8x128xf32>
    %520 = math.tanh %519 : vector<8x128xf32>
    %521 = arith.mulf %516, %520 : vector<8x128xf32>
    %522 = arith.truncf %521 : vector<8x128xf32> to vector<8x128xbf16>
    %c0_196 = arith.constant 0 : index
    %c128_197 = arith.constant 128 : index
    %523 = vector.load %arg9[%c0_196, %c128_197] : memref<8x256xbf16, #tpu.memory_space<vmem>>, vector<8x128xbf16>
    tpu.vector_store %arg9[%c0_196, %c128_197], %522 {strides = array<i32>} : memref<8x256xbf16, #tpu.memory_space<vmem>>, vector<8x128xbf16>,
    %c56 = arith.constant 56 : index
    %c0_198 = arith.constant 0 : index
    %524 = vector.load %arg8[%c56, %c0_198] : memref<64x512xf32, #tpu.memory_space<vmem>>, vector<8x512xf32>
    %525 = vector.extract_strided_slice %488 {offsets = [0, 0], sizes = [8, 512], strides = [1, 1]} : vector<8x1024xf32> to vector<8x512xf32>
    %526 = arith.addf %524, %525 : vector<8x512xf32>
    %527 = vector.extract_strided_slice %526 {offsets = [0, 0], sizes = [8, 128], strides = [1, 1]} : vector<8x512xf32> to vector<8x128xf32>
    %cst_199 = arith.constant 5.000000e-01 : f32
    %528 = vector.broadcast %cst_199 : f32 to vector<8x128xf32>
    %529 = arith.mulf %528, %527 : vector<8x128xf32>
    %530 = math.tanh %529 : vector<8x128xf32>
    %cst_200 = arith.constant 5.000000e-01 : f32
    %531 = vector.broadcast %cst_200 : f32 to vector<8x128xf32>
    %532 = arith.mulf %531, %530 : vector<8x128xf32>
    %cst_201 = arith.constant 5.000000e-01 : f32
    %533 = vector.broadcast %cst_201 : f32 to vector<8x128xf32>
    %534 = arith.addf %532, %533 : vector<8x128xf32>
    %535 = vector.extract_strided_slice %526 {offsets = [0, 128], sizes = [8, 128], strides = [1, 1]} : vector<8x512xf32> to vector<8x128xf32>
    %cst_202 = arith.constant 5.000000e-01 : f32
    %536 = vector.broadcast %cst_202 : f32 to vector<8x128xf32>
    %537 = arith.mulf %536, %535 : vector<8x128xf32>
    %538 = math.tanh %537 : vector<8x128xf32>
    %cst_203 = arith.constant 5.000000e-01 : f32
    %539 = vector.broadcast %cst_203 : f32 to vector<8x128xf32>
    %540 = arith.mulf %539, %538 : vector<8x128xf32>
    %cst_204 = arith.constant 5.000000e-01 : f32
    %541 = vector.broadcast %cst_204 : f32 to vector<8x128xf32>
    %542 = arith.addf %540, %541 : vector<8x128xf32>
    %543 = vector.extract_strided_slice %526 {offsets = [0, 256], sizes = [8, 128], strides = [1, 1]} : vector<8x512xf32> to vector<8x128xf32>
    %544 = math.tanh %543 : vector<8x128xf32>
    %545 = vector.extract_strided_slice %526 {offsets = [0, 384], sizes = [8, 128], strides = [1, 1]} : vector<8x512xf32> to vector<8x128xf32>
    %cst_205 = arith.constant 5.000000e-01 : f32
    %546 = vector.broadcast %cst_205 : f32 to vector<8x128xf32>
    %547 = arith.mulf %546, %545 : vector<8x128xf32>
    %548 = math.tanh %547 : vector<8x128xf32>
    %cst_206 = arith.constant 5.000000e-01 : f32
    %549 = vector.broadcast %cst_206 : f32 to vector<8x128xf32>
    %550 = arith.mulf %549, %548 : vector<8x128xf32>
    %cst_207 = arith.constant 5.000000e-01 : f32
    %551 = vector.broadcast %cst_207 : f32 to vector<8x128xf32>
    %552 = arith.addf %550, %551 : vector<8x128xf32>
    %553 = arith.mulf %542, %482 : vector<8x128xf32>
    %554 = arith.mulf %534, %544 : vector<8x128xf32>
    %555 = arith.addf %553, %554 : vector<8x128xf32>
    %556 = math.tanh %555 : vector<8x128xf32>
    %557 = arith.mulf %552, %556 : vector<8x128xf32>
    %558 = arith.truncf %557 : vector<8x128xf32> to vector<8x128xbf16>
    %c0_208 = arith.constant 0 : index
    %c0_209 = arith.constant 0 : index
    %559 = vector.load %arg9[%c0_208, %c0_209] : memref<8x256xbf16, #tpu.memory_space<vmem>>, vector<8x128xbf16>
    tpu.vector_store %arg9[%c0_208, %c0_209], %558 {strides = array<i32>} : memref<8x256xbf16, #tpu.memory_space<vmem>>, vector<8x128xbf16>,
    %c0_210 = arith.constant 0 : index
    %c0_211 = arith.constant 0 : index
    %560 = vector.load %arg9[%c0_210, %c0_211] : memref<8x256xbf16, #tpu.memory_space<vmem>>, vector<8x256xbf16>
    %cst_212 = arith.constant dense<0.000000e+00> : vector<8x1024xf32>
    %561 = tpu.matmul %560, %7, %cst_212 {dimension_numbers = #tpu.dot_dimension_numbers<[1], [0], [0], [1], [0, 0, 1, 1], [], []>} : vector<8x256xbf16>, vector<256x1024xbf16>, vector<8x1024xf32> -> vector<8x1024xf32>
    %562 = vector.extract_strided_slice %561 {offsets = [0, 512], sizes = [8, 512], strides = [1, 1]} : vector<8x1024xf32> to vector<8x512xf32>
    %563 = arith.addf %562, %10 : vector<8x512xf32>
    %564 = vector.extract_strided_slice %563 {offsets = [0, 0], sizes = [8, 128], strides = [1, 1]} : vector<8x512xf32> to vector<8x128xf32>
    %cst_213 = arith.constant 5.000000e-01 : f32
    %565 = vector.broadcast %cst_213 : f32 to vector<8x128xf32>
    %566 = arith.mulf %565, %564 : vector<8x128xf32>
    %567 = math.tanh %566 : vector<8x128xf32>
    %cst_214 = arith.constant 5.000000e-01 : f32
    %568 = vector.broadcast %cst_214 : f32 to vector<8x128xf32>
    %569 = arith.mulf %568, %567 : vector<8x128xf32>
    %cst_215 = arith.constant 5.000000e-01 : f32
    %570 = vector.broadcast %cst_215 : f32 to vector<8x128xf32>
    %571 = arith.addf %569, %570 : vector<8x128xf32>
    %572 = vector.extract_strided_slice %563 {offsets = [0, 128], sizes = [8, 128], strides = [1, 1]} : vector<8x512xf32> to vector<8x128xf32>
    %cst_216 = arith.constant 5.000000e-01 : f32
    %573 = vector.broadcast %cst_216 : f32 to vector<8x128xf32>
    %574 = arith.mulf %573, %572 : vector<8x128xf32>
    %575 = math.tanh %574 : vector<8x128xf32>
    %cst_217 = arith.constant 5.000000e-01 : f32
    %576 = vector.broadcast %cst_217 : f32 to vector<8x128xf32>
    %577 = arith.mulf %576, %575 : vector<8x128xf32>
    %cst_218 = arith.constant 5.000000e-01 : f32
    %578 = vector.broadcast %cst_218 : f32 to vector<8x128xf32>
    %579 = arith.addf %577, %578 : vector<8x128xf32>
    %580 = vector.extract_strided_slice %563 {offsets = [0, 256], sizes = [8, 128], strides = [1, 1]} : vector<8x512xf32> to vector<8x128xf32>
    %581 = math.tanh %580 : vector<8x128xf32>
    %582 = vector.extract_strided_slice %563 {offsets = [0, 384], sizes = [8, 128], strides = [1, 1]} : vector<8x512xf32> to vector<8x128xf32>
    %cst_219 = arith.constant 5.000000e-01 : f32
    %583 = vector.broadcast %cst_219 : f32 to vector<8x128xf32>
    %584 = arith.mulf %583, %582 : vector<8x128xf32>
    %585 = math.tanh %584 : vector<8x128xf32>
    %cst_220 = arith.constant 5.000000e-01 : f32
    %586 = vector.broadcast %cst_220 : f32 to vector<8x128xf32>
    %587 = arith.mulf %586, %585 : vector<8x128xf32>
    %cst_221 = arith.constant 5.000000e-01 : f32
    %588 = vector.broadcast %cst_221 : f32 to vector<8x128xf32>
    %589 = arith.addf %587, %588 : vector<8x128xf32>
    %590 = arith.mulf %579, %519 : vector<8x128xf32>
    %591 = arith.mulf %571, %581 : vector<8x128xf32>
    %592 = arith.addf %590, %591 : vector<8x128xf32>
    %593 = math.tanh %592 : vector<8x128xf32>
    %594 = arith.mulf %589, %593 : vector<8x128xf32>
    %595 = arith.truncf %594 : vector<8x128xf32> to vector<8x128xbf16>
    %c0_222 = arith.constant 0 : index
    %c128_223 = arith.constant 128 : index
    %596 = vector.load %arg9[%c0_222, %c128_223] : memref<8x256xbf16, #tpu.memory_space<vmem>>, vector<8x128xbf16>
    tpu.vector_store %arg9[%c0_222, %c128_223], %595 {strides = array<i32>} : memref<8x256xbf16, #tpu.memory_space<vmem>>, vector<8x128xbf16>,
    %c0_224 = arith.constant 0 : index
    %c0_225 = arith.constant 0 : index
    %597 = vector.load %arg5[%c0_224, %c0_225] : memref<1x128xf32, #tpu.memory_space<vmem>>, vector<1x128xf32>
    %598 = vector.shape_cast %597 : vector<1x128xf32> to vector<1x128xf32>
    %599 = vector.broadcast %598 : vector<1x128xf32> to vector<8x128xf32>
    %600 = arith.mulf %594, %599 : vector<8x128xf32>
    %cst_226 = arith.constant dense<0.000000e+00> : vector<8xf32>
    %601 = vector.multi_reduction <add>, %600, %cst_226 [1] : vector<8x128xf32> to vector<8xf32>
    %602 = vector.shape_cast %601 : vector<8xf32> to vector<8x1xf32>
    %c0_227 = arith.constant 0 : index
    %c0_228 = arith.constant 0 : index
    %603 = vector.load %arg6[%c0_227, %c0_228] : memref<1x1xf32, #tpu.memory_space<vmem>>, vector<1x1xf32>
    %604 = vector.broadcast %603 : vector<1x1xf32> to vector<8x1xf32>
    %605 = arith.addf %602, %604 : vector<8x1xf32>
    %606 = vector.shape_cast %605 : vector<8x1xf32> to vector<8x1xf32>
    %607 = vector.broadcast %606 : vector<8x1xf32> to vector<8x128xf32>
    %c0_229 = arith.constant 0 : index
    %c0_230 = arith.constant 0 : index
    %608 = vector.load %arg7[%c0_229, %c0_230] : memref<8x128xf32, #tpu.memory_space<vmem>>, vector<8x128xf32>
    tpu.vector_store %arg7[%c0_229, %c0_230], %607 {strides = array<i32>} : memref<8x128xf32, #tpu.memory_space<vmem>>, vector<8x128xf32>,
    return
  }
}

</mosaic_0001>

<llo_original>
// kernel: lstm_net_forward.1
$region0: #{lstm_net_forward.1}
  #allocation0 [shape = 'u32[]', space=smem, size = 0x4, offset = 0x4, fixed_abs, tag = 'smem constant byte address 0x4 - core index']
  #allocation1 [shape = 'u32[144,128]{1,0:T(1,128)}', space=vmem, size = 0x12000, scoped, tag = 'internal scratch']
  #allocation2 [shape = 'f32[64,512]{1,0:T(8,128)}', space=vmem, size = 0x20000, scoped, tag = 'scratch operand']
  #allocation3 [shape = 'bf16[8,256]{1,0:T(8,128)(2,1)}', space=vmem, size = 0x1000, scoped, tag = 'scratch operand']
  #allocation4 [shape = 'f32[1,1]{1,0:T(1,128)S(1)}', space=vmem, size = 0x200, scoped, tag = 'scoped memory for lstm_net_forward.1']
  %s0 = inlined_call_operand.vmem [shape: bf16[64,8], index: 0, kind: input, shape index: {}]
  %s1 = inlined_call_operand.vmem [shape: bf16[8,512], index: 1, kind: input, shape index: {}]
  %s2 = inlined_call_operand.vmem [shape: f32[1,512], index: 2, kind: input, shape index: {}]
  %s3 = inlined_call_operand.hbm [shape: bf16[256,1024], index: 3, kind: input, shape index: {}]
  %s4 = inlined_call_operand.vmem [shape: f32[1,512], index: 4, kind: input, shape index: {}]
  %s5 = inlined_call_operand.vmem [shape: f32[1,128], index: 5, kind: input, shape index: {}]
  %s6 = inlined_call_operand.<no memory space> [shape: f32[1,1], index: 6, kind: input, shape index: {}]
  %s7 = inlined_call_operand.vmem [shape: f32[8,128], index: 7, kind: output, shape index: {}]
  %s8 = sld [smem:[#allocation0]]
  $region42: #{lstm_net_forward.1} parent=0
    _
  %s10 = ssub.s32 1, %s8
  %s11 = scalar_select 0, %s10, %s8
  %v12 = vstv %s6
  %13 = vst [vmem:[#allocation4] sm:$0x1] %v12
  $region1: #{lstm_net_forward.1} parent=0
    #allocation5 [shape = 'u8[524288]{0}', space=vmem, size = 0x80000, scoped, tag = 'input window, operand 3, single buffered']
    #allocation6 [shape = 's32[1]{0}', space=sflag, size = 0x4, scoped, tag = 'scoped memory for lstm_net_forward.1']
    %14 = vsyncpa [#allocation6], 0
    // Predicated region
    $region2: #{lstm_net_forward.1} parent=1 // pred_check
      _
    $region3: #{lstm_net_forward.1} parent=1 // pred_check_branch
      %16 = sbr.rel (0) target = $region5
    $region4: #{lstm_net_forward.1} parent=1 // pred_region
      _
    $region5: #{lstm_net_forward.1} parent=1 // pred_fallthru
      _
    // Predicated region
    $region6: #{lstm_net_forward.1} parent=1 // pred_check
      _
    $region7: #{lstm_net_forward.1} parent=1 // pred_check_branch
      %18 = sbr.rel (0) target = $region9
    $region8: #{lstm_net_forward.1} parent=1 // pred_region
      _
    $region9: #{lstm_net_forward.1} parent=1 // pred_fallthru
      _
    // Predicated region
    $region10: #{lstm_net_forward.1} parent=1 // pred_check
      _
    $region11: #{lstm_net_forward.1} parent=1 // pred_check_branch
      %20 = sbr.rel (0) target = $region13
    $region12: #{lstm_net_forward.1} parent=1 // pred_region
      _
    $region13: #{lstm_net_forward.1} parent=1 // pred_fallthru
      _
    // Predicated region
    $region14: #{lstm_net_forward.1} parent=1 // pred_check
      _
    $region15: #{lstm_net_forward.1} parent=1 // pred_check_branch
      %22 = sbr.rel (0) target = $region17
    $region16: #{lstm_net_forward.1} parent=1 // pred_region
      %s24 = ssub.s32 16384, 16384
      %25 = vsyncadd [#allocation6], %s24
      %s26 = sshll.u32 [#allocation5], 4
      %s27 = int_to_ptr.vmem [resolvable:$true] %s26
      %32 = dma.hbm_to_vmem [thread:$0]  %s3, 16384, %s27, [#allocation6], 512, 512, 32
    $region17: #{lstm_net_forward.1} parent=1 // pred_fallthru
      _
    // Predicated region
    $region18: #{lstm_net_forward.1} parent=1 // pred_check
      _
    $region19: #{lstm_net_forward.1} parent=1 // pred_check_branch
      %34 = sbr.rel (0) target = $region21
    $region20: #{lstm_net_forward.1} parent=1 // pred_region
      _
    $region21: #{lstm_net_forward.1} parent=1 // pred_fallthru
      _
    // Predicated region
    $region22: #{lstm_net_forward.1} parent=1 // pred_check
      _
    $region23: #{lstm_net_forward.1} parent=1 // pred_check_branch
      %36 = sbr.rel (0) target = $region25
    $region24: #{lstm_net_forward.1} parent=1 // pred_region
      _
    $region25: #{lstm_net_forward.1} parent=1 // pred_fallthru
      _
    // Predicated region
    $region26: #{lstm_net_forward.1} parent=1 // pred_check
      _
    $region27: #{lstm_net_forward.1} parent=1 // pred_check_branch
      %38 = sbr.rel (0) target = $region29
    $region28: #{lstm_net_forward.1} parent=1 // pred_region
      _
    $region29: #{lstm_net_forward.1} parent=1 // pred_fallthru
      _
    // Predicated region
    $region30: #{lstm_net_forward.1} parent=1 // pred_check
      _
    $region31: #{lstm_net_forward.1} parent=1 // pred_check_branch
      %40 = sbr.rel (0) target = $region33
    $region32: #{lstm_net_forward.1} parent=1 // pred_region
      %41 = dma.done [#allocation6], 16384
    $region33: #{lstm_net_forward.1} parent=1 // pred_fallthru
      _
    %v43 = vld [vmem:[%s0] sm:$0xf]
    %v44 = vld [vmem:[%s0 + $0x4] sm:$0xf]
    %v45 = vld [vmem:[%s0 + $0x8] sm:$0xf]
    %v46 = vld [vmem:[%s0 + $0xc] sm:$0xf]
    %v47 = vld [vmem:[%s0 + $0x10] sm:$0xf]
    %v48 = vld [vmem:[%s0 + $0x14] sm:$0xf]
    %v49 = vld [vmem:[%s0 + $0x18] sm:$0xf]
    %v50 = vld [vmem:[%s0 + $0x1c] sm:$0xf]
    %v51 = vld [vmem:[%s1] sm:$0xff]
    %v52 = vld [vmem:[%s1 + $0x8] sm:$0xff]
    %v53 = vld [vmem:[%s2] sm:$0xf]
    %v55 = vlaneseq
    %v56 = vshrl.u32 %v55, 7
    %v57 = vsub.s32 0, %v56
    %v58 = vrot.slane %v53, %v57
    %v59 = vlaneseq
    %v60 = vshrl.u32 %v59, 7
    %v61 = vsub.s32 1, %v60
    %v62 = vrot.slane %v53, %v61
    %v63 = vlaneseq
    %v64 = vshrl.u32 %v63, 7
    %v65 = vsub.s32 2, %v64
    %v66 = vrot.slane %v53, %v65
    %v67 = vlaneseq
    %v68 = vshrl.u32 %v67, 7
    %v69 = vsub.s32 3, %v68
    %v70 = vrot.slane %v53, %v69
    %v83 = vunpack.c.l.b16 %v43
    %v84 = vunpack.c.l.b16 %v44
    %v85 = vunpack.c.l.b16 %v45
    %v86 = vunpack.c.l.b16 %v46
    %v87 = vunpack.c.l.b16 %v47
    %v88 = vunpack.c.l.b16 %v48
    %v89 = vunpack.c.l.b16 %v49
    %v90 = vunpack.c.l.b16 %v50
    %v91 = vpack.c.b16 %v84, %v83
    %v92 = vpack.c.b16 %v86, %v85
    %v93 = vpack.c.b16 %v88, %v87
    %v94 = vpack.c.b16 %v90, %v89
    %v97 = vunpack.c.l.b16 %v51
    %v98 = vunpack.c.h.b16 %v51
    %v99 = vunpack.c.l.b16 %v52
    %v100 = vunpack.c.h.b16 %v52
    %v101 = vpack.c.b16 %v97, %v97
    %v102 = vpack.c.b16 %v98, %v98
    %v103 = vpack.c.b16 %v99, %v99
    %v104 = vpack.c.b16 %v100, %v100
    %vm105 = vcmask 64512
    %v107 = vsel %vm105, %v91, 0
    %v110 = vsel %vm105, %v92, 0
    %v113 = vsel %vm105, %v93, 0
    %v116 = vsel %vm105, %v94, 0
    %vm118 = vcmask 1043456
    %v120 = vsel %vm118, %v101, 0
    %v123 = vsel %vm118, %v102, 0
    %v126 = vsel %vm118, %v103, 0
    %v129 = vsel %vm118, %v104, 0
    %131 = vmatprep.subr.bf16.mxu0 %v123
    %132 = vmatpush1.bf16.msra.mxu0 %v120
    %133 = vmatprep.subr.bf16.mxu0 0
    %134 = vmatpush1.bf16.msra.mxu0 0
    %135 = vmatprep.subr.bf16.mxu0 0
    %136 = vmatpush1.bf16.msra.mxu0 0
    %137 = vmatprep.subr.bf16.mxu0 0
    %138 = vmatpush1.bf16.msra.mxu0 0
    %139 = vmatprep.subr.bf16.mxu0 0
    %140 = vmatpush1.bf16.msra.mxu0 0
    %141 = vmatprep.subr.bf16.mxu0 0
    %142 = vmatpush1.bf16.msra.mxu0 0
    %143 = vmatprep.subr.bf16.mxu0 0
    %144 = vmatpush1.bf16.msra.mxu0 0
    %145 = vmatprep.subr.bf16.mxu0 0
    %146 = vmatpush1.bf16.msra.mxu0 0
    %147 = vmatprep.subr.bf16.mxu0 0
    %148 = vmatpush1.bf16.msra.mxu0 0
    %149 = vmatprep.subr.bf16.mxu0 0
    %150 = vmatpush1.bf16.msra.mxu0 0
    %151 = vmatprep.subr.bf16.mxu0 0
    %152 = vmatpush1.bf16.msra.mxu0 0
    %153 = vmatprep.subr.bf16.mxu0 0
    %154 = vmatpush1.bf16.msra.mxu0 0
    %155 = vmatprep.subr.bf16.mxu0 0
    %156 = vmatpush1.bf16.msra.mxu0 0
    %157 = vmatprep.subr.bf16.mxu0 0
    %158 = vmatpush1.bf16.msra.mxu0 0
    %159 = vmatprep.subr.bf16.mxu0 0
    %160 = vmatpush1.bf16.msra.mxu0 0
    %161 = vmatprep.subr.bf16.mxu0 0
    %162 = vmatpush1.bf16.msra.mxu0 0
    %163 = vmatprep.mubr.bf16.mxu0 0
    %164 = vmatmul.mubr.bf16.gmra.mrb[0].mxu0 %v107
    %v165 = vpop.f32.mrb[0].mxu0
    %v166 = vadd.f32 %v58, %v165
    %v167 = vpop.f32.mrb[0].mxu0
    %v168 = vadd.f32 %v62, %v167
    %v169 = vpop.f32.mrb[0].mxu0
    %v170 = vadd.f32 %v58, %v169
    %v171 = vpop.f32.mrb[0].mxu0
    %v172 = vadd.f32 %v62, %v171
    %173 = vmatprep.mubr.bf16.mxu0 0
    %174 = vmatmul.mubr.bf16.gmra.mrb[0].mxu0 %v110
    %v175 = vpop.f32.mrb[0].mxu0
    %v176 = vadd.f32 %v58, %v175
    %v177 = vpop.f32.mrb[0].mxu0
    %v178 = vadd.f32 %v62, %v177
    %v179 = vpop.f32.mrb[0].mxu0
    %v180 = vadd.f32 %v58, %v179
    %v181 = vpop.f32.mrb[0].mxu0
    %v182 = vadd.f32 %v62, %v181
    %183 = vmatprep.mubr.bf16.mxu0 0
    %184 = vmatmul.mubr.bf16.gmra.mrb[0].mxu0 %v113
    %v185 = vpop.f32.mrb[0].mxu0
    %v186 = vadd.f32 %v58, %v185
    %v187 = vpop.f32.mrb[0].mxu0
    %v188 = vadd.f32 %v62, %v187
    %v189 = vpop.f32.mrb[0].mxu0
    %v190 = vadd.f32 %v58, %v189
    %v191 = vpop.f32.mrb[0].mxu0
    %v192 = vadd.f32 %v62, %v191
    %193 = vmatprep.mubr.bf16.mxu0 0
    %194 = vmatmul.mubr.bf16.gmra.mrb[0].mxu0 %v116
    %v195 = vpop.f32.mrb[0].mxu0
    %v196 = vadd.f32 %v58, %v195
    %v197 = vpop.f32.mrb[0].mxu0
    %v198 = vadd.f32 %v62, %v197
    %v199 = vpop.f32.mrb[0].mxu0
    %v200 = vadd.f32 %v58, %v199
    %v201 = vpop.f32.mrb[0].mxu0
    %v202 = vadd.f32 %v62, %v201
    %203 = vdwg.mxu0
    %204 = vmatprep.subr.bf16.mxu0 %v129
    %205 = vmatpush1.bf16.msra.mxu0 %v126
    %206 = vmatprep.subr.bf16.mxu0 0
    %207 = vmatpush1.bf16.msra.mxu0 0
    %208 = vmatprep.subr.bf16.mxu0 0
    %209 = vmatpush1.bf16.msra.mxu0 0
    %210 = vmatprep.subr.bf16.mxu0 0
    %211 = vmatpush1.bf16.msra.mxu0 0
    %212 = vmatprep.subr.bf16.mxu0 0
    %213 = vmatpush1.bf16.msra.mxu0 0
    %214 = vmatprep.subr.bf16.mxu0 0
    %215 = vmatpush1.bf16.msra.mxu0 0
    %216 = vmatprep.subr.bf16.mxu0 0
    %217 = vmatpush1.bf16.msra.mxu0 0
    %218 = vmatprep.subr.bf16.mxu0 0
    %219 = vmatpush1.bf16.msra.mxu0 0
    %220 = vmatprep.subr.bf16.mxu0 0
    %221 = vmatpush1.bf16.msra.mxu0 0
    %222 = vmatprep.subr.bf16.mxu0 0
    %223 = vmatpush1.bf16.msra.mxu0 0
    %224 = vmatprep.subr.bf16.mxu0 0
    %225 = vmatpush1.bf16.msra.mxu0 0
    %226 = vmatprep.subr.bf16.mxu0 0
    %227 = vmatpush1.bf16.msra.mxu0 0
    %228 = vmatprep.subr.bf16.mxu0 0
    %229 = vmatpush1.bf16.msra.mxu0 0
    %230 = vmatprep.subr.bf16.mxu0 0
    %231 = vmatpush1.bf16.msra.mxu0 0
    %232 = vmatprep.subr.bf16.mxu0 0
    %233 = vmatpush1.bf16.msra.mxu0 0
    %234 = vmatprep.subr.bf16.mxu0 0
    %235 = vmatpush1.bf16.msra.mxu0 0
    %236 = vmatprep.mubr.bf16.mxu0 0
    %237 = vmatmul.mubr.bf16.gmra.mrb[0].mxu0 %v107
    %v238 = vpop.f32.mrb[0].mxu0
    %v239 = vadd.f32 %v66, %v238
    %v240 = vpop.f32.mrb[0].mxu0
    %v241 = vadd.f32 %v70, %v240
    %v242 = vpop.f32.mrb[0].mxu0
    %v243 = vadd.f32 %v66, %v242
    %v244 = vpop.f32.mrb[0].mxu0
    %v245 = vadd.f32 %v70, %v244
    %246 = vmatprep.mubr.bf16.mxu0 0
    %247 = vmatmul.mubr.bf16.gmra.mrb[0].mxu0 %v110
    %v248 = vpop.f32.mrb[0].mxu0
    %v249 = vadd.f32 %v66, %v248
    %v250 = vpop.f32.mrb[0].mxu0
    %v251 = vadd.f32 %v70, %v250
    %v252 = vpop.f32.mrb[0].mxu0
    %v253 = vadd.f32 %v66, %v252
    %v254 = vpop.f32.mrb[0].mxu0
    %v255 = vadd.f32 %v70, %v254
    %256 = vmatprep.mubr.bf16.mxu0 0
    %257 = vmatmul.mubr.bf16.gmra.mrb[0].mxu0 %v113
    %v258 = vpop.f32.mrb[0].mxu0
    %v259 = vadd.f32 %v66, %v258
    %v260 = vpop.f32.mrb[0].mxu0
    %v261 = vadd.f32 %v70, %v260
    %v262 = vpop.f32.mrb[0].mxu0
    %v263 = vadd.f32 %v66, %v262
    %v264 = vpop.f32.mrb[0].mxu0
    %v265 = vadd.f32 %v70, %v264
    %266 = vmatprep.mubr.bf16.mxu0 0
    %267 = vmatmul.mubr.bf16.gmra.mrb[0].mxu0 %v116
    %v268 = vpop.f32.mrb[0].mxu0
    %v269 = vadd.f32 %v66, %v268
    %v270 = vpop.f32.mrb[0].mxu0
    %v271 = vadd.f32 %v70, %v270
    %v272 = vpop.f32.mrb[0].mxu0
    %v273 = vadd.f32 %v66, %v272
    %v274 = vpop.f32.mrb[0].mxu0
    %v275 = vadd.f32 %v70, %v274
    %276 = vdwg.mxu0
    %277 = vst [vmem:[#allocation2] sm:$0xff] %v166
    %278 = vst [vmem:[#allocation2 + $0x8] sm:$0xff] %v168
    %279 = vst [vmem:[#allocation2 + $0x10] sm:$0xff] %v239
    %280 = vst [vmem:[#allocation2 + $0x18] sm:$0xff] %v241
    %281 = vst [vmem:[#allocation2 + $0x20] sm:$0xff] %v170
    %282 = vst [vmem:[#allocation2 + $0x28] sm:$0xff] %v172
    %283 = vst [vmem:[#allocation2 + $0x30] sm:$0xff] %v243
    %284 = vst [vmem:[#allocation2 + $0x38] sm:$0xff] %v245
    %285 = vst [vmem:[#allocation2 + $0x40] sm:$0xff] %v176
    %286 = vst [vmem:[#allocation2 + $0x48] sm:$0xff] %v178
    %287 = vst [vmem:[#allocation2 + $0x50] sm:$0xff] %v249
    %288 = vst [vmem:[#allocation2 + $0x58] sm:$0xff] %v251
    %289 = vst [vmem:[#allocation2 + $0x60] sm:$0xff] %v180
    %290 = vst [vmem:[#allocation2 + $0x68] sm:$0xff] %v182
    %291 = vst [vmem:[#allocation2 + $0x70] sm:$0xff] %v253
    %292 = vst [vmem:[#allocation2 + $0x78] sm:$0xff] %v255
    %293 = vst [vmem:[#allocation2 + $0x80] sm:$0xff] %v186
    %294 = vst [vmem:[#allocation2 + $0x88] sm:$0xff] %v188
    %295 = vst [vmem:[#allocation2 + $0x90] sm:$0xff] %v259
    %296 = vst [vmem:[#allocation2 + $0x98] sm:$0xff] %v261
    %297 = vst [vmem:[#allocation2 + $0xa0] sm:$0xff] %v190
    %298 = vst [vmem:[#allocation2 + $0xa8] sm:$0xff] %v192
    %299 = vst [vmem:[#allocation2 + $0xb0] sm:$0xff] %v263
    %300 = vst [vmem:[#allocation2 + $0xb8] sm:$0xff] %v265
    %301 = vst [vmem:[#allocation2 + $0xc0] sm:$0xff] %v196
    %302 = vst [vmem:[#allocation2 + $0xc8] sm:$0xff] %v198
    %303 = vst [vmem:[#allocation2 + $0xd0] sm:$0xff] %v269
    %304 = vst [vmem:[#allocation2 + $0xd8] sm:$0xff] %v271
    %305 = vst [vmem:[#allocation2 + $0xe0] sm:$0xff] %v200
    %306 = vst [vmem:[#allocation2 + $0xe8] sm:$0xff] %v202
    %307 = vst [vmem:[#allocation2 + $0xf0] sm:$0xff] %v273
    %308 = vst [vmem:[#allocation2 + $0xf8] sm:$0xff] %v275
    %v309 = vld [vmem:[#allocation5] sm:$0xff]
    %v310 = vld [vmem:[#allocation5 + $0x8] sm:$0xff]
    %v311 = vld [vmem:[#allocation5 + $0x10] sm:$0xff]
    %v312 = vld [vmem:[#allocation5 + $0x18] sm:$0xff]
    %v313 = vld [vmem:[#allocation5 + $0x20] sm:$0xff]
    %v314 = vld [vmem:[#allocation5 + $0x28] sm:$0xff]
    %v315 = vld [vmem:[#allocation5 + $0x30] sm:$0xff]
    %v316 = vld [vmem:[#allocation5 + $0x38] sm:$0xff]
    %v317 = vld [vmem:[#allocation5 + $0x40] sm:$0xff]
    %v318 = vld [vmem:[#allocation5 + $0x48] sm:$0xff]
    %v319 = vld [vmem:[#allocation5 + $0x50] sm:$0xff]
    %v320 = vld [vmem:[#allocation5 + $0x58] sm:$0xff]
    %v321 = vld [vmem:[#allocation5 + $0x60] sm:$0xff]
    %v322 = vld [vmem:[#allocation5 + $0x68] sm:$0xff]
    %v323 = vld [vmem:[#allocation5 + $0x70] sm:$0xff]
    %v324 = vld [vmem:[#allocation5 + $0x78] sm:$0xff]
    %v325 = vld [vmem:[#allocation5 + $0x80] sm:$0xff]
    %v326 = vld [vmem:[#allocation5 + $0x88] sm:$0xff]
    %v327 = vld [vmem:[#allocation5 + $0x90] sm:$0xff]
    %v328 = vld [vmem:[#allocation5 + $0x98] sm:$0xff]
    %v329 = vld [vmem:[#allocation5 + $0xa0] sm:$0xff]
    %v330 = vld [vmem:[#allocation5 + $0xa8] sm:$0xff]
    %v331 = vld [vmem:[#allocation5 + $0xb0] sm:$0xff]
    %v332 = vld [vmem:[#allocation5 + $0xb8] sm:$0xff]
    %v333 = vld [vmem:[#allocation5 + $0xc0] sm:$0xff]
    %v334 = vld [vmem:[#allocation5 + $0xc8] sm:$0xff]
    %v335 = vld [vmem:[#allocation5 + $0xd0] sm:$0xff]
    %v336 = vld [vmem:[#allocation5 + $0xd8] sm:$0xff]
    %v337 = vld [vmem:[#allocation5 + $0xe0] sm:$0xff]
    %v338 = vld [vmem:[#allocation5 + $0xe8] sm:$0xff]
    %v339 = vld [vmem:[#allocation5 + $0xf0] sm:$0xff]
    %v340 = vld [vmem:[#allocation5 + $0xf8] sm:$0xff]
    %v341 = vld [vmem:[#allocation5 + $0x100] sm:$0xff]
    %v342 = vld [vmem:[#allocation5 + $0x108] sm:$0xff]
    %v343 = vld [vmem:[#allocation5 + $0x110] sm:$0xff]
    %v344 = vld [vmem:[#allocation5 + $0x118] sm:$0xff]
    %v345 = vld [vmem:[#allocation5 + $0x120] sm:$0xff]
    %v346 = vld [vmem:[#allocation5 + $0x128] sm:$0xff]
    %v347 = vld [vmem:[#allocation5 + $0x130] sm:$0xff]
    %v348 = vld [vmem:[#allocation5 + $0x138] sm:$0xff]
    %v349 = vld [vmem:[#allocation5 + $0x140] sm:$0xff]
    %v350 = vld [vmem:[#allocation5 + $0x148] sm:$0xff]
    %v351 = vld [vmem:[#allocation5 + $0x150] sm:$0xff]
    %v352 = vld [vmem:[#allocation5 + $0x158] sm:$0xff]
    %v353 = vld [vmem:[#allocation5 + $0x160] sm:$0xff]
    %v354 = vld [vmem:[#allocation5 + $0x168] sm:$0xff]
    %v355 = vld [vmem:[#allocation5 + $0x170] sm:$0xff]
    %v356 = vld [vmem:[#allocation5 + $0x178] sm:$0xff]
    %v357 = vld [vmem:[#allocation5 + $0x180] sm:$0xff]
    %v358 = vld [vmem:[#allocation5 + $0x188] sm:$0xff]
    %v359 = vld [vmem:[#allocation5 + $0x190] sm:$0xff]
    %v360 = vld [vmem:[#allocation5 + $0x198] sm:$0xff]
    %v361 = vld [vmem:[#allocation5 + $0x1a0] sm:$0xff]
    %v362 = vld [vmem:[#allocation5 + $0x1a8] sm:$0xff]
    %v363 = vld [vmem:[#allocation5 + $0x1b0] sm:$0xff]
    %v364 = vld [vmem:[#allocation5 + $0x1b8] sm:$0xff]
    %v365 = vld [vmem:[#allocation5 + $0x1c0] sm:$0xff]
    %v366 = vld [vmem:[#allocation5 + $0x1c8] sm:$0xff]
    %v367 = vld [vmem:[#allocation5 + $0x1d0] sm:$0xff]
    %v368 = vld [vmem:[#allocation5 + $0x1d8] sm:$0xff]
    %v369 = vld [vmem:[#allocation5 + $0x1e0] sm:$0xff]
    %v370 = vld [vmem:[#allocation5 + $0x1e8] sm:$0xff]
    %v371 = vld [vmem:[#allocation5 + $0x1f0] sm:$0xff]
    %v372 = vld [vmem:[#allocation5 + $0x1f8] sm:$0xff]
    %v373 = vld [vmem:[#allocation5 + $0x200] sm:$0xff]
    %v374 = vld [vmem:[#allocation5 + $0x208] sm:$0xff]
    %v375 = vld [vmem:[#allocation5 + $0x210] sm:$0xff]
    %v376 = vld [vmem:[#allocation5 + $0x218] sm:$0xff]
    %v377 = vld [vmem:[#allocation5 + $0x220] sm:$0xff]
    %v378 = vld [vmem:[#allocation5 + $0x228] sm:$0xff]
    %v379 = vld [vmem:[#allocation5 + $0x230] sm:$0xff]
    %v380 = vld [vmem:[#allocation5 + $0x238] sm:$0xff]
    %v381 = vld [vmem:[#allocation5 + $0x240] sm:$0xff]
    %v382 = vld [vmem:[#allocation5 + $0x248] sm:$0xff]
    %v383 = vld [vmem:[#allocation5 + $0x250] sm:$0xff]
    %v384 = vld [vmem:[#allocation5 + $0x258] sm:$0xff]
    %v385 = vld [vmem:[#allocation5 + $0x260] sm:$0xff]
    %v386 = vld [vmem:[#allocation5 + $0x268] sm:$0xff]
    %v387 = vld [vmem:[#allocation5 + $0x270] sm:$0xff]
    %v388 = vld [vmem:[#allocation5 + $0x278] sm:$0xff]
    %v389 = vld [vmem:[#allocation5 + $0x280] sm:$0xff]
    %v390 = vld [vmem:[#allocation5 + $0x288] sm:$0xff]
    %v391 = vld [vmem:[#allocation5 + $0x290] sm:$0xff]
    %v392 = vld [vmem:[#allocation5 + $0x298] sm:$0xff]
    %v393 = vld [vmem:[#allocation5 + $0x2a0] sm:$0xff]
    %v394 = vld [vmem:[#allocation5 + $0x2a8] sm:$0xff]
    %v395 = vld [vmem:[#allocation5 + $0x2b0] sm:$0xff]
    %v396 = vld [vmem:[#allocation5 + $0x2b8] sm:$0xff]
    %v397 = vld [vmem:[#allocation5 + $0x2c0] sm:$0xff]
    %v398 = vld [vmem:[#allocation5 + $0x2c8] sm:$0xff]
    %v399 = vld [vmem:[#allocation5 + $0x2d0] sm:$0xff]
    %v400 = vld [vmem:[#allocation5 + $0x2d8] sm:$0xff]
    %v401 = vld [vmem:[#allocation5 + $0x2e0] sm:$0xff]
    %v402 = vld [vmem:[#allocation5 + $0x2e8] sm:$0xff]
    %v403 = vld [vmem:[#allocation5 + $0x2f0] sm:$0xff]
    %v404 = vld [vmem:[#allocation5 + $0x2f8] sm:$0xff]
    %v405 = vld [vmem:[#allocation5 + $0x300] sm:$0xff]
    %v406 = vld [vmem:[#allocation5 + $0x308] sm:$0xff]
    %v407 = vld [vmem:[#allocation5 + $0x310] sm:$0xff]
    %v408 = vld [vmem:[#allocation5 + $0x318] sm:$0xff]
    %v409 = vld [vmem:[#allocation5 + $0x320] sm:$0xff]
    %v410 = vld [vmem:[#allocation5 + $0x328] sm:$0xff]
    %v411 = vld [vmem:[#allocation5 + $0x330] sm:$0xff]
    %v412 = vld [vmem:[#allocation5 + $0x338] sm:$0xff]
    %v413 = vld [vmem:[#allocation5 + $0x340] sm:$0xff]
    %v414 = vld [vmem:[#allocation5 + $0x348] sm:$0xff]
    %v415 = vld [vmem:[#allocation5 + $0x350] sm:$0xff]
    %v416 = vld [vmem:[#allocation5 + $0x358] sm:$0xff]
    %v417 = vld [vmem:[#allocation5 + $0x360] sm:$0xff]
    %v418 = vld [vmem:[#allocation5 + $0x368] sm:$0xff]
    %v419 = vld [vmem:[#allocation5 + $0x370] sm:$0xff]
    %v420 = vld [vmem:[#allocation5 + $0x378] sm:$0xff]
    %v421 = vld [vmem:[#allocation5 + $0x380] sm:$0xff]
    %v422 = vld [vmem:[#allocation5 + $0x388] sm:$0xff]
    %v423 = vld [vmem:[#allocation5 + $0x390] sm:$0xff]
    %v424 = vld [vmem:[#allocation5 + $0x398] sm:$0xff]
    %v425 = vld [vmem:[#allocation5 + $0x3a0] sm:$0xff]
    %v426 = vld [vmem:[#allocation5 + $0x3a8] sm:$0xff]
    %v427 = vld [vmem:[#allocation5 + $0x3b0] sm:$0xff]
    %v428 = vld [vmem:[#allocation5 + $0x3b8] sm:$0xff]
    %v429 = vld [vmem:[#allocation5 + $0x3c0] sm:$0xff]
    %v430 = vld [vmem:[#allocation5 + $0x3c8] sm:$0xff]
    %v431 = vld [vmem:[#allocation5 + $0x3d0] sm:$0xff]
    %v432 = vld [vmem:[#allocation5 + $0x3d8] sm:$0xff]
    %v433 = vld [vmem:[#allocation5 + $0x3e0] sm:$0xff]
    %v434 = vld [vmem:[#allocation5 + $0x3e8] sm:$0xff]
    %v435 = vld [vmem:[#allocation5 + $0x3f0] sm:$0xff]
    %v436 = vld [vmem:[#allocation5 + $0x3f8] sm:$0xff]
    %v437 = vld [vmem:[%s4] sm:$0xf]
    %v439 = vlaneseq
    %v440 = vshrl.u32 %v439, 7
    %v441 = vsub.s32 0, %v440
    %v442 = vrot.slane %v437, %v441
    %v443 = vlaneseq
    %v444 = vshrl.u32 %v443, 7
    %v445 = vsub.s32 1, %v444
    %v446 = vrot.slane %v437, %v445
    %v447 = vlaneseq
    %v448 = vshrl.u32 %v447, 7
    %v449 = vsub.s32 2, %v448
    %v450 = vrot.slane %v437, %v449
    %v451 = vlaneseq
    %v452 = vshrl.u32 %v451, 7
    %v453 = vsub.s32 3, %v452
    %v454 = vrot.slane %v437, %v453
    %459 = vst [vmem:[#allocation3] sm:$0xff] 0
    %v460 = vld [vmem:[#allocation2] sm:$0xff]
    %v461 = vld [vmem:[#allocation2 + $0x8] sm:$0xff]
    %v462 = vld [vmem:[#allocation2 + $0x10] sm:$0xff]
    %v463 = vld [vmem:[#allocation2 + $0x18] sm:$0xff]
    %v464 = vmul.f32 %v460, 0.5
    %v465 = vtanh.pop %v464
    %v466 = vmul.f32 %v465, 0.5
    %v467 = vadd.f32 %v466, 0.5
    %v468 = vmul.f32 %v461, 0.5
    %v469 = vtanh.pop %v468
    %v470 = vmul.f32 %v469, 0.5
    %v471 = vadd.f32 %v470, 0.5
    %v472 = vtanh.pop %v462
    %v473 = vmul.f32 %v463, 0.5
    %v474 = vtanh.pop %v473
    %v475 = vmul.f32 %v474, 0.5
    %v476 = vadd.f32 %v475, 0.5
    %v477 = vmul.f32 %v471, 0.0
    %v478 = vmul.f32 %v467, %v472
    %v479 = vadd.f32 %v477, %v478
    %v480 = vtanh.pop %v479
    %v481 = vmul.f32 %v476, %v480
    %v482 = vpack.c.bf16 %v481, %v481
    %483 = vst [vmem:[#allocation3] sm:$0xf] %v482
    %v484 = vld [vmem:[#allocation3] sm:$0xff]
    %v486 = vunpack.c.l.b16 %v484
    %v487 = vunpack.c.h.b16 %v484
    %v488 = vpack.c.b16 %v486, %v486
    %v489 = vpack.c.b16 %v487, %v487
    %v620 = vunpack.c.l.b16 %v309
    %v621 = vunpack.c.h.b16 %v309
    %v622 = vunpack.c.l.b16 %v310
    %v623 = vunpack.c.h.b16 %v310
    %v624 = vunpack.c.l.b16 %v311
    %v625 = vunpack.c.h.b16 %v311
    %v626 = vunpack.c.l.b16 %v312
    %v627 = vunpack.c.h.b16 %v312
    %v628 = vunpack.c.l.b16 %v313
    %v629 = vunpack.c.h.b16 %v313
    %v630 = vunpack.c.l.b16 %v314
    %v631 = vunpack.c.h.b16 %v314
    %v632 = vunpack.c.l.b16 %v315
    %v633 = vunpack.c.h.b16 %v315
    %v634 = vunpack.c.l.b16 %v316
    %v635 = vunpack.c.h.b16 %v316
    %v636 = vunpack.c.l.b16 %v317
    %v637 = vunpack.c.h.b16 %v317
    %v638 = vunpack.c.l.b16 %v318
    %v639 = vunpack.c.h.b16 %v318
    %v640 = vunpack.c.l.b16 %v319
    %v641 = vunpack.c.h.b16 %v319
    %v642 = vunpack.c.l.b16 %v320
    %v643 = vunpack.c.h.b16 %v320
    %v644 = vunpack.c.l.b16 %v321
    %v645 = vunpack.c.h.b16 %v321
    %v646 = vunpack.c.l.b16 %v322
    %v647 = vunpack.c.h.b16 %v322
    %v648 = vunpack.c.l.b16 %v323
    %v649 = vunpack.c.h.b16 %v323
    %v650 = vunpack.c.l.b16 %v324
    %v651 = vunpack.c.h.b16 %v324
    %v652 = vunpack.c.l.b16 %v325
    %v653 = vunpack.c.h.b16 %v325
    %v654 = vunpack.c.l.b16 %v326
    %v655 = vunpack.c.h.b16 %v326
    %v656 = vunpack.c.l.b16 %v327
    %v657 = vunpack.c.h.b16 %v327
    %v658 = vunpack.c.l.b16 %v328
    %v659 = vunpack.c.h.b16 %v328
    %v660 = vunpack.c.l.b16 %v329
    %v661 = vunpack.c.h.b16 %v329
    %v662 = vunpack.c.l.b16 %v330
    %v663 = vunpack.c.h.b16 %v330
    %v664 = vunpack.c.l.b16 %v331
    %v665 = vunpack.c.h.b16 %v331
    %v666 = vunpack.c.l.b16 %v332
    %v667 = vunpack.c.h.b16 %v332
    %v668 = vunpack.c.l.b16 %v333
    %v669 = vunpack.c.h.b16 %v333
    %v670 = vunpack.c.l.b16 %v334
    %v671 = vunpack.c.h.b16 %v334
    %v672 = vunpack.c.l.b16 %v335
    %v673 = vunpack.c.h.b16 %v335
    %v674 = vunpack.c.l.b16 %v336
    %v675 = vunpack.c.h.b16 %v336
    %v676 = vunpack.c.l.b16 %v337
    %v677 = vunpack.c.h.b16 %v337
    %v678 = vunpack.c.l.b16 %v338
    %v679 = vunpack.c.h.b16 %v338
    %v680 = vunpack.c.l.b16 %v339
    %v681 = vunpack.c.h.b16 %v339
    %v682 = vunpack.c.l.b16 %v340
    %v683 = vunpack.c.h.b16 %v340
    %v684 = vunpack.c.l.b16 %v341
    %v685 = vunpack.c.h.b16 %v341
    %v686 = vunpack.c.l.b16 %v342
    %v687 = vunpack.c.h.b16 %v342
    %v688 = vunpack.c.l.b16 %v343
    %v689 = vunpack.c.h.b16 %v343
    %v690 = vunpack.c.l.b16 %v344
    %v691 = vunpack.c.h.b16 %v344
    %v692 = vunpack.c.l.b16 %v345
    %v693 = vunpack.c.h.b16 %v345
    %v694 = vunpack.c.l.b16 %v346
    %v695 = vunpack.c.h.b16 %v346
    %v696 = vunpack.c.l.b16 %v347
    %v697 = vunpack.c.h.b16 %v347
    %v698 = vunpack.c.l.b16 %v348
    %v699 = vunpack.c.h.b16 %v348
    %v700 = vunpack.c.l.b16 %v349
    %v701 = vunpack.c.h.b16 %v349
    %v702 = vunpack.c.l.b16 %v350
    %v703 = vunpack.c.h.b16 %v350
    %v704 = vunpack.c.l.b16 %v351
    %v705 = vunpack.c.h.b16 %v351
    %v706 = vunpack.c.l.b16 %v352
    %v707 = vunpack.c.h.b16 %v352
    %v708 = vunpack.c.l.b16 %v353
    %v709 = vunpack.c.h.b16 %v353
    %v710 = vunpack.c.l.b16 %v354
    %v711 = vunpack.c.h.b16 %v354
    %v712 = vunpack.c.l.b16 %v355
    %v713 = vunpack.c.h.b16 %v355
    %v714 = vunpack.c.l.b16 %v356
    %v715 = vunpack.c.h.b16 %v356
    %v716 = vunpack.c.l.b16 %v357
    %v717 = vunpack.c.h.b16 %v357
    %v718 = vunpack.c.l.b16 %v358
    %v719 = vunpack.c.h.b16 %v358
    %v720 = vunpack.c.l.b16 %v359
    %v721 = vunpack.c.h.b16 %v359
    %v722 = vunpack.c.l.b16 %v360
    %v723 = vunpack.c.h.b16 %v360
    %v724 = vunpack.c.l.b16 %v361
    %v725 = vunpack.c.h.b16 %v361
    %v726 = vunpack.c.l.b16 %v362
    %v727 = vunpack.c.h.b16 %v362
    %v728 = vunpack.c.l.b16 %v363
    %v729 = vunpack.c.h.b16 %v363
    %v730 = vunpack.c.l.b16 %v364
    %v731 = vunpack.c.h.b16 %v364
    %v732 = vunpack.c.l.b16 %v365
    %v733 = vunpack.c.h.b16 %v365
    %v734 = vunpack.c.l.b16 %v366
    %v735 = vunpack.c.h.b16 %v366
    %v736 = vunpack.c.l.b16 %v367
    %v737 = vunpack.c.h.b16 %v367
    %v738 = vunpack.c.l.b16 %v368
    %v739 = vunpack.c.h.b16 %v368
    %v740 = vunpack.c.l.b16 %v369
    %v741 = vunpack.c.h.b16 %v369
    %v742 = vunpack.c.l.b16 %v370
    %v743 = vunpack.c.h.b16 %v370
    %v744 = vunpack.c.l.b16 %v371
    %v745 = vunpack.c.h.b16 %v371
    %v746 = vunpack.c.l.b16 %v372
    %v747 = vunpack.c.h.b16 %v372
    %v748 = vunpack.c.l.b16 %v373
    %v749 = vunpack.c.h.b16 %v373
    %v750 = vunpack.c.l.b16 %v374
    %v751 = vunpack.c.h.b16 %v374
    %v752 = vunpack.c.l.b16 %v375
    %v753 = vunpack.c.h.b16 %v375
    %v754 = vunpack.c.l.b16 %v376
    %v755 = vunpack.c.h.b16 %v376
    %v756 = vunpack.c.l.b16 %v377
    %v757 = vunpack.c.h.b16 %v377
    %v758 = vunpack.c.l.b16 %v378
    %v759 = vunpack.c.h.b16 %v378
    %v760 = vunpack.c.l.b16 %v379
    %v761 = vunpack.c.h.b16 %v379
    %v762 = vunpack.c.l.b16 %v380
    %v763 = vunpack.c.h.b16 %v380
    %v764 = vunpack.c.l.b16 %v381
    %v765 = vunpack.c.h.b16 %v381
    %v766 = vunpack.c.l.b16 %v382
    %v767 = vunpack.c.h.b16 %v382
    %v768 = vunpack.c.l.b16 %v383
    %v769 = vunpack.c.h.b16 %v383
    %v770 = vunpack.c.l.b16 %v384
    %v771 = vunpack.c.h.b16 %v384
    %v772 = vunpack.c.l.b16 %v385
    %v773 = vunpack.c.h.b16 %v385
    %v774 = vunpack.c.l.b16 %v386
    %v775 = vunpack.c.h.b16 %v386
    %v776 = vunpack.c.l.b16 %v387
    %v777 = vunpack.c.h.b16 %v387
    %v778 = vunpack.c.l.b16 %v388
    %v779 = vunpack.c.h.b16 %v388
    %v780 = vunpack.c.l.b16 %v389
    %v781 = vunpack.c.h.b16 %v389
    %v782 = vunpack.c.l.b16 %v390
    %v783 = vunpack.c.h.b16 %v390
    %v784 = vunpack.c.l.b16 %v391
    %v785 = vunpack.c.h.b16 %v391
    %v786 = vunpack.c.l.b16 %v392
    %v787 = vunpack.c.h.b16 %v392
    %v788 = vunpack.c.l.b16 %v393
    %v789 = vunpack.c.h.b16 %v393
    %v790 = vunpack.c.l.b16 %v394
    %v791 = vunpack.c.h.b16 %v394
    %v792 = vunpack.c.l.b16 %v395
    %v793 = vunpack.c.h.b16 %v395
    %v794 = vunpack.c.l.b16 %v396
    %v795 = vunpack.c.h.b16 %v396
    %v796 = vunpack.c.l.b16 %v397
    %v797 = vunpack.c.h.b16 %v397
    %v798 = vunpack.c.l.b16 %v398
    %v799 = vunpack.c.h.b16 %v398
    %v800 = vunpack.c.l.b16 %v399
    %v801 = vunpack.c.h.b16 %v399
    %v802 = vunpack.c.l.b16 %v400
    %v803 = vunpack.c.h.b16 %v400
    %v804 = vunpack.c.l.b16 %v401
    %v805 = vunpack.c.h.b16 %v401
    %v806 = vunpack.c.l.b16 %v402
    %v807 = vunpack.c.h.b16 %v402
    %v808 = vunpack.c.l.b16 %v403
    %v809 = vunpack.c.h.b16 %v403
    %v810 = vunpack.c.l.b16 %v404
    %v811 = vunpack.c.h.b16 %v404
    %v812 = vunpack.c.l.b16 %v405
    %v813 = vunpack.c.h.b16 %v405
    %v814 = vunpack.c.l.b16 %v406
    %v815 = vunpack.c.h.b16 %v406
    %v816 = vunpack.c.l.b16 %v407
    %v817 = vunpack.c.h.b16 %v407
    %v818 = vunpack.c.l.b16 %v408
    %v819 = vunpack.c.h.b16 %v408
    %v820 = vunpack.c.l.b16 %v409
    %v821 = vunpack.c.h.b16 %v409
    %v822 = vunpack.c.l.b16 %v410
    %v823 = vunpack.c.h.b16 %v410
    %v824 = vunpack.c.l.b16 %v411
    %v825 = vunpack.c.h.b16 %v411
    %v826 = vunpack.c.l.b16 %v412
    %v827 = vunpack.c.h.b16 %v412
    %v828 = vunpack.c.l.b16 %v413
    %v829 = vunpack.c.h.b16 %v413
    %v830 = vunpack.c.l.b16 %v414
    %v831 = vunpack.c.h.b16 %v414
    %v832 = vunpack.c.l.b16 %v415
    %v833 = vunpack.c.h.b16 %v415
    %v834 = vunpack.c.l.b16 %v416
    %v835 = vunpack.c.h.b16 %v416
    %v836 = vunpack.c.l.b16 %v417
    %v837 = vunpack.c.h.b16 %v417
    %v838 = vunpack.c.l.b16 %v418
    %v839 = vunpack.c.h.b16 %v418
    %v840 = vunpack.c.l.b16 %v419
    %v841 = vunpack.c.h.b16 %v419
    %v842 = vunpack.c.l.b16 %v420
    %v843 = vunpack.c.h.b16 %v420
    %v844 = vunpack.c.l.b16 %v421
    %v845 = vunpack.c.h.b16 %v421
    %v846 = vunpack.c.l.b16 %v422
    %v847 = vunpack.c.h.b16 %v422
    %v848 = vunpack.c.l.b16 %v423
    %v849 = vunpack.c.h.b16 %v423
    %v850 = vunpack.c.l.b16 %v424
    %v851 = vunpack.c.h.b16 %v424
    %v852 = vunpack.c.l.b16 %v425
    %v853 = vunpack.c.h.b16 %v425
    %v854 = vunpack.c.l.b16 %v426
    %v855 = vunpack.c.h.b16 %v426
    %v856 = vunpack.c.l.b16 %v427
    %v857 = vunpack.c.h.b16 %v427
    %v858 = vunpack.c.l.b16 %v428
    %v859 = vunpack.c.h.b16 %v428
    %v860 = vunpack.c.l.b16 %v429
    %v861 = vunpack.c.h.b16 %v429
    %v862 = vunpack.c.l.b16 %v430
    %v863 = vunpack.c.h.b16 %v430
    %v864 = vunpack.c.l.b16 %v431
    %v865 = vunpack.c.h.b16 %v431
    %v866 = vunpack.c.l.b16 %v432
    %v867 = vunpack.c.h.b16 %v432
    %v868 = vunpack.c.l.b16 %v433
    %v869 = vunpack.c.h.b16 %v433
    %v870 = vunpack.c.l.b16 %v434
    %v871 = vunpack.c.h.b16 %v434
    %v872 = vunpack.c.l.b16 %v435
    %v873 = vunpack.c.h.b16 %v435
    %v874 = vunpack.c.l.b16 %v436
    %v875 = vunpack.c.h.b16 %v436
    %v876 = vpack.c.b16 %v628, %v620
    %v877 = vpack.c.b16 %v629, %v621
    %v878 = vpack.c.b16 %v630, %v622
    %v879 = vpack.c.b16 %v631, %v623
    %v880 = vpack.c.b16 %v632, %v624
    %v881 = vpack.c.b16 %v633, %v625
    %v882 = vpack.c.b16 %v634, %v626
    %v883 = vpack.c.b16 %v635, %v627
    %v884 = vpack.c.b16 %v644, %v636
    %v885 = vpack.c.b16 %v645, %v637
    %v886 = vpack.c.b16 %v646, %v638
    %v887 = vpack.c.b16 %v647, %v639
    %v888 = vpack.c.b16 %v648, %v640
    %v889 = vpack.c.b16 %v649, %v641
    %v890 = vpack.c.b16 %v650, %v642
    %v891 = vpack.c.b16 %v651, %v643
    %v892 = vpack.c.b16 %v660, %v652
    %v893 = vpack.c.b16 %v661, %v653
    %v894 = vpack.c.b16 %v662, %v654
    %v895 = vpack.c.b16 %v663, %v655
    %v896 = vpack.c.b16 %v664, %v656
    %v897 = vpack.c.b16 %v665, %v657
    %v898 = vpack.c.b16 %v666, %v658
    %v899 = vpack.c.b16 %v667, %v659
    %v900 = vpack.c.b16 %v676, %v668
    %v901 = vpack.c.b16 %v677, %v669
    %v902 = vpack.c.b16 %v678, %v670
    %v903 = vpack.c.b16 %v679, %v671
    %v904 = vpack.c.b16 %v680, %v672
    %v905 = vpack.c.b16 %v681, %v673
    %v906 = vpack.c.b16 %v682, %v674
    %v907 = vpack.c.b16 %v683, %v675
    %v908 = vpack.c.b16 %v692, %v684
    %v909 = vpack.c.b16 %v693, %v685
    %v910 = vpack.c.b16 %v694, %v686
    %v911 = vpack.c.b16 %v695, %v687
    %v912 = vpack.c.b16 %v696, %v688
    %v913 = vpack.c.b16 %v697, %v689
    %v914 = vpack.c.b16 %v698, %v690
    %v915 = vpack.c.b16 %v699, %v691
    %v916 = vpack.c.b16 %v708, %v700
    %v917 = vpack.c.b16 %v709, %v701
    %v918 = vpack.c.b16 %v710, %v702
    %v919 = vpack.c.b16 %v711, %v703
    %v920 = vpack.c.b16 %v712, %v704
    %v921 = vpack.c.b16 %v713, %v705
    %v922 = vpack.c.b16 %v714, %v706
    %v923 = vpack.c.b16 %v715, %v707
    %v924 = vpack.c.b16 %v724, %v716
    %v925 = vpack.c.b16 %v725, %v717
    %v926 = vpack.c.b16 %v726, %v718
    %v927 = vpack.c.b16 %v727, %v719
    %v928 = vpack.c.b16 %v728, %v720
    %v929 = vpack.c.b16 %v729, %v721
    %v930 = vpack.c.b16 %v730, %v722
    %v931 = vpack.c.b16 %v731, %v723
    %v932 = vpack.c.b16 %v740, %v732
    %v933 = vpack.c.b16 %v741, %v733
    %v934 = vpack.c.b16 %v742, %v734
    %v935 = vpack.c.b16 %v743, %v735
    %v936 = vpack.c.b16 %v744, %v736
    %v937 = vpack.c.b16 %v745, %v737
    %v938 = vpack.c.b16 %v746, %v738
    %v939 = vpack.c.b16 %v747, %v739
    %v940 = vpack.c.b16 %v756, %v748
    %v941 = vpack.c.b16 %v757, %v749
    %v942 = vpack.c.b16 %v758, %v750
    %v943 = vpack.c.b16 %v759, %v751
    %v944 = vpack.c.b16 %v760, %v752
    %v945 = vpack.c.b16 %v761, %v753
    %v946 = vpack.c.b16 %v762, %v754
    %v947 = vpack.c.b16 %v763, %v755
    %v948 = vpack.c.b16 %v772, %v764
    %v949 = vpack.c.b16 %v773, %v765
    %v950 = vpack.c.b16 %v774, %v766
    %v951 = vpack.c.b16 %v775, %v767
    %v952 = vpack.c.b16 %v776, %v768
    %v953 = vpack.c.b16 %v777, %v769
    %v954 = vpack.c.b16 %v778, %v770
    %v955 = vpack.c.b16 %v779, %v771
    %v956 = vpack.c.b16 %v788, %v780
    %v957 = vpack.c.b16 %v789, %v781
    %v958 = vpack.c.b16 %v790, %v782
    %v959 = vpack.c.b16 %v791, %v783
    %v960 = vpack.c.b16 %v792, %v784
    %v961 = vpack.c.b16 %v793, %v785
    %v962 = vpack.c.b16 %v794, %v786
    %v963 = vpack.c.b16 %v795, %v787
    %v964 = vpack.c.b16 %v804, %v796
    %v965 = vpack.c.b16 %v805, %v797
    %v966 = vpack.c.b16 %v806, %v798
    %v967 = vpack.c.b16 %v807, %v799
    %v968 = vpack.c.b16 %v808, %v800
    %v969 = vpack.c.b16 %v809, %v801
    %v970 = vpack.c.b16 %v810, %v802
    %v971 = vpack.c.b16 %v811, %v803
    %v972 = vpack.c.b16 %v820, %v812
    %v973 = vpack.c.b16 %v821, %v813
    %v974 = vpack.c.b16 %v822, %v814
    %v975 = vpack.c.b16 %v823, %v815
    %v976 = vpack.c.b16 %v824, %v816
    %v977 = vpack.c.b16 %v825, %v817
    %v978 = vpack.c.b16 %v826, %v818
    %v979 = vpack.c.b16 %v827, %v819
    %v980 = vpack.c.b16 %v836, %v828
    %v981 = vpack.c.b16 %v837, %v829
    %v982 = vpack.c.b16 %v838, %v830
    %v983 = vpack.c.b16 %v839, %v831
    %v984 = vpack.c.b16 %v840, %v832
    %v985 = vpack.c.b16 %v841, %v833
    %v986 = vpack.c.b16 %v842, %v834
    %v987 = vpack.c.b16 %v843, %v835
    %v988 = vpack.c.b16 %v852, %v844
    %v989 = vpack.c.b16 %v853, %v845
    %v990 = vpack.c.b16 %v854, %v846
    %v991 = vpack.c.b16 %v855, %v847
    %v992 = vpack.c.b16 %v856, %v848
    %v993 = vpack.c.b16 %v857, %v849
    %v994 = vpack.c.b16 %v858, %v850
    %v995 = vpack.c.b16 %v859, %v851
    %v996 = vpack.c.b16 %v868, %v860
    %v997 = vpack.c.b16 %v869, %v861
    %v998 = vpack.c.b16 %v870, %v862
    %v999 = vpack.c.b16 %v871, %v863
    %v1000 = vpack.c.b16 %v872, %v864
    %v1001 = vpack.c.b16 %v873, %v865
    %v1002 = vpack.c.b16 %v874, %v866
    %v1003 = vpack.c.b16 %v875, %v867
    %1132 = vmatprep.subr.bf16.mxu0 %v877
    %1133 = vmatpush1.bf16.msra.mxu0 %v876
    %1134 = vmatprep.subr.bf16.mxu0 %v885
    %1135 = vmatpush1.bf16.msra.mxu0 %v884
    %1136 = vmatprep.subr.bf16.mxu0 %v893
    %1137 = vmatpush1.bf16.msra.mxu0 %v892
    %1138 = vmatprep.subr.bf16.mxu0 %v901
    %1139 = vmatpush1.bf16.msra.mxu0 %v900
    %1140 = vmatprep.subr.bf16.mxu0 %v909
    %1141 = vmatpush1.bf16.msra.mxu0 %v908
    %1142 = vmatprep.subr.bf16.mxu0 %v917
    %1143 = vmatpush1.bf16.msra.mxu0 %v916
    %1144 = vmatprep.subr.bf16.mxu0 %v925
    %1145 = vmatpush1.bf16.msra.mxu0 %v924
    %1146 = vmatprep.subr.bf16.mxu0 %v933
    %1147 = vmatpush1.bf16.msra.mxu0 %v932
    %1148 = vmatprep.subr.bf16.mxu0 %v941
    %1149 = vmatpush1.bf16.msra.mxu0 %v940
    %1150 = vmatprep.subr.bf16.mxu0 %v949
    %1151 = vmatpush1.bf16.msra.mxu0 %v948
    %1152 = vmatprep.subr.bf16.mxu0 %v957
    %1153 = vmatpush1.bf16.msra.mxu0 %v956
    %1154 = vmatprep.subr.bf16.mxu0 %v965
    %1155 = vmatpush1.bf16.msra.mxu0 %v964
    %1156 = vmatprep.subr.bf16.mxu0 %v973
    %1157 = vmatpush1.bf16.msra.mxu0 %v972
    %1158 = vmatprep.subr.bf16.mxu0 %v981
    %1159 = vmatpush1.bf16.msra.mxu0 %v980
    %1160 = vmatprep.subr.bf16.mxu0 %v989
    %1161 = vmatpush1.bf16.msra.mxu0 %v988
    %1162 = vmatprep.subr.bf16.mxu0 %v997
    %1163 = vmatpush1.bf16.msra.mxu0 %v996
    %1164 = vmatprep.mubr.bf16.mxu0 %v489
    %1165 = vmatmul.mubr.bf16.gmra.mrb[0].mxu0 %v488
    %v1166 = vpop.f32.mrb[0].mxu0
    %v1167 = vadd.f32 0.0, %v1166
    %v1168 = vpop.f32.mrb[0].mxu0
    %v1169 = vadd.f32 0.0, %v1168
    %v1170 = vpop.f32.mrb[0].mxu0
    %v1171 = vpop.f32.mrb[0].mxu0
    %1172 = vdwg.mxu0
    %1173 = vmatprep.subr.bf16.mxu0 %v879
    %1174 = vmatpush1.bf16.msra.mxu0 %v878
    %1175 = vmatprep.subr.bf16.mxu0 %v887
    %1176 = vmatpush1.bf16.msra.mxu0 %v886
    %1177 = vmatprep.subr.bf16.mxu0 %v895
    %1178 = vmatpush1.bf16.msra.mxu0 %v894
    %1179 = vmatprep.subr.bf16.mxu0 %v903
    %1180 = vmatpush1.bf16.msra.mxu0 %v902
    %1181 = vmatprep.subr.bf16.mxu0 %v911
    %1182 = vmatpush1.bf16.msra.mxu0 %v910
    %1183 = vmatprep.subr.bf16.mxu0 %v919
    %1184 = vmatpush1.bf16.msra.mxu0 %v918
    %1185 = vmatprep.subr.bf16.mxu0 %v927
    %1186 = vmatpush1.bf16.msra.mxu0 %v926
    %1187 = vmatprep.subr.bf16.mxu0 %v935
    %1188 = vmatpush1.bf16.msra.mxu0 %v934
    %1189 = vmatprep.subr.bf16.mxu0 %v943
    %1190 = vmatpush1.bf16.msra.mxu0 %v942
    %1191 = vmatprep.subr.bf16.mxu0 %v951
    %1192 = vmatpush1.bf16.msra.mxu0 %v950
    %1193 = vmatprep.subr.bf16.mxu0 %v959
    %1194 = vmatpush1.bf16.msra.mxu0 %v958
    %1195 = vmatprep.subr.bf16.mxu0 %v967
    %1196 = vmatpush1.bf16.msra.mxu0 %v966
    %1197 = vmatprep.subr.bf16.mxu0 %v975
    %1198 = vmatpush1.bf16.msra.mxu0 %v974
    %1199 = vmatprep.subr.bf16.mxu0 %v983
    %1200 = vmatpush1.bf16.msra.mxu0 %v982
    %1201 = vmatprep.subr.bf16.mxu0 %v991
    %1202 = vmatpush1.bf16.msra.mxu0 %v990
    %1203 = vmatprep.subr.bf16.mxu0 %v999
    %1204 = vmatpush1.bf16.msra.mxu0 %v998
    %1205 = vmatprep.mubr.bf16.mxu0 %v489
    %1206 = vmatmul.mubr.bf16.gmra.mrb[0].mxu0 %v488
    %v1207 = vpop.f32.mrb[0].mxu0
    %v1208 = vadd.f32 0.0, %v1207
    %v1209 = vpop.f32.mrb[0].mxu0
    %v1210 = vadd.f32 0.0, %v1209
    %v1211 = vpop.f32.mrb[0].mxu0
    %v1212 = vpop.f32.mrb[0].mxu0
    %1213 = vdwg.mxu0
    %1214 = vmatprep.subr.bf16.mxu0 %v881
    %1215 = vmatpush1.bf16.msra.mxu0 %v880
    %1216 = vmatprep.subr.bf16.mxu0 %v889
    %1217 = vmatpush1.bf16.msra.mxu0 %v888
    %1218 = vmatprep.subr.bf16.mxu0 %v897
    %1219 = vmatpush1.bf16.msra.mxu0 %v896
    %1220 = vmatprep.subr.bf16.mxu0 %v905
    %1221 = vmatpush1.bf16.msra.mxu0 %v904
    %1222 = vmatprep.subr.bf16.mxu0 %v913
    %1223 = vmatpush1.bf16.msra.mxu0 %v912
    %1224 = vmatprep.subr.bf16.mxu0 %v921
    %1225 = vmatpush1.bf16.msra.mxu0 %v920
    %1226 = vmatprep.subr.bf16.mxu0 %v929
    %1227 = vmatpush1.bf16.msra.mxu0 %v928
    %1228 = vmatprep.subr.bf16.mxu0 %v937
    %1229 = vmatpush1.bf16.msra.mxu0 %v936
    %1230 = vmatprep.subr.bf16.mxu0 %v945
    %1231 = vmatpush1.bf16.msra.mxu0 %v944
    %1232 = vmatprep.subr.bf16.mxu0 %v953
    %1233 = vmatpush1.bf16.msra.mxu0 %v952
    %1234 = vmatprep.subr.bf16.mxu0 %v961
    %1235 = vmatpush1.bf16.msra.mxu0 %v960
    %1236 = vmatprep.subr.bf16.mxu0 %v969
    %1237 = vmatpush1.bf16.msra.mxu0 %v968
    %1238 = vmatprep.subr.bf16.mxu0 %v977
    %1239 = vmatpush1.bf16.msra.mxu0 %v976
    %1240 = vmatprep.subr.bf16.mxu0 %v985
    %1241 = vmatpush1.bf16.msra.mxu0 %v984
    %1242 = vmatprep.subr.bf16.mxu0 %v993
    %1243 = vmatpush1.bf16.msra.mxu0 %v992
    %1244 = vmatprep.subr.bf16.mxu0 %v1001
    %1245 = vmatpush1.bf16.msra.mxu0 %v1000
    %1246 = vmatprep.mubr.bf16.mxu0 %v489
    %1247 = vmatmul.mubr.bf16.gmra.mrb[0].mxu0 %v488
    %v1248 = vpop.f32.mrb[0].mxu0
    %v1249 = vadd.f32 0.0, %v1248
    %v1250 = vpop.f32.mrb[0].mxu0
    %v1251 = vadd.f32 0.0, %v1250
    %v1252 = vpop.f32.mrb[0].mxu0
    %v1253 = vpop.f32.mrb[0].mxu0
    %1254 = vdwg.mxu0
    %1255 = vmatprep.subr.bf16.mxu0 %v883
    %1256 = vmatpush1.bf16.msra.mxu0 %v882
    %1257 = vmatprep.subr.bf16.mxu0 %v891
    %1258 = vmatpush1.bf16.msra.mxu0 %v890
    %1259 = vmatprep.subr.bf16.mxu0 %v899
    %1260 = vmatpush1.bf16.msra.mxu0 %v898
    %1261 = vmatprep.subr.bf16.mxu0 %v907
    %1262 = vmatpush1.bf16.msra.mxu0 %v906
    %1263 = vmatprep.subr.bf16.mxu0 %v915
    %1264 = vmatpush1.bf16.msra.mxu0 %v914
    %1265 = vmatprep.subr.bf16.mxu0 %v923
    %1266 = vmatpush1.bf16.msra.mxu0 %v922
    %1267 = vmatprep.subr.bf16.mxu0 %v931
    %1268 = vmatpush1.bf16.msra.mxu0 %v930
    %1269 = vmatprep.subr.bf16.mxu0 %v939
    %1270 = vmatpush1.bf16.msra.mxu0 %v938
    %1271 = vmatprep.subr.bf16.mxu0 %v947
    %1272 = vmatpush1.bf16.msra.mxu0 %v946
    %1273 = vmatprep.subr.bf16.mxu0 %v955
    %1274 = vmatpush1.bf16.msra.mxu0 %v954
    %1275 = vmatprep.subr.bf16.mxu0 %v963
    %1276 = vmatpush1.bf16.msra.mxu0 %v962
    %1277 = vmatprep.subr.bf16.mxu0 %v971
    %1278 = vmatpush1.bf16.msra.mxu0 %v970
    %1279 = vmatprep.subr.bf16.mxu0 %v979
    %1280 = vmatpush1.bf16.msra.mxu0 %v978
    %1281 = vmatprep.subr.bf16.mxu0 %v987
    %1282 = vmatpush1.bf16.msra.mxu0 %v986
    %1283 = vmatprep.subr.bf16.mxu0 %v995
    %1284 = vmatpush1.bf16.msra.mxu0 %v994
    %1285 = vmatprep.subr.bf16.mxu0 %v1003
    %1286 = vmatpush1.bf16.msra.mxu0 %v1002
    %1287 = vmatprep.mubr.bf16.mxu0 %v489
    %1288 = vmatmul.mubr.bf16.gmra.mrb[0].mxu0 %v488
    %v1289 = vpop.f32.mrb[0].mxu0
    %v1290 = vadd.f32 0.0, %v1289
    %v1291 = vpop.f32.mrb[0].mxu0
    %v1292 = vadd.f32 0.0, %v1291
    %v1293 = vpop.f32.mrb[0].mxu0
    %v1294 = vpop.f32.mrb[0].mxu0
    %1295 = vdwg.mxu0
    %v1296 = vadd.f32 %v1249, %v442
    %v1297 = vadd.f32 %v1251, %v446
    %v1298 = vadd.f32 %v1290, %v450
    %v1299 = vadd.f32 %v1292, %v454
    %v1300 = vmul.f32 %v1296, 0.5
    %v1301 = vtanh.pop %v1300
    %v1302 = vmul.f32 %v1301, 0.5
    %v1303 = vadd.f32 %v1302, 0.5
    %v1304 = vmul.f32 %v1297, 0.5
    %v1305 = vtanh.pop %v1304
    %v1306 = vmul.f32 %v1305, 0.5
    %v1307 = vadd.f32 %v1306, 0.5
    %v1308 = vtanh.pop %v1298
    %v1309 = vmul.f32 %v1299, 0.5
    %v1310 = vtanh.pop %v1309
    %v1311 = vmul.f32 %v1310, 0.5
    %v1312 = vadd.f32 %v1311, 0.5
    %v1313 = vmul.f32 %v1307, 0.0
    %v1314 = vmul.f32 %v1303, %v1308
    %v1315 = vadd.f32 %v1313, %v1314
    %v1316 = vtanh.pop %v1315
    %v1317 = vmul.f32 %v1312, %v1316
    %v1318 = vpack.c.bf16 %v1317, %v1317
    %1319 = vst [vmem:[#allocation3 + $0x4] sm:$0xf] %v1318
    %v1320 = vld [vmem:[#allocation2 + $0x20] sm:$0xff]
    %v1321 = vld [vmem:[#allocation2 + $0x28] sm:$0xff]
    %v1322 = vld [vmem:[#allocation2 + $0x30] sm:$0xff]
    %v1323 = vld [vmem:[#allocation2 + $0x38] sm:$0xff]
    %v1324 = vadd.f32 %v1320, %v1167
    %v1325 = vadd.f32 %v1321, %v1169
    %v1326 = vadd.f32 %v1322, %v1208
    %v1327 = vadd.f32 %v1323, %v1210
    %v1328 = vmul.f32 %v1324, 0.5
    %v1329 = vtanh.pop %v1328
    %v1330 = vmul.f32 %v1329, 0.5
    %v1331 = vadd.f32 %v1330, 0.5
    %v1332 = vmul.f32 %v1325, 0.5
    %v1333 = vtanh.pop %v1332
    %v1334 = vmul.f32 %v1333, 0.5
    %v1335 = vadd.f32 %v1334, 0.5
    %v1336 = vtanh.pop %v1326
    %v1337 = vmul.f32 %v1327, 0.5
    %v1338 = vtanh.pop %v1337
    %v1339 = vmul.f32 %v1338, 0.5
    %v1340 = vadd.f32 %v1339, 0.5
    %v1341 = vmul.f32 %v1335, %v479
    %v1342 = vmul.f32 %v1331, %v1336
    %v1343 = vadd.f32 %v1341, %v1342
    %v1344 = vtanh.pop %v1343
    %v1345 = vmul.f32 %v1340, %v1344
    %v1346 = vpack.c.bf16 %v1345, %v1345
    %1347 = vst [vmem:[#allocation3] sm:$0xf] %v1346
    %v1348 = vld [vmem:[#allocation3] sm:$0xff]
    %v1350 = vunpack.c.l.b16 %v1348
    %v1351 = vunpack.c.h.b16 %v1348
    %v1352 = vpack.c.b16 %v1350, %v1350
    %v1353 = vpack.c.b16 %v1351, %v1351
    %1356 = vmatprep.subr.bf16.mxu0 %v877
    %1357 = vmatpush1.bf16.msra.mxu0 %v876
    %1358 = vmatprep.subr.bf16.mxu0 %v885
    %1359 = vmatpush1.bf16.msra.mxu0 %v884
    %1360 = vmatprep.subr.bf16.mxu0 %v893
    %1361 = vmatpush1.bf16.msra.mxu0 %v892
    %1362 = vmatprep.subr.bf16.mxu0 %v901
    %1363 = vmatpush1.bf16.msra.mxu0 %v900
    %1364 = vmatprep.subr.bf16.mxu0 %v909
    %1365 = vmatpush1.bf16.msra.mxu0 %v908
    %1366 = vmatprep.subr.bf16.mxu0 %v917
    %1367 = vmatpush1.bf16.msra.mxu0 %v916
    %1368 = vmatprep.subr.bf16.mxu0 %v925
    %1369 = vmatpush1.bf16.msra.mxu0 %v924
    %1370 = vmatprep.subr.bf16.mxu0 %v933
    %1371 = vmatpush1.bf16.msra.mxu0 %v932
    %1372 = vmatprep.subr.bf16.mxu0 %v941
    %1373 = vmatpush1.bf16.msra.mxu0 %v940
    %1374 = vmatprep.subr.bf16.mxu0 %v949
    %1375 = vmatpush1.bf16.msra.mxu0 %v948
    %1376 = vmatprep.subr.bf16.mxu0 %v957
    %1377 = vmatpush1.bf16.msra.mxu0 %v956
    %1378 = vmatprep.subr.bf16.mxu0 %v965
    %1379 = vmatpush1.bf16.msra.mxu0 %v964
    %1380 = vmatprep.subr.bf16.mxu0 %v973
    %1381 = vmatpush1.bf16.msra.mxu0 %v972
    %1382 = vmatprep.subr.bf16.mxu0 %v981
    %1383 = vmatpush1.bf16.msra.mxu0 %v980
    %1384 = vmatprep.subr.bf16.mxu0 %v989
    %1385 = vmatpush1.bf16.msra.mxu0 %v988
    %1386 = vmatprep.subr.bf16.mxu0 %v997
    %1387 = vmatpush1.bf16.msra.mxu0 %v996
    %1388 = vmatprep.mubr.bf16.mxu0 %v1353
    %1389 = vmatmul.mubr.bf16.gmra.mrb[0].mxu0 %v1352
    %v1390 = vpop.f32.mrb[0].mxu0
    %v1391 = vadd.f32 0.0, %v1390
    %v1392 = vpop.f32.mrb[0].mxu0
    %v1393 = vadd.f32 0.0, %v1392
    %v1394 = vpop.f32.mrb[0].mxu0
    %v1395 = vpop.f32.mrb[0].mxu0
    %1396 = vdwg.mxu0
    %1397 = vmatprep.subr.bf16.mxu0 %v879
    %1398 = vmatpush1.bf16.msra.mxu0 %v878
    %1399 = vmatprep.subr.bf16.mxu0 %v887
    %1400 = vmatpush1.bf16.msra.mxu0 %v886
    %1401 = vmatprep.subr.bf16.mxu0 %v895
    %1402 = vmatpush1.bf16.msra.mxu0 %v894
    %1403 = vmatprep.subr.bf16.mxu0 %v903
    %1404 = vmatpush1.bf16.msra.mxu0 %v902
    %1405 = vmatprep.subr.bf16.mxu0 %v911
    %1406 = vmatpush1.bf16.msra.mxu0 %v910
    %1407 = vmatprep.subr.bf16.mxu0 %v919
    %1408 = vmatpush1.bf16.msra.mxu0 %v918
    %1409 = vmatprep.subr.bf16.mxu0 %v927
    %1410 = vmatpush1.bf16.msra.mxu0 %v926
    %1411 = vmatprep.subr.bf16.mxu0 %v935
    %1412 = vmatpush1.bf16.msra.mxu0 %v934
    %1413 = vmatprep.subr.bf16.mxu0 %v943
    %1414 = vmatpush1.bf16.msra.mxu0 %v942
    %1415 = vmatprep.subr.bf16.mxu0 %v951
    %1416 = vmatpush1.bf16.msra.mxu0 %v950
    %1417 = vmatprep.subr.bf16.mxu0 %v959
    %1418 = vmatpush1.bf16.msra.mxu0 %v958
    %1419 = vmatprep.subr.bf16.mxu0 %v967
    %1420 = vmatpush1.bf16.msra.mxu0 %v966
    %1421 = vmatprep.subr.bf16.mxu0 %v975
    %1422 = vmatpush1.bf16.msra.mxu0 %v974
    %1423 = vmatprep.subr.bf16.mxu0 %v983
    %1424 = vmatpush1.bf16.msra.mxu0 %v982
    %1425 = vmatprep.subr.bf16.mxu0 %v991
    %1426 = vmatpush1.bf16.msra.mxu0 %v990
    %1427 = vmatprep.subr.bf16.mxu0 %v999
    %1428 = vmatpush1.bf16.msra.mxu0 %v998
    %1429 = vmatprep.mubr.bf16.mxu0 %v1353
    %1430 = vmatmul.mubr.bf16.gmra.mrb[0].mxu0 %v1352
    %v1431 = vpop.f32.mrb[0].mxu0
    %v1432 = vadd.f32 0.0, %v1431
    %v1433 = vpop.f32.mrb[0].mxu0
    %v1434 = vadd.f32 0.0, %v1433
    %v1435 = vpop.f32.mrb[0].mxu0
    %v1436 = vpop.f32.mrb[0].mxu0
    %1437 = vdwg.mxu0
    %1438 = vmatprep.subr.bf16.mxu0 %v881
    %1439 = vmatpush1.bf16.msra.mxu0 %v880
    %1440 = vmatprep.subr.bf16.mxu0 %v889
    %1441 = vmatpush1.bf16.msra.mxu0 %v888
    %1442 = vmatprep.subr.bf16.mxu0 %v897
    %1443 = vmatpush1.bf16.msra.mxu0 %v896
    %1444 = vmatprep.subr.bf16.mxu0 %v905
    %1445 = vmatpush1.bf16.msra.mxu0 %v904
    %1446 = vmatprep.subr.bf16.mxu0 %v913
    %1447 = vmatpush1.bf16.msra.mxu0 %v912
    %1448 = vmatprep.subr.bf16.mxu0 %v921
    %1449 = vmatpush1.bf16.msra.mxu0 %v920
    %1450 = vmatprep.subr.bf16.mxu0 %v929
    %1451 = vmatpush1.bf16.msra.mxu0 %v928
    %1452 = vmatprep.subr.bf16.mxu0 %v937
    %1453 = vmatpush1.bf16.msra.mxu0 %v936
    %1454 = vmatprep.subr.bf16.mxu0 %v945
    %1455 = vmatpush1.bf16.msra.mxu0 %v944
    %1456 = vmatprep.subr.bf16.mxu0 %v953
    %1457 = vmatpush1.bf16.msra.mxu0 %v952
    %1458 = vmatprep.subr.bf16.mxu0 %v961
    %1459 = vmatpush1.bf16.msra.mxu0 %v960
    %1460 = vmatprep.subr.bf16.mxu0 %v969
    %1461 = vmatpush1.bf16.msra.mxu0 %v968
    %1462 = vmatprep.subr.bf16.mxu0 %v977
    %1463 = vmatpush1.bf16.msra.mxu0 %v976
    %1464 = vmatprep.subr.bf16.mxu0 %v985
    %1465 = vmatpush1.bf16.msra.mxu0 %v984
    %1466 = vmatprep.subr.bf16.mxu0 %v993
    %1467 = vmatpush1.bf16.msra.mxu0 %v992
    %1468 = vmatprep.subr.bf16.mxu0 %v1001
    %1469 = vmatpush1.bf16.msra.mxu0 %v1000
    %1470 = vmatprep.mubr.bf16.mxu0 %v1353
    %1471 = vmatmul.mubr.bf16.gmra.mrb[0].mxu0 %v1352
    %v1472 = vpop.f32.mrb[0].mxu0
    %v1473 = vadd.f32 0.0, %v1472
    %v1474 = vpop.f32.mrb[0].mxu0
    %v1475 = vadd.f32 0.0, %v1474
    %v1476 = vpop.f32.mrb[0].mxu0
    %v1477 = vpop.f32.mrb[0].mxu0
    %1478 = vdwg.mxu0
    %1479 = vmatprep.subr.bf16.mxu0 %v883
    %1480 = vmatpush1.bf16.msra.mxu0 %v882
    %1481 = vmatprep.subr.bf16.mxu0 %v891
    %1482 = vmatpush1.bf16.msra.mxu0 %v890
    %1483 = vmatprep.subr.bf16.mxu0 %v899
    %1484 = vmatpush1.bf16.msra.mxu0 %v898
    %1485 = vmatprep.subr.bf16.mxu0 %v907
    %1486 = vmatpush1.bf16.msra.mxu0 %v906
    %1487 = vmatprep.subr.bf16.mxu0 %v915
    %1488 = vmatpush1.bf16.msra.mxu0 %v914
    %1489 = vmatprep.subr.bf16.mxu0 %v923
    %1490 = vmatpush1.bf16.msra.mxu0 %v922
    %1491 = vmatprep.subr.bf16.mxu0 %v931
    %1492 = vmatpush1.bf16.msra.mxu0 %v930
    %1493 = vmatprep.subr.bf16.mxu0 %v939
    %1494 = vmatpush1.bf16.msra.mxu0 %v938
    %1495 = vmatprep.subr.bf16.mxu0 %v947
    %1496 = vmatpush1.bf16.msra.mxu0 %v946
    %1497 = vmatprep.subr.bf16.mxu0 %v955
    %1498 = vmatpush1.bf16.msra.mxu0 %v954
    %1499 = vmatprep.subr.bf16.mxu0 %v963
    %1500 = vmatpush1.bf16.msra.mxu0 %v962
    %1501 = vmatprep.subr.bf16.mxu0 %v971
    %1502 = vmatpush1.bf16.msra.mxu0 %v970
    %1503 = vmatprep.subr.bf16.mxu0 %v979
    %1504 = vmatpush1.bf16.msra.mxu0 %v978
    %1505 = vmatprep.subr.bf16.mxu0 %v987
    %1506 = vmatpush1.bf16.msra.mxu0 %v986
    %1507 = vmatprep.subr.bf16.mxu0 %v995
    %1508 = vmatpush1.bf16.msra.mxu0 %v994
    %1509 = vmatprep.subr.bf16.mxu0 %v1003
    %1510 = vmatpush1.bf16.msra.mxu0 %v1002
    %1511 = vmatprep.mubr.bf16.mxu0 %v1353
    %1512 = vmatmul.mubr.bf16.gmra.mrb[0].mxu0 %v1352
    %v1513 = vpop.f32.mrb[0].mxu0
    %v1514 = vadd.f32 0.0, %v1513
    %v1515 = vpop.f32.mrb[0].mxu0
    %v1516 = vadd.f32 0.0, %v1515
    %v1517 = vpop.f32.mrb[0].mxu0
    %v1518 = vpop.f32.mrb[0].mxu0
    %1519 = vdwg.mxu0
    %v1520 = vadd.f32 %v1473, %v442
    %v1521 = vadd.f32 %v1475, %v446
    %v1522 = vadd.f32 %v1514, %v450
    %v1523 = vadd.f32 %v1516, %v454
    %v1524 = vmul.f32 %v1520, 0.5
    %v1525 = vtanh.pop %v1524
    %v1526 = vmul.f32 %v1525, 0.5
    %v1527 = vadd.f32 %v1526, 0.5
    %v1528 = vmul.f32 %v1521, 0.5
    %v1529 = vtanh.pop %v1528
    %v1530 = vmul.f32 %v1529, 0.5
    %v1531 = vadd.f32 %v1530, 0.5
    %v1532 = vtanh.pop %v1522
    %v1533 = vmul.f32 %v1523, 0.5
    %v1534 = vtanh.pop %v1533
    %v1535 = vmul.f32 %v1534, 0.5
    %v1536 = vadd.f32 %v1535, 0.5
    %v1537 = vmul.f32 %v1531, %v1315
    %v1538 = vmul.f32 %v1527, %v1532
    %v1539 = vadd.f32 %v1537, %v1538
    %v1540 = vtanh.pop %v1539
    %v1541 = vmul.f32 %v1536, %v1540
    %v1542 = vpack.c.bf16 %v1541, %v1541
    %1543 = vst [vmem:[#allocation3 + $0x4] sm:$0xf] %v1542
    %v1544 = vld [vmem:[#allocation2 + $0x40] sm:$0xff]
    %v1545 = vld [vmem:[#allocation2 + $0x48] sm:$0xff]
    %v1546 = vld [vmem:[#allocation2 + $0x50] sm:$0xff]
    %v1547 = vld [vmem:[#allocation2 + $0x58] sm:$0xff]
    %v1548 = vadd.f32 %v1544, %v1391
    %v1549 = vadd.f32 %v1545, %v1393
    %v1550 = vadd.f32 %v1546, %v1432
    %v1551 = vadd.f32 %v1547, %v1434
    %v1552 = vmul.f32 %v1548, 0.5
    %v1553 = vtanh.pop %v1552
    %v1554 = vmul.f32 %v1553, 0.5
    %v1555 = vadd.f32 %v1554, 0.5
    %v1556 = vmul.f32 %v1549, 0.5
    %v1557 = vtanh.pop %v1556
    %v1558 = vmul.f32 %v1557, 0.5
    %v1559 = vadd.f32 %v1558, 0.5
    %v1560 = vtanh.pop %v1550
    %v1561 = vmul.f32 %v1551, 0.5
    %v1562 = vtanh.pop %v1561
    %v1563 = vmul.f32 %v1562, 0.5
    %v1564 = vadd.f32 %v1563, 0.5
    %v1565 = vmul.f32 %v1559, %v1343
    %v1566 = vmul.f32 %v1555, %v1560
    %v1567 = vadd.f32 %v1565, %v1566
    %v1568 = vtanh.pop %v1567
    %v1569 = vmul.f32 %v1564, %v1568
    %v1570 = vpack.c.bf16 %v1569, %v1569
    %1571 = vst [vmem:[#allocation3] sm:$0xf] %v1570
    %v1572 = vld [vmem:[#allocation3] sm:$0xff]
    %v1574 = vunpack.c.l.b16 %v1572
    %v1575 = vunpack.c.h.b16 %v1572
    %v1576 = vpack.c.b16 %v1574, %v1574
    %v1577 = vpack.c.b16 %v1575, %v1575
    %1580 = vmatprep.subr.bf16.mxu0 %v877
    %1581 = vmatpush1.bf16.msra.mxu0 %v876
    %1582 = vmatprep.subr.bf16.mxu0 %v885
    %1583 = vmatpush1.bf16.msra.mxu0 %v884
    %1584 = vmatprep.subr.bf16.mxu0 %v893
    %1585 = vmatpush1.bf16.msra.mxu0 %v892
    %1586 = vmatprep.subr.bf16.mxu0 %v901
    %1587 = vmatpush1.bf16.msra.mxu0 %v900
    %1588 = vmatprep.subr.bf16.mxu0 %v909
    %1589 = vmatpush1.bf16.msra.mxu0 %v908
    %1590 = vmatprep.subr.bf16.mxu0 %v917
    %1591 = vmatpush1.bf16.msra.mxu0 %v916
    %1592 = vmatprep.subr.bf16.mxu0 %v925
    %1593 = vmatpush1.bf16.msra.mxu0 %v924
    %1594 = vmatprep.subr.bf16.mxu0 %v933
    %1595 = vmatpush1.bf16.msra.mxu0 %v932
    %1596 = vmatprep.subr.bf16.mxu0 %v941
    %1597 = vmatpush1.bf16.msra.mxu0 %v940
    %1598 = vmatprep.subr.bf16.mxu0 %v949
    %1599 = vmatpush1.bf16.msra.mxu0 %v948
    %1600 = vmatprep.subr.bf16.mxu0 %v957
    %1601 = vmatpush1.bf16.msra.mxu0 %v956
    %1602 = vmatprep.subr.bf16.mxu0 %v965
    %1603 = vmatpush1.bf16.msra.mxu0 %v964
    %1604 = vmatprep.subr.bf16.mxu0 %v973
    %1605 = vmatpush1.bf16.msra.mxu0 %v972
    %1606 = vmatprep.subr.bf16.mxu0 %v981
    %1607 = vmatpush1.bf16.msra.mxu0 %v980
    %1608 = vmatprep.subr.bf16.mxu0 %v989
    %1609 = vmatpush1.bf16.msra.mxu0 %v988
    %1610 = vmatprep.subr.bf16.mxu0 %v997
    %1611 = vmatpush1.bf16.msra.mxu0 %v996
    %1612 = vmatprep.mubr.bf16.mxu0 %v1577
    %1613 = vmatmul.mubr.bf16.gmra.mrb[0].mxu0 %v1576
    %v1614 = vpop.f32.mrb[0].mxu0
    %v1615 = vadd.f32 0.0, %v1614
    %v1616 = vpop.f32.mrb[0].mxu0
    %v1617 = vadd.f32 0.0, %v1616
    %v1618 = vpop.f32.mrb[0].mxu0
    %v1619 = vpop.f32.mrb[0].mxu0
    %1620 = vdwg.mxu0
    %1621 = vmatprep.subr.bf16.mxu0 %v879
    %1622 = vmatpush1.bf16.msra.mxu0 %v878
    %1623 = vmatprep.subr.bf16.mxu0 %v887
    %1624 = vmatpush1.bf16.msra.mxu0 %v886
    %1625 = vmatprep.subr.bf16.mxu0 %v895
    %1626 = vmatpush1.bf16.msra.mxu0 %v894
    %1627 = vmatprep.subr.bf16.mxu0 %v903
    %1628 = vmatpush1.bf16.msra.mxu0 %v902
    %1629 = vmatprep.subr.bf16.mxu0 %v911
    %1630 = vmatpush1.bf16.msra.mxu0 %v910
    %1631 = vmatprep.subr.bf16.mxu0 %v919
    %1632 = vmatpush1.bf16.msra.mxu0 %v918
    %1633 = vmatprep.subr.bf16.mxu0 %v927
    %1634 = vmatpush1.bf16.msra.mxu0 %v926
    %1635 = vmatprep.subr.bf16.mxu0 %v935
    %1636 = vmatpush1.bf16.msra.mxu0 %v934
    %1637 = vmatprep.subr.bf16.mxu0 %v943
    %1638 = vmatpush1.bf16.msra.mxu0 %v942
    %1639 = vmatprep.subr.bf16.mxu0 %v951
    %1640 = vmatpush1.bf16.msra.mxu0 %v950
    %1641 = vmatprep.subr.bf16.mxu0 %v959
    %1642 = vmatpush1.bf16.msra.mxu0 %v958
    %1643 = vmatprep.subr.bf16.mxu0 %v967
    %1644 = vmatpush1.bf16.msra.mxu0 %v966
    %1645 = vmatprep.subr.bf16.mxu0 %v975
    %1646 = vmatpush1.bf16.msra.mxu0 %v974
    %1647 = vmatprep.subr.bf16.mxu0 %v983
    %1648 = vmatpush1.bf16.msra.mxu0 %v982
    %1649 = vmatprep.subr.bf16.mxu0 %v991
    %1650 = vmatpush1.bf16.msra.mxu0 %v990
    %1651 = vmatprep.subr.bf16.mxu0 %v999
    %1652 = vmatpush1.bf16.msra.mxu0 %v998
    %1653 = vmatprep.mubr.bf16.mxu0 %v1577
    %1654 = vmatmul.mubr.bf16.gmra.mrb[0].mxu0 %v1576
    %v1655 = vpop.f32.mrb[0].mxu0
    %v1656 = vadd.f32 0.0, %v1655
    %v1657 = vpop.f32.mrb[0].mxu0
    %v1658 = vadd.f32 0.0, %v1657
    %v1659 = vpop.f32.mrb[0].mxu0
    %v1660 = vpop.f32.mrb[0].mxu0
    %1661 = vdwg.mxu0
    %1662 = vmatprep.subr.bf16.mxu0 %v881
    %1663 = vmatpush1.bf16.msra.mxu0 %v880
    %1664 = vmatprep.subr.bf16.mxu0 %v889
    %1665 = vmatpush1.bf16.msra.mxu0 %v888
    %1666 = vmatprep.subr.bf16.mxu0 %v897
    %1667 = vmatpush1.bf16.msra.mxu0 %v896
    %1668 = vmatprep.subr.bf16.mxu0 %v905
    %1669 = vmatpush1.bf16.msra.mxu0 %v904
    %1670 = vmatprep.subr.bf16.mxu0 %v913
    %1671 = vmatpush1.bf16.msra.mxu0 %v912
    %1672 = vmatprep.subr.bf16.mxu0 %v921
    %1673 = vmatpush1.bf16.msra.mxu0 %v920
    %1674 = vmatprep.subr.bf16.mxu0 %v929
    %1675 = vmatpush1.bf16.msra.mxu0 %v928
    %1676 = vmatprep.subr.bf16.mxu0 %v937
    %1677 = vmatpush1.bf16.msra.mxu0 %v936
    %1678 = vmatprep.subr.bf16.mxu0 %v945
    %1679 = vmatpush1.bf16.msra.mxu0 %v944
    %1680 = vmatprep.subr.bf16.mxu0 %v953
    %1681 = vmatpush1.bf16.msra.mxu0 %v952
    %1682 = vmatprep.subr.bf16.mxu0 %v961
    %1683 = vmatpush1.bf16.msra.mxu0 %v960
    %1684 = vmatprep.subr.bf16.mxu0 %v969
    %1685 = vmatpush1.bf16.msra.mxu0 %v968
    %1686 = vmatprep.subr.bf16.mxu0 %v977
    %1687 = vmatpush1.bf16.msra.mxu0 %v976
    %1688 = vmatprep.subr.bf16.mxu0 %v985
    %1689 = vmatpush1.bf16.msra.mxu0 %v984
    %1690 = vmatprep.subr.bf16.mxu0 %v993
    %1691 = vmatpush1.bf16.msra.mxu0 %v992
    %1692 = vmatprep.subr.bf16.mxu0 %v1001
    %1693 = vmatpush1.bf16.msra.mxu0 %v1000
    %1694 = vmatprep.mubr.bf16.mxu0 %v1577
    %1695 = vmatmul.mubr.bf16.gmra.mrb[0].mxu0 %v1576
    %v1696 = vpop.f32.mrb[0].mxu0
    %v1697 = vadd.f32 0.0, %v1696
    %v1698 = vpop.f32.mrb[0].mxu0
    %v1699 = vadd.f32 0.0, %v1698
    %v1700 = vpop.f32.mrb[0].mxu0
    %v1701 = vpop.f32.mrb[0].mxu0
    %1702 = vdwg.mxu0
    %1703 = vmatprep.subr.bf16.mxu0 %v883
    %1704 = vmatpush1.bf16.msra.mxu0 %v882
    %1705 = vmatprep.subr.bf16.mxu0 %v891
    %1706 = vmatpush1.bf16.msra.mxu0 %v890
    %1707 = vmatprep.subr.bf16.mxu0 %v899
    %1708 = vmatpush1.bf16.msra.mxu0 %v898
    %1709 = vmatprep.subr.bf16.mxu0 %v907
    %1710 = vmatpush1.bf16.msra.mxu0 %v906
    %1711 = vmatprep.subr.bf16.mxu0 %v915
    %1712 = vmatpush1.bf16.msra.mxu0 %v914
    %1713 = vmatprep.subr.bf16.mxu0 %v923
    %1714 = vmatpush1.bf16.msra.mxu0 %v922
    %1715 = vmatprep.subr.bf16.mxu0 %v931
    %1716 = vmatpush1.bf16.msra.mxu0 %v930
    %1717 = vmatprep.subr.bf16.mxu0 %v939
    %1718 = vmatpush1.bf16.msra.mxu0 %v938
    %1719 = vmatprep.subr.bf16.mxu0 %v947
    %1720 = vmatpush1.bf16.msra.mxu0 %v946
    %1721 = vmatprep.subr.bf16.mxu0 %v955
    %1722 = vmatpush1.bf16.msra.mxu0 %v954
    %1723 = vmatprep.subr.bf16.mxu0 %v963
    %1724 = vmatpush1.bf16.msra.mxu0 %v962
    %1725 = vmatprep.subr.bf16.mxu0 %v971
    %1726 = vmatpush1.bf16.msra.mxu0 %v970
    %1727 = vmatprep.subr.bf16.mxu0 %v979
    %1728 = vmatpush1.bf16.msra.mxu0 %v978
    %1729 = vmatprep.subr.bf16.mxu0 %v987
    %1730 = vmatpush1.bf16.msra.mxu0 %v986
    %1731 = vmatprep.subr.bf16.mxu0 %v995
    %1732 = vmatpush1.bf16.msra.mxu0 %v994
    %1733 = vmatprep.subr.bf16.mxu0 %v1003
    %1734 = vmatpush1.bf16.msra.mxu0 %v1002
    %1735 = vmatprep.mubr.bf16.mxu0 %v1577
    %1736 = vmatmul.mubr.bf16.gmra.mrb[0].mxu0 %v1576
    %v1737 = vpop.f32.mrb[0].mxu0
    %v1738 = vadd.f32 0.0, %v1737
    %v1739 = vpop.f32.mrb[0].mxu0
    %v1740 = vadd.f32 0.0, %v1739
    %v1741 = vpop.f32.mrb[0].mxu0
    %v1742 = vpop.f32.mrb[0].mxu0
    %1743 = vdwg.mxu0
    %v1744 = vadd.f32 %v1697, %v442
    %v1745 = vadd.f32 %v1699, %v446
    %v1746 = vadd.f32 %v1738, %v450
    %v1747 = vadd.f32 %v1740, %v454
    %v1748 = vmul.f32 %v1744, 0.5
    %v1749 = vtanh.pop %v1748
    %v1750 = vmul.f32 %v1749, 0.5
    %v1751 = vadd.f32 %v1750, 0.5
    %v1752 = vmul.f32 %v1745, 0.5
    %v1753 = vtanh.pop %v1752
    %v1754 = vmul.f32 %v1753, 0.5
    %v1755 = vadd.f32 %v1754, 0.5
    %v1756 = vtanh.pop %v1746
    %v1757 = vmul.f32 %v1747, 0.5
    %v1758 = vtanh.pop %v1757
    %v1759 = vmul.f32 %v1758, 0.5
    %v1760 = vadd.f32 %v1759, 0.5
    %v1761 = vmul.f32 %v1755, %v1539
    %v1762 = vmul.f32 %v1751, %v1756
    %v1763 = vadd.f32 %v1761, %v1762
    %v1764 = vtanh.pop %v1763
    %v1765 = vmul.f32 %v1760, %v1764
    %v1766 = vpack.c.bf16 %v1765, %v1765
    %1767 = vst [vmem:[#allocation3 + $0x4] sm:$0xf] %v1766
    %v1768 = vld [vmem:[#allocation2 + $0x60] sm:$0xff]
    %v1769 = vld [vmem:[#allocation2 + $0x68] sm:$0xff]
    %v1770 = vld [vmem:[#allocation2 + $0x70] sm:$0xff]
    %v1771 = vld [vmem:[#allocation2 + $0x78] sm:$0xff]
    %v1772 = vadd.f32 %v1768, %v1615
    %v1773 = vadd.f32 %v1769, %v1617
    %v1774 = vadd.f32 %v1770, %v1656
    %v1775 = vadd.f32 %v1771, %v1658
    %v1776 = vmul.f32 %v1772, 0.5
    %v1777 = vtanh.pop %v1776
    %v1778 = vmul.f32 %v1777, 0.5
    %v1779 = vadd.f32 %v1778, 0.5
    %v1780 = vmul.f32 %v1773, 0.5
    %v1781 = vtanh.pop %v1780
    %v1782 = vmul.f32 %v1781, 0.5
    %v1783 = vadd.f32 %v1782, 0.5
    %v1784 = vtanh.pop %v1774
    %v1785 = vmul.f32 %v1775, 0.5
    %v1786 = vtanh.pop %v1785
    %v1787 = vmul.f32 %v1786, 0.5
    %v1788 = vadd.f32 %v1787, 0.5
    %v1789 = vmul.f32 %v1783, %v1567
    %v1790 = vmul.f32 %v1779, %v1784
    %v1791 = vadd.f32 %v1789, %v1790
    %v1792 = vtanh.pop %v1791
    %v1793 = vmul.f32 %v1788, %v1792
    %v1794 = vpack.c.bf16 %v1793, %v1793
    %1795 = vst [vmem:[#allocation3] sm:$0xf] %v1794
    %v1796 = vld [vmem:[#allocation3] sm:$0xff]
    %v1798 = vunpack.c.l.b16 %v1796
    %v1799 = vunpack.c.h.b16 %v1796
    %v1800 = vpack.c.b16 %v1798, %v1798
    %v1801 = vpack.c.b16 %v1799, %v1799
    %1804 = vmatprep.subr.bf16.mxu0 %v877
    %1805 = vmatpush1.bf16.msra.mxu0 %v876
    %1806 = vmatprep.subr.bf16.mxu0 %v885
    %1807 = vmatpush1.bf16.msra.mxu0 %v884
    %1808 = vmatprep.subr.bf16.mxu0 %v893
    %1809 = vmatpush1.bf16.msra.mxu0 %v892
    %1810 = vmatprep.subr.bf16.mxu0 %v901
    %1811 = vmatpush1.bf16.msra.mxu0 %v900
    %1812 = vmatprep.subr.bf16.mxu0 %v909
    %1813 = vmatpush1.bf16.msra.mxu0 %v908
    %1814 = vmatprep.subr.bf16.mxu0 %v917
    %1815 = vmatpush1.bf16.msra.mxu0 %v916
    %1816 = vmatprep.subr.bf16.mxu0 %v925
    %1817 = vmatpush1.bf16.msra.mxu0 %v924
    %1818 = vmatprep.subr.bf16.mxu0 %v933
    %1819 = vmatpush1.bf16.msra.mxu0 %v932
    %1820 = vmatprep.subr.bf16.mxu0 %v941
    %1821 = vmatpush1.bf16.msra.mxu0 %v940
    %1822 = vmatprep.subr.bf16.mxu0 %v949
    %1823 = vmatpush1.bf16.msra.mxu0 %v948
    %1824 = vmatprep.subr.bf16.mxu0 %v957
    %1825 = vmatpush1.bf16.msra.mxu0 %v956
    %1826 = vmatprep.subr.bf16.mxu0 %v965
    %1827 = vmatpush1.bf16.msra.mxu0 %v964
    %1828 = vmatprep.subr.bf16.mxu0 %v973
    %1829 = vmatpush1.bf16.msra.mxu0 %v972
    %1830 = vmatprep.subr.bf16.mxu0 %v981
    %1831 = vmatpush1.bf16.msra.mxu0 %v980
    %1832 = vmatprep.subr.bf16.mxu0 %v989
    %1833 = vmatpush1.bf16.msra.mxu0 %v988
    %1834 = vmatprep.subr.bf16.mxu0 %v997
    %1835 = vmatpush1.bf16.msra.mxu0 %v996
    %1836 = vmatprep.mubr.bf16.mxu0 %v1801
    %1837 = vmatmul.mubr.bf16.gmra.mrb[0].mxu0 %v1800
    %v1838 = vpop.f32.mrb[0].mxu0
    %v1839 = vadd.f32 0.0, %v1838
    %v1840 = vpop.f32.mrb[0].mxu0
    %v1841 = vadd.f32 0.0, %v1840
    %v1842 = vpop.f32.mrb[0].mxu0
    %v1843 = vpop.f32.mrb[0].mxu0
    %1844 = vdwg.mxu0
    %1845 = vmatprep.subr.bf16.mxu0 %v879
    %1846 = vmatpush1.bf16.msra.mxu0 %v878
    %1847 = vmatprep.subr.bf16.mxu0 %v887
    %1848 = vmatpush1.bf16.msra.mxu0 %v886
    %1849 = vmatprep.subr.bf16.mxu0 %v895
    %1850 = vmatpush1.bf16.msra.mxu0 %v894
    %1851 = vmatprep.subr.bf16.mxu0 %v903
    %1852 = vmatpush1.bf16.msra.mxu0 %v902
    %1853 = vmatprep.subr.bf16.mxu0 %v911
    %1854 = vmatpush1.bf16.msra.mxu0 %v910
    %1855 = vmatprep.subr.bf16.mxu0 %v919
    %1856 = vmatpush1.bf16.msra.mxu0 %v918
    %1857 = vmatprep.subr.bf16.mxu0 %v927
    %1858 = vmatpush1.bf16.msra.mxu0 %v926
    %1859 = vmatprep.subr.bf16.mxu0 %v935
    %1860 = vmatpush1.bf16.msra.mxu0 %v934
    %1861 = vmatprep.subr.bf16.mxu0 %v943
    %1862 = vmatpush1.bf16.msra.mxu0 %v942
    %1863 = vmatprep.subr.bf16.mxu0 %v951
    %1864 = vmatpush1.bf16.msra.mxu0 %v950
    %1865 = vmatprep.subr.bf16.mxu0 %v959
    %1866 = vmatpush1.bf16.msra.mxu0 %v958
    %1867 = vmatprep.subr.bf16.mxu0 %v967
    %1868 = vmatpush1.bf16.msra.mxu0 %v966
    %1869 = vmatprep.subr.bf16.mxu0 %v975
    %1870 = vmatpush1.bf16.msra.mxu0 %v974
    %1871 = vmatprep.subr.bf16.mxu0 %v983
    %1872 = vmatpush1.bf16.msra.mxu0 %v982
    %1873 = vmatprep.subr.bf16.mxu0 %v991
    %1874 = vmatpush1.bf16.msra.mxu0 %v990
    %1875 = vmatprep.subr.bf16.mxu0 %v999
    %1876 = vmatpush1.bf16.msra.mxu0 %v998
    %1877 = vmatprep.mubr.bf16.mxu0 %v1801
    %1878 = vmatmul.mubr.bf16.gmra.mrb[0].mxu0 %v1800
    %v1879 = vpop.f32.mrb[0].mxu0
    %v1880 = vadd.f32 0.0, %v1879
    %v1881 = vpop.f32.mrb[0].mxu0
    %v1882 = vadd.f32 0.0, %v1881
    %v1883 = vpop.f32.mrb[0].mxu0
    %v1884 = vpop.f32.mrb[0].mxu0
    %1885 = vdwg.mxu0
    %1886 = vmatprep.subr.bf16.mxu0 %v881
    %1887 = vmatpush1.bf16.msra.mxu0 %v880
    %1888 = vmatprep.subr.bf16.mxu0 %v889
    %1889 = vmatpush1.bf16.msra.mxu0 %v888
    %1890 = vmatprep.subr.bf16.mxu0 %v897
    %1891 = vmatpush1.bf16.msra.mxu0 %v896
    %1892 = vmatprep.subr.bf16.mxu0 %v905
    %1893 = vmatpush1.bf16.msra.mxu0 %v904
    %1894 = vmatprep.subr.bf16.mxu0 %v913
    %1895 = vmatpush1.bf16.msra.mxu0 %v912
    %1896 = vmatprep.subr.bf16.mxu0 %v921
    %1897 = vmatpush1.bf16.msra.mxu0 %v920
    %1898 = vmatprep.subr.bf16.mxu0 %v929
    %1899 = vmatpush1.bf16.msra.mxu0 %v928
    %1900 = vmatprep.subr.bf16.mxu0 %v937
    %1901 = vmatpush1.bf16.msra.mxu0 %v936
    %1902 = vmatprep.subr.bf16.mxu0 %v945
    %1903 = vmatpush1.bf16.msra.mxu0 %v944
    %1904 = vmatprep.subr.bf16.mxu0 %v953
    %1905 = vmatpush1.bf16.msra.mxu0 %v952
    %1906 = vmatprep.subr.bf16.mxu0 %v961
    %1907 = vmatpush1.bf16.msra.mxu0 %v960
    %1908 = vmatprep.subr.bf16.mxu0 %v969
    %1909 = vmatpush1.bf16.msra.mxu0 %v968
    %1910 = vmatprep.subr.bf16.mxu0 %v977
    %1911 = vmatpush1.bf16.msra.mxu0 %v976
    %1912 = vmatprep.subr.bf16.mxu0 %v985
    %1913 = vmatpush1.bf16.msra.mxu0 %v984
    %1914 = vmatprep.subr.bf16.mxu0 %v993
    %1915 = vmatpush1.bf16.msra.mxu0 %v992
    %1916 = vmatprep.subr.bf16.mxu0 %v1001
    %1917 = vmatpush1.bf16.msra.mxu0 %v1000
    %1918 = vmatprep.mubr.bf16.mxu0 %v1801
    %1919 = vmatmul.mubr.bf16.gmra.mrb[0].mxu0 %v1800
    %v1920 = vpop.f32.mrb[0].mxu0
    %v1921 = vadd.f32 0.0, %v1920
    %v1922 = vpop.f32.mrb[0].mxu0
    %v1923 = vadd.f32 0.0, %v1922
    %v1924 = vpop.f32.mrb[0].mxu0
    %v1925 = vpop.f32.mrb[0].mxu0
    %1926 = vdwg.mxu0
    %1927 = vmatprep.subr.bf16.mxu0 %v883
    %1928 = vmatpush1.bf16.msra.mxu0 %v882
    %1929 = vmatprep.subr.bf16.mxu0 %v891
    %1930 = vmatpush1.bf16.msra.mxu0 %v890
    %1931 = vmatprep.subr.bf16.mxu0 %v899
    %1932 = vmatpush1.bf16.msra.mxu0 %v898
    %1933 = vmatprep.subr.bf16.mxu0 %v907
    %1934 = vmatpush1.bf16.msra.mxu0 %v906
    %1935 = vmatprep.subr.bf16.mxu0 %v915
    %1936 = vmatpush1.bf16.msra.mxu0 %v914
    %1937 = vmatprep.subr.bf16.mxu0 %v923
    %1938 = vmatpush1.bf16.msra.mxu0 %v922
    %1939 = vmatprep.subr.bf16.mxu0 %v931
    %1940 = vmatpush1.bf16.msra.mxu0 %v930
    %1941 = vmatprep.subr.bf16.mxu0 %v939
    %1942 = vmatpush1.bf16.msra.mxu0 %v938
    %1943 = vmatprep.subr.bf16.mxu0 %v947
    %1944 = vmatpush1.bf16.msra.mxu0 %v946
    %1945 = vmatprep.subr.bf16.mxu0 %v955
    %1946 = vmatpush1.bf16.msra.mxu0 %v954
    %1947 = vmatprep.subr.bf16.mxu0 %v963
    %1948 = vmatpush1.bf16.msra.mxu0 %v962
    %1949 = vmatprep.subr.bf16.mxu0 %v971
    %1950 = vmatpush1.bf16.msra.mxu0 %v970
    %1951 = vmatprep.subr.bf16.mxu0 %v979
    %1952 = vmatpush1.bf16.msra.mxu0 %v978
    %1953 = vmatprep.subr.bf16.mxu0 %v987
    %1954 = vmatpush1.bf16.msra.mxu0 %v986
    %1955 = vmatprep.subr.bf16.mxu0 %v995
    %1956 = vmatpush1.bf16.msra.mxu0 %v994
    %1957 = vmatprep.subr.bf16.mxu0 %v1003
    %1958 = vmatpush1.bf16.msra.mxu0 %v1002
    %1959 = vmatprep.mubr.bf16.mxu0 %v1801
    %1960 = vmatmul.mubr.bf16.gmra.mrb[0].mxu0 %v1800
    %v1961 = vpop.f32.mrb[0].mxu0
    %v1962 = vadd.f32 0.0, %v1961
    %v1963 = vpop.f32.mrb[0].mxu0
    %v1964 = vadd.f32 0.0, %v1963
    %v1965 = vpop.f32.mrb[0].mxu0
    %v1966 = vpop.f32.mrb[0].mxu0
    %1967 = vdwg.mxu0
    %v1968 = vadd.f32 %v1921, %v442
    %v1969 = vadd.f32 %v1923, %v446
    %v1970 = vadd.f32 %v1962, %v450
    %v1971 = vadd.f32 %v1964, %v454
    %v1972 = vmul.f32 %v1968, 0.5
    %v1973 = vtanh.pop %v1972
    %v1974 = vmul.f32 %v1973, 0.5
    %v1975 = vadd.f32 %v1974, 0.5
    %v1976 = vmul.f32 %v1969, 0.5
    %v1977 = vtanh.pop %v1976
    %v1978 = vmul.f32 %v1977, 0.5
    %v1979 = vadd.f32 %v1978, 0.5
    %v1980 = vtanh.pop %v1970
    %v1981 = vmul.f32 %v1971, 0.5
    %v1982 = vtanh.pop %v1981
    %v1983 = vmul.f32 %v1982, 0.5
    %v1984 = vadd.f32 %v1983, 0.5
    %v1985 = vmul.f32 %v1979, %v1763
    %v1986 = vmul.f32 %v1975, %v1980
    %v1987 = vadd.f32 %v1985, %v1986
    %v1988 = vtanh.pop %v1987
    %v1989 = vmul.f32 %v1984, %v1988
    %v1990 = vpack.c.bf16 %v1989, %v1989
    %1991 = vst [vmem:[#allocation3 + $0x4] sm:$0xf] %v1990
    %v1992 = vld [vmem:[#allocation2 + $0x80] sm:$0xff]
    %v1993 = vld [vmem:[#allocation2 + $0x88] sm:$0xff]
    %v1994 = vld [vmem:[#allocation2 + $0x90] sm:$0xff]
    %v1995 = vld [vmem:[#allocation2 + $0x98] sm:$0xff]
    %v1996 = vadd.f32 %v1992, %v1839
    %v1997 = vadd.f32 %v1993, %v1841
    %v1998 = vadd.f32 %v1994, %v1880
    %v1999 = vadd.f32 %v1995, %v1882
    %v2000 = vmul.f32 %v1996, 0.5
    %v2001 = vtanh.pop %v2000
    %v2002 = vmul.f32 %v2001, 0.5
    %v2003 = vadd.f32 %v2002, 0.5
    %v2004 = vmul.f32 %v1997, 0.5
    %v2005 = vtanh.pop %v2004
    %v2006 = vmul.f32 %v2005, 0.5
    %v2007 = vadd.f32 %v2006, 0.5
    %v2008 = vtanh.pop %v1998
    %v2009 = vmul.f32 %v1999, 0.5
    %v2010 = vtanh.pop %v2009
    %v2011 = vmul.f32 %v2010, 0.5
    %v2012 = vadd.f32 %v2011, 0.5
    %v2013 = vmul.f32 %v2007, %v1791
    %v2014 = vmul.f32 %v2003, %v2008
    %v2015 = vadd.f32 %v2013, %v2014
    %v2016 = vtanh.pop %v2015
    %v2017 = vmul.f32 %v2012, %v2016
    %v2018 = vpack.c.bf16 %v2017, %v2017
    %2019 = vst [vmem:[#allocation3] sm:$0xf] %v2018
    %v2020 = vld [vmem:[#allocation3] sm:$0xff]
    %v2022 = vunpack.c.l.b16 %v2020
    %v2023 = vunpack.c.h.b16 %v2020
    %v2024 = vpack.c.b16 %v2022, %v2022
    %v2025 = vpack.c.b16 %v2023, %v2023
    %2028 = vmatprep.subr.bf16.mxu0 %v877
    %2029 = vmatpush1.bf16.msra.mxu0 %v876
    %2030 = vmatprep.subr.bf16.mxu0 %v885
    %2031 = vmatpush1.bf16.msra.mxu0 %v884
    %2032 = vmatprep.subr.bf16.mxu0 %v893
    %2033 = vmatpush1.bf16.msra.mxu0 %v892
    %2034 = vmatprep.subr.bf16.mxu0 %v901
    %2035 = vmatpush1.bf16.msra.mxu0 %v900
    %2036 = vmatprep.subr.bf16.mxu0 %v909
    %2037 = vmatpush1.bf16.msra.mxu0 %v908
    %2038 = vmatprep.subr.bf16.mxu0 %v917
    %2039 = vmatpush1.bf16.msra.mxu0 %v916
    %2040 = vmatprep.subr.bf16.mxu0 %v925
    %2041 = vmatpush1.bf16.msra.mxu0 %v924
    %2042 = vmatprep.subr.bf16.mxu0 %v933
    %2043 = vmatpush1.bf16.msra.mxu0 %v932
    %2044 = vmatprep.subr.bf16.mxu0 %v941
    %2045 = vmatpush1.bf16.msra.mxu0 %v940
    %2046 = vmatprep.subr.bf16.mxu0 %v949
    %2047 = vmatpush1.bf16.msra.mxu0 %v948
    %2048 = vmatprep.subr.bf16.mxu0 %v957
    %2049 = vmatpush1.bf16.msra.mxu0 %v956
    %2050 = vmatprep.subr.bf16.mxu0 %v965
    %2051 = vmatpush1.bf16.msra.mxu0 %v964
    %2052 = vmatprep.subr.bf16.mxu0 %v973
    %2053 = vmatpush1.bf16.msra.mxu0 %v972
    %2054 = vmatprep.subr.bf16.mxu0 %v981
    %2055 = vmatpush1.bf16.msra.mxu0 %v980
    %2056 = vmatprep.subr.bf16.mxu0 %v989
    %2057 = vmatpush1.bf16.msra.mxu0 %v988
    %2058 = vmatprep.subr.bf16.mxu0 %v997
    %2059 = vmatpush1.bf16.msra.mxu0 %v996
    %2060 = vmatprep.mubr.bf16.mxu0 %v2025
    %2061 = vmatmul.mubr.bf16.gmra.mrb[0].mxu0 %v2024
    %v2062 = vpop.f32.mrb[0].mxu0
    %v2063 = vadd.f32 0.0, %v2062
    %v2064 = vpop.f32.mrb[0].mxu0
    %v2065 = vadd.f32 0.0, %v2064
    %v2066 = vpop.f32.mrb[0].mxu0
    %v2067 = vpop.f32.mrb[0].mxu0
    %2068 = vdwg.mxu0
    %2069 = vmatprep.subr.bf16.mxu0 %v879
    %2070 = vmatpush1.bf16.msra.mxu0 %v878
    %2071 = vmatprep.subr.bf16.mxu0 %v887
    %2072 = vmatpush1.bf16.msra.mxu0 %v886
    %2073 = vmatprep.subr.bf16.mxu0 %v895
    %2074 = vmatpush1.bf16.msra.mxu0 %v894
    %2075 = vmatprep.subr.bf16.mxu0 %v903
    %2076 = vmatpush1.bf16.msra.mxu0 %v902
    %2077 = vmatprep.subr.bf16.mxu0 %v911
    %2078 = vmatpush1.bf16.msra.mxu0 %v910
    %2079 = vmatprep.subr.bf16.mxu0 %v919
    %2080 = vmatpush1.bf16.msra.mxu0 %v918
    %2081 = vmatprep.subr.bf16.mxu0 %v927
    %2082 = vmatpush1.bf16.msra.mxu0 %v926
    %2083 = vmatprep.subr.bf16.mxu0 %v935
    %2084 = vmatpush1.bf16.msra.mxu0 %v934
    %2085 = vmatprep.subr.bf16.mxu0 %v943
    %2086 = vmatpush1.bf16.msra.mxu0 %v942
    %2087 = vmatprep.subr.bf16.mxu0 %v951
    %2088 = vmatpush1.bf16.msra.mxu0 %v950
    %2089 = vmatprep.subr.bf16.mxu0 %v959
    %2090 = vmatpush1.bf16.msra.mxu0 %v958
    %2091 = vmatprep.subr.bf16.mxu0 %v967
    %2092 = vmatpush1.bf16.msra.mxu0 %v966
    %2093 = vmatprep.subr.bf16.mxu0 %v975
    %2094 = vmatpush1.bf16.msra.mxu0 %v974
    %2095 = vmatprep.subr.bf16.mxu0 %v983
    %2096 = vmatpush1.bf16.msra.mxu0 %v982
    %2097 = vmatprep.subr.bf16.mxu0 %v991
    %2098 = vmatpush1.bf16.msra.mxu0 %v990
    %2099 = vmatprep.subr.bf16.mxu0 %v999
    %2100 = vmatpush1.bf16.msra.mxu0 %v998
    %2101 = vmatprep.mubr.bf16.mxu0 %v2025
    %2102 = vmatmul.mubr.bf16.gmra.mrb[0].mxu0 %v2024
    %v2103 = vpop.f32.mrb[0].mxu0
    %v2104 = vadd.f32 0.0, %v2103
    %v2105 = vpop.f32.mrb[0].mxu0
    %v2106 = vadd.f32 0.0, %v2105
    %v2107 = vpop.f32.mrb[0].mxu0
    %v2108 = vpop.f32.mrb[0].mxu0
    %2109 = vdwg.mxu0
    %2110 = vmatprep.subr.bf16.mxu0 %v881
    %2111 = vmatpush1.bf16.msra.mxu0 %v880
    %2112 = vmatprep.subr.bf16.mxu0 %v889
    %2113 = vmatpush1.bf16.msra.mxu0 %v888
    %2114 = vmatprep.subr.bf16.mxu0 %v897
    %2115 = vmatpush1.bf16.msra.mxu0 %v896
    %2116 = vmatprep.subr.bf16.mxu0 %v905
    %2117 = vmatpush1.bf16.msra.mxu0 %v904
    %2118 = vmatprep.subr.bf16.mxu0 %v913
    %2119 = vmatpush1.bf16.msra.mxu0 %v912
    %2120 = vmatprep.subr.bf16.mxu0 %v921
    %2121 = vmatpush1.bf16.msra.mxu0 %v920
    %2122 = vmatprep.subr.bf16.mxu0 %v929
    %2123 = vmatpush1.bf16.msra.mxu0 %v928
    %2124 = vmatprep.subr.bf16.mxu0 %v937
    %2125 = vmatpush1.bf16.msra.mxu0 %v936
    %2126 = vmatprep.subr.bf16.mxu0 %v945
    %2127 = vmatpush1.bf16.msra.mxu0 %v944
    %2128 = vmatprep.subr.bf16.mxu0 %v953
    %2129 = vmatpush1.bf16.msra.mxu0 %v952
    %2130 = vmatprep.subr.bf16.mxu0 %v961
    %2131 = vmatpush1.bf16.msra.mxu0 %v960
    %2132 = vmatprep.subr.bf16.mxu0 %v969
    %2133 = vmatpush1.bf16.msra.mxu0 %v968
    %2134 = vmatprep.subr.bf16.mxu0 %v977
    %2135 = vmatpush1.bf16.msra.mxu0 %v976
    %2136 = vmatprep.subr.bf16.mxu0 %v985
    %2137 = vmatpush1.bf16.msra.mxu0 %v984
    %2138 = vmatprep.subr.bf16.mxu0 %v993
    %2139 = vmatpush1.bf16.msra.mxu0 %v992
    %2140 = vmatprep.subr.bf16.mxu0 %v1001
    %2141 = vmatpush1.bf16.msra.mxu0 %v1000
    %2142 = vmatprep.mubr.bf16.mxu0 %v2025
    %2143 = vmatmul.mubr.bf16.gmra.mrb[0].mxu0 %v2024
    %v2144 = vpop.f32.mrb[0].mxu0
    %v2145 = vadd.f32 0.0, %v2144
    %v2146 = vpop.f32.mrb[0].mxu0
    %v2147 = vadd.f32 0.0, %v2146
    %v2148 = vpop.f32.mrb[0].mxu0
    %v2149 = vpop.f32.mrb[0].mxu0
    %2150 = vdwg.mxu0
    %2151 = vmatprep.subr.bf16.mxu0 %v883
    %2152 = vmatpush1.bf16.msra.mxu0 %v882
    %2153 = vmatprep.subr.bf16.mxu0 %v891
    %2154 = vmatpush1.bf16.msra.mxu0 %v890
    %2155 = vmatprep.subr.bf16.mxu0 %v899
    %2156 = vmatpush1.bf16.msra.mxu0 %v898
    %2157 = vmatprep.subr.bf16.mxu0 %v907
    %2158 = vmatpush1.bf16.msra.mxu0 %v906
    %2159 = vmatprep.subr.bf16.mxu0 %v915
    %2160 = vmatpush1.bf16.msra.mxu0 %v914
    %2161 = vmatprep.subr.bf16.mxu0 %v923
    %2162 = vmatpush1.bf16.msra.mxu0 %v922
    %2163 = vmatprep.subr.bf16.mxu0 %v931
    %2164 = vmatpush1.bf16.msra.mxu0 %v930
    %2165 = vmatprep.subr.bf16.mxu0 %v939
    %2166 = vmatpush1.bf16.msra.mxu0 %v938
    %2167 = vmatprep.subr.bf16.mxu0 %v947
    %2168 = vmatpush1.bf16.msra.mxu0 %v946
    %2169 = vmatprep.subr.bf16.mxu0 %v955
    %2170 = vmatpush1.bf16.msra.mxu0 %v954
    %2171 = vmatprep.subr.bf16.mxu0 %v963
    %2172 = vmatpush1.bf16.msra.mxu0 %v962
    %2173 = vmatprep.subr.bf16.mxu0 %v971
    %2174 = vmatpush1.bf16.msra.mxu0 %v970
    %2175 = vmatprep.subr.bf16.mxu0 %v979
    %2176 = vmatpush1.bf16.msra.mxu0 %v978
    %2177 = vmatprep.subr.bf16.mxu0 %v987
    %2178 = vmatpush1.bf16.msra.mxu0 %v986
    %2179 = vmatprep.subr.bf16.mxu0 %v995
    %2180 = vmatpush1.bf16.msra.mxu0 %v994
    %2181 = vmatprep.subr.bf16.mxu0 %v1003
    %2182 = vmatpush1.bf16.msra.mxu0 %v1002
    %2183 = vmatprep.mubr.bf16.mxu0 %v2025
    %2184 = vmatmul.mubr.bf16.gmra.mrb[0].mxu0 %v2024
    %v2185 = vpop.f32.mrb[0].mxu0
    %v2186 = vadd.f32 0.0, %v2185
    %v2187 = vpop.f32.mrb[0].mxu0
    %v2188 = vadd.f32 0.0, %v2187
    %v2189 = vpop.f32.mrb[0].mxu0
    %v2190 = vpop.f32.mrb[0].mxu0
    %2191 = vdwg.mxu0
    %v2192 = vadd.f32 %v2145, %v442
    %v2193 = vadd.f32 %v2147, %v446
    %v2194 = vadd.f32 %v2186, %v450
    %v2195 = vadd.f32 %v2188, %v454
    %v2196 = vmul.f32 %v2192, 0.5
    %v2197 = vtanh.pop %v2196
    %v2198 = vmul.f32 %v2197, 0.5
    %v2199 = vadd.f32 %v2198, 0.5
    %v2200 = vmul.f32 %v2193, 0.5
    %v2201 = vtanh.pop %v2200
    %v2202 = vmul.f32 %v2201, 0.5
    %v2203 = vadd.f32 %v2202, 0.5
    %v2204 = vtanh.pop %v2194
    %v2205 = vmul.f32 %v2195, 0.5
    %v2206 = vtanh.pop %v2205
    %v2207 = vmul.f32 %v2206, 0.5
    %v2208 = vadd.f32 %v2207, 0.5
    %v2209 = vmul.f32 %v2203, %v1987
    %v2210 = vmul.f32 %v2199, %v2204
    %v2211 = vadd.f32 %v2209, %v2210
    %v2212 = vtanh.pop %v2211
    %v2213 = vmul.f32 %v2208, %v2212
    %v2214 = vpack.c.bf16 %v2213, %v2213
    %2215 = vst [vmem:[#allocation3 + $0x4] sm:$0xf] %v2214
    %v2216 = vld [vmem:[#allocation2 + $0xa0] sm:$0xff]
    %v2217 = vld [vmem:[#allocation2 + $0xa8] sm:$0xff]
    %v2218 = vld [vmem:[#allocation2 + $0xb0] sm:$0xff]
    %v2219 = vld [vmem:[#allocation2 + $0xb8] sm:$0xff]
    %v2220 = vadd.f32 %v2216, %v2063
    %v2221 = vadd.f32 %v2217, %v2065
    %v2222 = vadd.f32 %v2218, %v2104
    %v2223 = vadd.f32 %v2219, %v2106
    %v2224 = vmul.f32 %v2220, 0.5
    %v2225 = vtanh.pop %v2224
    %v2226 = vmul.f32 %v2225, 0.5
    %v2227 = vadd.f32 %v2226, 0.5
    %v2228 = vmul.f32 %v2221, 0.5
    %v2229 = vtanh.pop %v2228
    %v2230 = vmul.f32 %v2229, 0.5
    %v2231 = vadd.f32 %v2230, 0.5
    %v2232 = vtanh.pop %v2222
    %v2233 = vmul.f32 %v2223, 0.5
    %v2234 = vtanh.pop %v2233
    %v2235 = vmul.f32 %v2234, 0.5
    %v2236 = vadd.f32 %v2235, 0.5
    %v2237 = vmul.f32 %v2231, %v2015
    %v2238 = vmul.f32 %v2227, %v2232
    %v2239 = vadd.f32 %v2237, %v2238
    %v2240 = vtanh.pop %v2239
    %v2241 = vmul.f32 %v2236, %v2240
    %v2242 = vpack.c.bf16 %v2241, %v2241
    %2243 = vst [vmem:[#allocation3] sm:$0xf] %v2242
    %v2244 = vld [vmem:[#allocation3] sm:$0xff]
    %v2246 = vunpack.c.l.b16 %v2244
    %v2247 = vunpack.c.h.b16 %v2244
    %v2248 = vpack.c.b16 %v2246, %v2246
    %v2249 = vpack.c.b16 %v2247, %v2247
    %2252 = vmatprep.subr.bf16.mxu0 %v877
    %2253 = vmatpush1.bf16.msra.mxu0 %v876
    %2254 = vmatprep.subr.bf16.mxu0 %v885
    %2255 = vmatpush1.bf16.msra.mxu0 %v884
    %2256 = vmatprep.subr.bf16.mxu0 %v893
    %2257 = vmatpush1.bf16.msra.mxu0 %v892
    %2258 = vmatprep.subr.bf16.mxu0 %v901
    %2259 = vmatpush1.bf16.msra.mxu0 %v900
    %2260 = vmatprep.subr.bf16.mxu0 %v909
    %2261 = vmatpush1.bf16.msra.mxu0 %v908
    %2262 = vmatprep.subr.bf16.mxu0 %v917
    %2263 = vmatpush1.bf16.msra.mxu0 %v916
    %2264 = vmatprep.subr.bf16.mxu0 %v925
    %2265 = vmatpush1.bf16.msra.mxu0 %v924
    %2266 = vmatprep.subr.bf16.mxu0 %v933
    %2267 = vmatpush1.bf16.msra.mxu0 %v932
    %2268 = vmatprep.subr.bf16.mxu0 %v941
    %2269 = vmatpush1.bf16.msra.mxu0 %v940
    %2270 = vmatprep.subr.bf16.mxu0 %v949
    %2271 = vmatpush1.bf16.msra.mxu0 %v948
    %2272 = vmatprep.subr.bf16.mxu0 %v957
    %2273 = vmatpush1.bf16.msra.mxu0 %v956
    %2274 = vmatprep.subr.bf16.mxu0 %v965
    %2275 = vmatpush1.bf16.msra.mxu0 %v964
    %2276 = vmatprep.subr.bf16.mxu0 %v973
    %2277 = vmatpush1.bf16.msra.mxu0 %v972
    %2278 = vmatprep.subr.bf16.mxu0 %v981
    %2279 = vmatpush1.bf16.msra.mxu0 %v980
    %2280 = vmatprep.subr.bf16.mxu0 %v989
    %2281 = vmatpush1.bf16.msra.mxu0 %v988
    %2282 = vmatprep.subr.bf16.mxu0 %v997
    %2283 = vmatpush1.bf16.msra.mxu0 %v996
    %2284 = vmatprep.mubr.bf16.mxu0 %v2249
    %2285 = vmatmul.mubr.bf16.gmra.mrb[0].mxu0 %v2248
    %v2286 = vpop.f32.mrb[0].mxu0
    %v2287 = vadd.f32 0.0, %v2286
    %v2288 = vpop.f32.mrb[0].mxu0
    %v2289 = vadd.f32 0.0, %v2288
    %v2290 = vpop.f32.mrb[0].mxu0
    %v2291 = vpop.f32.mrb[0].mxu0
    %2292 = vdwg.mxu0
    %2293 = vmatprep.subr.bf16.mxu0 %v879
    %2294 = vmatpush1.bf16.msra.mxu0 %v878
    %2295 = vmatprep.subr.bf16.mxu0 %v887
    %2296 = vmatpush1.bf16.msra.mxu0 %v886
    %2297 = vmatprep.subr.bf16.mxu0 %v895
    %2298 = vmatpush1.bf16.msra.mxu0 %v894
    %2299 = vmatprep.subr.bf16.mxu0 %v903
    %2300 = vmatpush1.bf16.msra.mxu0 %v902
    %2301 = vmatprep.subr.bf16.mxu0 %v911
    %2302 = vmatpush1.bf16.msra.mxu0 %v910
    %2303 = vmatprep.subr.bf16.mxu0 %v919
    %2304 = vmatpush1.bf16.msra.mxu0 %v918
    %2305 = vmatprep.subr.bf16.mxu0 %v927
    %2306 = vmatpush1.bf16.msra.mxu0 %v926
    %2307 = vmatprep.subr.bf16.mxu0 %v935
    %2308 = vmatpush1.bf16.msra.mxu0 %v934
    %2309 = vmatprep.subr.bf16.mxu0 %v943
    %2310 = vmatpush1.bf16.msra.mxu0 %v942
    %2311 = vmatprep.subr.bf16.mxu0 %v951
    %2312 = vmatpush1.bf16.msra.mxu0 %v950
    %2313 = vmatprep.subr.bf16.mxu0 %v959
    %2314 = vmatpush1.bf16.msra.mxu0 %v958
    %2315 = vmatprep.subr.bf16.mxu0 %v967
    %2316 = vmatpush1.bf16.msra.mxu0 %v966
    %2317 = vmatprep.subr.bf16.mxu0 %v975
    %2318 = vmatpush1.bf16.msra.mxu0 %v974
    %2319 = vmatprep.subr.bf16.mxu0 %v983
    %2320 = vmatpush1.bf16.msra.mxu0 %v982
    %2321 = vmatprep.subr.bf16.mxu0 %v991
    %2322 = vmatpush1.bf16.msra.mxu0 %v990
    %2323 = vmatprep.subr.bf16.mxu0 %v999
    %2324 = vmatpush1.bf16.msra.mxu0 %v998
    %2325 = vmatprep.mubr.bf16.mxu0 %v2249
    %2326 = vmatmul.mubr.bf16.gmra.mrb[0].mxu0 %v2248
    %v2327 = vpop.f32.mrb[0].mxu0
    %v2328 = vadd.f32 0.0, %v2327
    %v2329 = vpop.f32.mrb[0].mxu0
    %v2330 = vadd.f32 0.0, %v2329
    %v2331 = vpop.f32.mrb[0].mxu0
    %v2332 = vpop.f32.mrb[0].mxu0
    %2333 = vdwg.mxu0
    %2334 = vmatprep.subr.bf16.mxu0 %v881
    %2335 = vmatpush1.bf16.msra.mxu0 %v880
    %2336 = vmatprep.subr.bf16.mxu0 %v889
    %2337 = vmatpush1.bf16.msra.mxu0 %v888
    %2338 = vmatprep.subr.bf16.mxu0 %v897
    %2339 = vmatpush1.bf16.msra.mxu0 %v896
    %2340 = vmatprep.subr.bf16.mxu0 %v905
    %2341 = vmatpush1.bf16.msra.mxu0 %v904
    %2342 = vmatprep.subr.bf16.mxu0 %v913
    %2343 = vmatpush1.bf16.msra.mxu0 %v912
    %2344 = vmatprep.subr.bf16.mxu0 %v921
    %2345 = vmatpush1.bf16.msra.mxu0 %v920
    %2346 = vmatprep.subr.bf16.mxu0 %v929
    %2347 = vmatpush1.bf16.msra.mxu0 %v928
    %2348 = vmatprep.subr.bf16.mxu0 %v937
    %2349 = vmatpush1.bf16.msra.mxu0 %v936
    %2350 = vmatprep.subr.bf16.mxu0 %v945
    %2351 = vmatpush1.bf16.msra.mxu0 %v944
    %2352 = vmatprep.subr.bf16.mxu0 %v953
    %2353 = vmatpush1.bf16.msra.mxu0 %v952
    %2354 = vmatprep.subr.bf16.mxu0 %v961
    %2355 = vmatpush1.bf16.msra.mxu0 %v960
    %2356 = vmatprep.subr.bf16.mxu0 %v969
    %2357 = vmatpush1.bf16.msra.mxu0 %v968
    %2358 = vmatprep.subr.bf16.mxu0 %v977
    %2359 = vmatpush1.bf16.msra.mxu0 %v976
    %2360 = vmatprep.subr.bf16.mxu0 %v985
    %2361 = vmatpush1.bf16.msra.mxu0 %v984
    %2362 = vmatprep.subr.bf16.mxu0 %v993
    %2363 = vmatpush1.bf16.msra.mxu0 %v992
    %2364 = vmatprep.subr.bf16.mxu0 %v1001
    %2365 = vmatpush1.bf16.msra.mxu0 %v1000
    %2366 = vmatprep.mubr.bf16.mxu0 %v2249
    %2367 = vmatmul.mubr.bf16.gmra.mrb[0].mxu0 %v2248
    %v2368 = vpop.f32.mrb[0].mxu0
    %v2369 = vadd.f32 0.0, %v2368
    %v2370 = vpop.f32.mrb[0].mxu0
    %v2371 = vadd.f32 0.0, %v2370
    %v2372 = vpop.f32.mrb[0].mxu0
    %v2373 = vpop.f32.mrb[0].mxu0
    %2374 = vdwg.mxu0
    %2375 = vmatprep.subr.bf16.mxu0 %v883
    %2376 = vmatpush1.bf16.msra.mxu0 %v882
    %2377 = vmatprep.subr.bf16.mxu0 %v891
    %2378 = vmatpush1.bf16.msra.mxu0 %v890
    %2379 = vmatprep.subr.bf16.mxu0 %v899
    %2380 = vmatpush1.bf16.msra.mxu0 %v898
    %2381 = vmatprep.subr.bf16.mxu0 %v907
    %2382 = vmatpush1.bf16.msra.mxu0 %v906
    %2383 = vmatprep.subr.bf16.mxu0 %v915
    %2384 = vmatpush1.bf16.msra.mxu0 %v914
    %2385 = vmatprep.subr.bf16.mxu0 %v923
    %2386 = vmatpush1.bf16.msra.mxu0 %v922
    %2387 = vmatprep.subr.bf16.mxu0 %v931
    %2388 = vmatpush1.bf16.msra.mxu0 %v930
    %2389 = vmatprep.subr.bf16.mxu0 %v939
    %2390 = vmatpush1.bf16.msra.mxu0 %v938
    %2391 = vmatprep.subr.bf16.mxu0 %v947
    %2392 = vmatpush1.bf16.msra.mxu0 %v946
    %2393 = vmatprep.subr.bf16.mxu0 %v955
    %2394 = vmatpush1.bf16.msra.mxu0 %v954
    %2395 = vmatprep.subr.bf16.mxu0 %v963
    %2396 = vmatpush1.bf16.msra.mxu0 %v962
    %2397 = vmatprep.subr.bf16.mxu0 %v971
    %2398 = vmatpush1.bf16.msra.mxu0 %v970
    %2399 = vmatprep.subr.bf16.mxu0 %v979
    %2400 = vmatpush1.bf16.msra.mxu0 %v978
    %2401 = vmatprep.subr.bf16.mxu0 %v987
    %2402 = vmatpush1.bf16.msra.mxu0 %v986
    %2403 = vmatprep.subr.bf16.mxu0 %v995
    %2404 = vmatpush1.bf16.msra.mxu0 %v994
    %2405 = vmatprep.subr.bf16.mxu0 %v1003
    %2406 = vmatpush1.bf16.msra.mxu0 %v1002
    %2407 = vmatprep.mubr.bf16.mxu0 %v2249
    %2408 = vmatmul.mubr.bf16.gmra.mrb[0].mxu0 %v2248
    %v2409 = vpop.f32.mrb[0].mxu0
    %v2410 = vadd.f32 0.0, %v2409
    %v2411 = vpop.f32.mrb[0].mxu0
    %v2412 = vadd.f32 0.0, %v2411
    %v2413 = vpop.f32.mrb[0].mxu0
    %v2414 = vpop.f32.mrb[0].mxu0
    %2415 = vdwg.mxu0
    %v2416 = vadd.f32 %v2369, %v442
    %v2417 = vadd.f32 %v2371, %v446
    %v2418 = vadd.f32 %v2410, %v450
    %v2419 = vadd.f32 %v2412, %v454
    %v2420 = vmul.f32 %v2416, 0.5
    %v2421 = vtanh.pop %v2420
    %v2422 = vmul.f32 %v2421, 0.5
    %v2423 = vadd.f32 %v2422, 0.5
    %v2424 = vmul.f32 %v2417, 0.5
    %v2425 = vtanh.pop %v2424
    %v2426 = vmul.f32 %v2425, 0.5
    %v2427 = vadd.f32 %v2426, 0.5
    %v2428 = vtanh.pop %v2418
    %v2429 = vmul.f32 %v2419, 0.5
    %v2430 = vtanh.pop %v2429
    %v2431 = vmul.f32 %v2430, 0.5
    %v2432 = vadd.f32 %v2431, 0.5
    %v2433 = vmul.f32 %v2427, %v2211
    %v2434 = vmul.f32 %v2423, %v2428
    %v2435 = vadd.f32 %v2433, %v2434
    %v2436 = vtanh.pop %v2435
    %v2437 = vmul.f32 %v2432, %v2436
    %v2438 = vpack.c.bf16 %v2437, %v2437
    %2439 = vst [vmem:[#allocation3 + $0x4] sm:$0xf] %v2438
    %v2440 = vld [vmem:[#allocation2 + $0xc0] sm:$0xff]
    %v2441 = vld [vmem:[#allocation2 + $0xc8] sm:$0xff]
    %v2442 = vld [vmem:[#allocation2 + $0xd0] sm:$0xff]
    %v2443 = vld [vmem:[#allocation2 + $0xd8] sm:$0xff]
    %v2444 = vadd.f32 %v2440, %v2287
    %v2445 = vadd.f32 %v2441, %v2289
    %v2446 = vadd.f32 %v2442, %v2328
    %v2447 = vadd.f32 %v2443, %v2330
    %v2448 = vmul.f32 %v2444, 0.5
    %v2449 = vtanh.pop %v2448
    %v2450 = vmul.f32 %v2449, 0.5
    %v2451 = vadd.f32 %v2450, 0.5
    %v2452 = vmul.f32 %v2445, 0.5
    %v2453 = vtanh.pop %v2452
    %v2454 = vmul.f32 %v2453, 0.5
    %v2455 = vadd.f32 %v2454, 0.5
    %v2456 = vtanh.pop %v2446
    %v2457 = vmul.f32 %v2447, 0.5
    %v2458 = vtanh.pop %v2457
    %v2459 = vmul.f32 %v2458, 0.5
    %v2460 = vadd.f32 %v2459, 0.5
    %v2461 = vmul.f32 %v2455, %v2239
    %v2462 = vmul.f32 %v2451, %v2456
    %v2463 = vadd.f32 %v2461, %v2462
    %v2464 = vtanh.pop %v2463
    %v2465 = vmul.f32 %v2460, %v2464
    %v2466 = vpack.c.bf16 %v2465, %v2465
    %2467 = vst [vmem:[#allocation3] sm:$0xf] %v2466
    %v2468 = vld [vmem:[#allocation3] sm:$0xff]
    %v2470 = vunpack.c.l.b16 %v2468
    %v2471 = vunpack.c.h.b16 %v2468
    %v2472 = vpack.c.b16 %v2470, %v2470
    %v2473 = vpack.c.b16 %v2471, %v2471
    %2476 = vmatprep.subr.bf16.mxu0 %v877
    %2477 = vmatpush1.bf16.msra.mxu0 %v876
    %2478 = vmatprep.subr.bf16.mxu0 %v885
    %2479 = vmatpush1.bf16.msra.mxu0 %v884
    %2480 = vmatprep.subr.bf16.mxu0 %v893
    %2481 = vmatpush1.bf16.msra.mxu0 %v892
    %2482 = vmatprep.subr.bf16.mxu0 %v901
    %2483 = vmatpush1.bf16.msra.mxu0 %v900
    %2484 = vmatprep.subr.bf16.mxu0 %v909
    %2485 = vmatpush1.bf16.msra.mxu0 %v908
    %2486 = vmatprep.subr.bf16.mxu0 %v917
    %2487 = vmatpush1.bf16.msra.mxu0 %v916
    %2488 = vmatprep.subr.bf16.mxu0 %v925
    %2489 = vmatpush1.bf16.msra.mxu0 %v924
    %2490 = vmatprep.subr.bf16.mxu0 %v933
    %2491 = vmatpush1.bf16.msra.mxu0 %v932
    %2492 = vmatprep.subr.bf16.mxu0 %v941
    %2493 = vmatpush1.bf16.msra.mxu0 %v940
    %2494 = vmatprep.subr.bf16.mxu0 %v949
    %2495 = vmatpush1.bf16.msra.mxu0 %v948
    %2496 = vmatprep.subr.bf16.mxu0 %v957
    %2497 = vmatpush1.bf16.msra.mxu0 %v956
    %2498 = vmatprep.subr.bf16.mxu0 %v965
    %2499 = vmatpush1.bf16.msra.mxu0 %v964
    %2500 = vmatprep.subr.bf16.mxu0 %v973
    %2501 = vmatpush1.bf16.msra.mxu0 %v972
    %2502 = vmatprep.subr.bf16.mxu0 %v981
    %2503 = vmatpush1.bf16.msra.mxu0 %v980
    %2504 = vmatprep.subr.bf16.mxu0 %v989
    %2505 = vmatpush1.bf16.msra.mxu0 %v988
    %2506 = vmatprep.subr.bf16.mxu0 %v997
    %2507 = vmatpush1.bf16.msra.mxu0 %v996
    %2508 = vmatprep.mubr.bf16.mxu0 %v2473
    %2509 = vmatmul.mubr.bf16.gmra.mrb[0].mxu0 %v2472
    %v2510 = vpop.f32.mrb[0].mxu0
    %v2511 = vadd.f32 0.0, %v2510
    %v2512 = vpop.f32.mrb[0].mxu0
    %v2513 = vadd.f32 0.0, %v2512
    %v2514 = vpop.f32.mrb[0].mxu0
    %v2515 = vpop.f32.mrb[0].mxu0
    %2516 = vdwg.mxu0
    %2517 = vmatprep.subr.bf16.mxu0 %v879
    %2518 = vmatpush1.bf16.msra.mxu0 %v878
    %2519 = vmatprep.subr.bf16.mxu0 %v887
    %2520 = vmatpush1.bf16.msra.mxu0 %v886
    %2521 = vmatprep.subr.bf16.mxu0 %v895
    %2522 = vmatpush1.bf16.msra.mxu0 %v894
    %2523 = vmatprep.subr.bf16.mxu0 %v903
    %2524 = vmatpush1.bf16.msra.mxu0 %v902
    %2525 = vmatprep.subr.bf16.mxu0 %v911
    %2526 = vmatpush1.bf16.msra.mxu0 %v910
    %2527 = vmatprep.subr.bf16.mxu0 %v919
    %2528 = vmatpush1.bf16.msra.mxu0 %v918
    %2529 = vmatprep.subr.bf16.mxu0 %v927
    %2530 = vmatpush1.bf16.msra.mxu0 %v926
    %2531 = vmatprep.subr.bf16.mxu0 %v935
    %2532 = vmatpush1.bf16.msra.mxu0 %v934
    %2533 = vmatprep.subr.bf16.mxu0 %v943
    %2534 = vmatpush1.bf16.msra.mxu0 %v942
    %2535 = vmatprep.subr.bf16.mxu0 %v951
    %2536 = vmatpush1.bf16.msra.mxu0 %v950
    %2537 = vmatprep.subr.bf16.mxu0 %v959
    %2538 = vmatpush1.bf16.msra.mxu0 %v958
    %2539 = vmatprep.subr.bf16.mxu0 %v967
    %2540 = vmatpush1.bf16.msra.mxu0 %v966
    %2541 = vmatprep.subr.bf16.mxu0 %v975
    %2542 = vmatpush1.bf16.msra.mxu0 %v974
    %2543 = vmatprep.subr.bf16.mxu0 %v983
    %2544 = vmatpush1.bf16.msra.mxu0 %v982
    %2545 = vmatprep.subr.bf16.mxu0 %v991
    %2546 = vmatpush1.bf16.msra.mxu0 %v990
    %2547 = vmatprep.subr.bf16.mxu0 %v999
    %2548 = vmatpush1.bf16.msra.mxu0 %v998
    %2549 = vmatprep.mubr.bf16.mxu0 %v2473
    %2550 = vmatmul.mubr.bf16.gmra.mrb[0].mxu0 %v2472
    %v2551 = vpop.f32.mrb[0].mxu0
    %v2552 = vadd.f32 0.0, %v2551
    %v2553 = vpop.f32.mrb[0].mxu0
    %v2554 = vadd.f32 0.0, %v2553
    %v2555 = vpop.f32.mrb[0].mxu0
    %v2556 = vpop.f32.mrb[0].mxu0
    %2557 = vdwg.mxu0
    %2558 = vmatprep.subr.bf16.mxu0 %v881
    %2559 = vmatpush1.bf16.msra.mxu0 %v880
    %2560 = vmatprep.subr.bf16.mxu0 %v889
    %2561 = vmatpush1.bf16.msra.mxu0 %v888
    %2562 = vmatprep.subr.bf16.mxu0 %v897
    %2563 = vmatpush1.bf16.msra.mxu0 %v896
    %2564 = vmatprep.subr.bf16.mxu0 %v905
    %2565 = vmatpush1.bf16.msra.mxu0 %v904
    %2566 = vmatprep.subr.bf16.mxu0 %v913
    %2567 = vmatpush1.bf16.msra.mxu0 %v912
    %2568 = vmatprep.subr.bf16.mxu0 %v921
    %2569 = vmatpush1.bf16.msra.mxu0 %v920
    %2570 = vmatprep.subr.bf16.mxu0 %v929
    %2571 = vmatpush1.bf16.msra.mxu0 %v928
    %2572 = vmatprep.subr.bf16.mxu0 %v937
    %2573 = vmatpush1.bf16.msra.mxu0 %v936
    %2574 = vmatprep.subr.bf16.mxu0 %v945
    %2575 = vmatpush1.bf16.msra.mxu0 %v944
    %2576 = vmatprep.subr.bf16.mxu0 %v953
    %2577 = vmatpush1.bf16.msra.mxu0 %v952
    %2578 = vmatprep.subr.bf16.mxu0 %v961
    %2579 = vmatpush1.bf16.msra.mxu0 %v960
    %2580 = vmatprep.subr.bf16.mxu0 %v969
    %2581 = vmatpush1.bf16.msra.mxu0 %v968
    %2582 = vmatprep.subr.bf16.mxu0 %v977
    %2583 = vmatpush1.bf16.msra.mxu0 %v976
    %2584 = vmatprep.subr.bf16.mxu0 %v985
    %2585 = vmatpush1.bf16.msra.mxu0 %v984
    %2586 = vmatprep.subr.bf16.mxu0 %v993
    %2587 = vmatpush1.bf16.msra.mxu0 %v992
    %2588 = vmatprep.subr.bf16.mxu0 %v1001
    %2589 = vmatpush1.bf16.msra.mxu0 %v1000
    %2590 = vmatprep.mubr.bf16.mxu0 %v2473
    %2591 = vmatmul.mubr.bf16.gmra.mrb[0].mxu0 %v2472
    %v2592 = vpop.f32.mrb[0].mxu0
    %v2593 = vadd.f32 0.0, %v2592
    %v2594 = vpop.f32.mrb[0].mxu0
    %v2595 = vadd.f32 0.0, %v2594
    %v2596 = vpop.f32.mrb[0].mxu0
    %v2597 = vpop.f32.mrb[0].mxu0
    %2598 = vdwg.mxu0
    %2599 = vmatprep.subr.bf16.mxu0 %v883
    %2600 = vmatpush1.bf16.msra.mxu0 %v882
    %2601 = vmatprep.subr.bf16.mxu0 %v891
    %2602 = vmatpush1.bf16.msra.mxu0 %v890
    %2603 = vmatprep.subr.bf16.mxu0 %v899
    %2604 = vmatpush1.bf16.msra.mxu0 %v898
    %2605 = vmatprep.subr.bf16.mxu0 %v907
    %2606 = vmatpush1.bf16.msra.mxu0 %v906
    %2607 = vmatprep.subr.bf16.mxu0 %v915
    %2608 = vmatpush1.bf16.msra.mxu0 %v914
    %2609 = vmatprep.subr.bf16.mxu0 %v923
    %2610 = vmatpush1.bf16.msra.mxu0 %v922
    %2611 = vmatprep.subr.bf16.mxu0 %v931
    %2612 = vmatpush1.bf16.msra.mxu0 %v930
    %2613 = vmatprep.subr.bf16.mxu0 %v939
    %2614 = vmatpush1.bf16.msra.mxu0 %v938
    %2615 = vmatprep.subr.bf16.mxu0 %v947
    %2616 = vmatpush1.bf16.msra.mxu0 %v946
    %2617 = vmatprep.subr.bf16.mxu0 %v955
    %2618 = vmatpush1.bf16.msra.mxu0 %v954
    %2619 = vmatprep.subr.bf16.mxu0 %v963
    %2620 = vmatpush1.bf16.msra.mxu0 %v962
    %2621 = vmatprep.subr.bf16.mxu0 %v971
    %2622 = vmatpush1.bf16.msra.mxu0 %v970
    %2623 = vmatprep.subr.bf16.mxu0 %v979
    %2624 = vmatpush1.bf16.msra.mxu0 %v978
    %2625 = vmatprep.subr.bf16.mxu0 %v987
    %2626 = vmatpush1.bf16.msra.mxu0 %v986
    %2627 = vmatprep.subr.bf16.mxu0 %v995
    %2628 = vmatpush1.bf16.msra.mxu0 %v994
    %2629 = vmatprep.subr.bf16.mxu0 %v1003
    %2630 = vmatpush1.bf16.msra.mxu0 %v1002
    %2631 = vmatprep.mubr.bf16.mxu0 %v2473
    %2632 = vmatmul.mubr.bf16.gmra.mrb[0].mxu0 %v2472
    %v2633 = vpop.f32.mrb[0].mxu0
    %v2634 = vadd.f32 0.0, %v2633
    %v2635 = vpop.f32.mrb[0].mxu0
    %v2636 = vadd.f32 0.0, %v2635
    %v2637 = vpop.f32.mrb[0].mxu0
    %v2638 = vpop.f32.mrb[0].mxu0
    %2639 = vdwg.mxu0
    %v2640 = vadd.f32 %v2593, %v442
    %v2641 = vadd.f32 %v2595, %v446
    %v2642 = vadd.f32 %v2634, %v450
    %v2643 = vadd.f32 %v2636, %v454
    %v2644 = vmul.f32 %v2640, 0.5
    %v2645 = vtanh.pop %v2644
    %v2646 = vmul.f32 %v2645, 0.5
    %v2647 = vadd.f32 %v2646, 0.5
    %v2648 = vmul.f32 %v2641, 0.5
    %v2649 = vtanh.pop %v2648
    %v2650 = vmul.f32 %v2649, 0.5
    %v2651 = vadd.f32 %v2650, 0.5
    %v2652 = vtanh.pop %v2642
    %v2653 = vmul.f32 %v2643, 0.5
    %v2654 = vtanh.pop %v2653
    %v2655 = vmul.f32 %v2654, 0.5
    %v2656 = vadd.f32 %v2655, 0.5
    %v2657 = vmul.f32 %v2651, %v2435
    %v2658 = vmul.f32 %v2647, %v2652
    %v2659 = vadd.f32 %v2657, %v2658
    %v2660 = vtanh.pop %v2659
    %v2661 = vmul.f32 %v2656, %v2660
    %v2662 = vpack.c.bf16 %v2661, %v2661
    %2663 = vst [vmem:[#allocation3 + $0x4] sm:$0xf] %v2662
    %v2664 = vld [vmem:[#allocation2 + $0xe0] sm:$0xff]
    %v2665 = vld [vmem:[#allocation2 + $0xe8] sm:$0xff]
    %v2666 = vld [vmem:[#allocation2 + $0xf0] sm:$0xff]
    %v2667 = vld [vmem:[#allocation2 + $0xf8] sm:$0xff]
    %v2668 = vadd.f32 %v2664, %v2511
    %v2669 = vadd.f32 %v2665, %v2513
    %v2670 = vadd.f32 %v2666, %v2552
    %v2671 = vadd.f32 %v2667, %v2554
    %v2672 = vmul.f32 %v2668, 0.5
    %v2673 = vtanh.pop %v2672
    %v2674 = vmul.f32 %v2673, 0.5
    %v2675 = vadd.f32 %v2674, 0.5
    %v2676 = vmul.f32 %v2669, 0.5
    %v2677 = vtanh.pop %v2676
    %v2678 = vmul.f32 %v2677, 0.5
    %v2679 = vadd.f32 %v2678, 0.5
    %v2680 = vtanh.pop %v2670
    %v2681 = vmul.f32 %v2671, 0.5
    %v2682 = vtanh.pop %v2681
    %v2683 = vmul.f32 %v2682, 0.5
    %v2684 = vadd.f32 %v2683, 0.5
    %v2685 = vmul.f32 %v2679, %v2463
    %v2686 = vmul.f32 %v2675, %v2680
    %v2687 = vadd.f32 %v2685, %v2686
    %v2688 = vtanh.pop %v2687
    %v2689 = vmul.f32 %v2684, %v2688
    %v2690 = vpack.c.bf16 %v2689, %v2689
    %2691 = vst [vmem:[#allocation3] sm:$0xf] %v2690
    %v2692 = vld [vmem:[#allocation3] sm:$0xff]
    %v2694 = vunpack.c.l.b16 %v2692
    %v2695 = vunpack.c.h.b16 %v2692
    %v2696 = vpack.c.b16 %v2694, %v2694
    %v2697 = vpack.c.b16 %v2695, %v2695
    %2700 = vmatprep.subr.bf16.mxu0 %v881
    %2701 = vmatpush1.bf16.msra.mxu0 %v880
    %2702 = vmatprep.subr.bf16.mxu0 %v889
    %2703 = vmatpush1.bf16.msra.mxu0 %v888
    %2704 = vmatprep.subr.bf16.mxu0 %v897
    %2705 = vmatpush1.bf16.msra.mxu0 %v896
    %2706 = vmatprep.subr.bf16.mxu0 %v905
    %2707 = vmatpush1.bf16.msra.mxu0 %v904
    %2708 = vmatprep.subr.bf16.mxu0 %v913
    %2709 = vmatpush1.bf16.msra.mxu0 %v912
    %2710 = vmatprep.subr.bf16.mxu0 %v921
    %2711 = vmatpush1.bf16.msra.mxu0 %v920
    %2712 = vmatprep.subr.bf16.mxu0 %v929
    %2713 = vmatpush1.bf16.msra.mxu0 %v928
    %2714 = vmatprep.subr.bf16.mxu0 %v937
    %2715 = vmatpush1.bf16.msra.mxu0 %v936
    %2716 = vmatprep.subr.bf16.mxu0 %v945
    %2717 = vmatpush1.bf16.msra.mxu0 %v944
    %2718 = vmatprep.subr.bf16.mxu0 %v953
    %2719 = vmatpush1.bf16.msra.mxu0 %v952
    %2720 = vmatprep.subr.bf16.mxu0 %v961
    %2721 = vmatpush1.bf16.msra.mxu0 %v960
    %2722 = vmatprep.subr.bf16.mxu0 %v969
    %2723 = vmatpush1.bf16.msra.mxu0 %v968
    %2724 = vmatprep.subr.bf16.mxu0 %v977
    %2725 = vmatpush1.bf16.msra.mxu0 %v976
    %2726 = vmatprep.subr.bf16.mxu0 %v985
    %2727 = vmatpush1.bf16.msra.mxu0 %v984
    %2728 = vmatprep.subr.bf16.mxu0 %v993
    %2729 = vmatpush1.bf16.msra.mxu0 %v992
    %2730 = vmatprep.subr.bf16.mxu0 %v1001
    %2731 = vmatpush1.bf16.msra.mxu0 %v1000
    %2732 = vmatprep.mubr.bf16.mxu0 %v2697
    %2733 = vmatmul.mubr.bf16.gmra.mrb[0].mxu0 %v2696
    %v2734 = vpop.f32.mrb[0].mxu0
    %v2735 = vadd.f32 0.0, %v2734
    %v2736 = vpop.f32.mrb[0].mxu0
    %v2737 = vadd.f32 0.0, %v2736
    %v2738 = vpop.f32.mrb[0].mxu0
    %v2739 = vpop.f32.mrb[0].mxu0
    %2740 = vdwg.mxu0
    %2741 = vmatprep.subr.bf16.mxu0 %v883
    %2742 = vmatpush1.bf16.msra.mxu0 %v882
    %2743 = vmatprep.subr.bf16.mxu0 %v891
    %2744 = vmatpush1.bf16.msra.mxu0 %v890
    %2745 = vmatprep.subr.bf16.mxu0 %v899
    %2746 = vmatpush1.bf16.msra.mxu0 %v898
    %2747 = vmatprep.subr.bf16.mxu0 %v907
    %2748 = vmatpush1.bf16.msra.mxu0 %v906
    %2749 = vmatprep.subr.bf16.mxu0 %v915
    %2750 = vmatpush1.bf16.msra.mxu0 %v914
    %2751 = vmatprep.subr.bf16.mxu0 %v923
    %2752 = vmatpush1.bf16.msra.mxu0 %v922
    %2753 = vmatprep.subr.bf16.mxu0 %v931
    %2754 = vmatpush1.bf16.msra.mxu0 %v930
    %2755 = vmatprep.subr.bf16.mxu0 %v939
    %2756 = vmatpush1.bf16.msra.mxu0 %v938
    %2757 = vmatprep.subr.bf16.mxu0 %v947
    %2758 = vmatpush1.bf16.msra.mxu0 %v946
    %2759 = vmatprep.subr.bf16.mxu0 %v955
    %2760 = vmatpush1.bf16.msra.mxu0 %v954
    %2761 = vmatprep.subr.bf16.mxu0 %v963
    %2762 = vmatpush1.bf16.msra.mxu0 %v962
    %2763 = vmatprep.subr.bf16.mxu0 %v971
    %2764 = vmatpush1.bf16.msra.mxu0 %v970
    %2765 = vmatprep.subr.bf16.mxu0 %v979
    %2766 = vmatpush1.bf16.msra.mxu0 %v978
    %2767 = vmatprep.subr.bf16.mxu0 %v987
    %2768 = vmatpush1.bf16.msra.mxu0 %v986
    %2769 = vmatprep.subr.bf16.mxu0 %v995
    %2770 = vmatpush1.bf16.msra.mxu0 %v994
    %2771 = vmatprep.subr.bf16.mxu0 %v1003
    %2772 = vmatpush1.bf16.msra.mxu0 %v1002
    %2773 = vmatprep.mubr.bf16.mxu0 %v2697
    %2774 = vmatmul.mubr.bf16.gmra.mrb[0].mxu0 %v2696
    %v2775 = vpop.f32.mrb[0].mxu0
    %v2776 = vadd.f32 0.0, %v2775
    %v2777 = vpop.f32.mrb[0].mxu0
    %v2778 = vadd.f32 0.0, %v2777
    %v2779 = vpop.f32.mrb[0].mxu0
    %v2780 = vpop.f32.mrb[0].mxu0
    %2781 = vdwg.mxu0
    %v2782 = vadd.f32 %v2735, %v442
    %v2783 = vadd.f32 %v2737, %v446
    %v2784 = vadd.f32 %v2776, %v450
    %v2785 = vadd.f32 %v2778, %v454
    %v2786 = vmul.f32 %v2782, 0.5
    %v2787 = vtanh.pop %v2786
    %v2788 = vmul.f32 %v2787, 0.5
    %v2789 = vadd.f32 %v2788, 0.5
    %v2790 = vmul.f32 %v2783, 0.5
    %v2791 = vtanh.pop %v2790
    %v2792 = vmul.f32 %v2791, 0.5
    %v2793 = vadd.f32 %v2792, 0.5
    %v2794 = vtanh.pop %v2784
    %v2795 = vmul.f32 %v2785, 0.5
    %v2796 = vtanh.pop %v2795
    %v2797 = vmul.f32 %v2796, 0.5
    %v2798 = vadd.f32 %v2797, 0.5
    %v2799 = vmul.f32 %v2793, %v2659
    %v2800 = vmul.f32 %v2789, %v2794
    %v2801 = vadd.f32 %v2799, %v2800
    %v2802 = vtanh.pop %v2801
    %v2803 = vmul.f32 %v2798, %v2802
    %v2804 = vpack.c.bf16 %v2803, %v2803
    %2805 = vst [vmem:[#allocation3 + $0x4] sm:$0xf] %v2804
    %v2806 = vld [vmem:[%s5] sm:$0x1]
    %v2808 = vlaneseq
    %v2809 = vshrl.u32 %v2808, 7
    %v2810 = vsub.s32 0, %v2809
    %v2811 = vrot.slane %v2806, %v2810
    %v2813 = vmul.f32 %v2803, %v2811
    %2814 = vadd.xlane.f32.xlu0 %v2813
    %v2815 = vpop.xlane.xlu0 %2814
    %v2816 = vld [vmem:[#allocation4] sm:$0x1]
    %v2818 = vlaneseq
    %v2819 = vshrl.u32 %v2818, 7
    %v2820 = vsub.s32 0, %v2819
    %v2821 = vrot.slane %v2816, %v2820
    %v2823 = vadd.f32 %v2815, %v2821
    %2825 = vset.pattern.permute.xlu0 0
    %2826 = vperm.xlu0 %2825, %v2823
    %v2827 = vpop.permute.xlu0 %2826
    %2829 = vst [vmem:[%s7] sm:$0xff] %v2827
    // Predicated region
    $region34: #{lstm_net_forward.1} parent=1 // pred_check
      _
    $region35: #{lstm_net_forward.1} parent=1 // pred_check_branch
      %2831 = sbr.rel (0) target = $region37
    $region36: #{lstm_net_forward.1} parent=1 // pred_region
      _
    $region37: #{lstm_net_forward.1} parent=1 // pred_fallthru
      _
    // Predicated region
    $region38: #{lstm_net_forward.1} parent=1 // pred_check
      _
    $region39: #{lstm_net_forward.1} parent=1 // pred_check_branch
      %2833 = sbr.rel (0) target = $region41
    $region40: #{lstm_net_forward.1} parent=1 // pred_region
      _
    $region41: #{lstm_net_forward.1} parent=1 // pred_fallthru
      _
    %2834 = vsyncpa [#allocation6], 1

</llo_original>
